<compile_context>
chip_gen: v7x
topology: tpu7x:2x2x1
jax: 0.10.0
libtpu: 0.0.40
codegen_flags: <defaults>
</compile_context>

<pallas_src>
import math

import jax
import jax.numpy as jnp
from jax import lax
from jax.experimental import pallas as pl
from jax.experimental.pallas import tpu as pltpu

# ----- module hyper-parameters (match MultiTimeAttention defaults) -----
EMBED_TIME = 32
NUM_HEADS = 8
INPUT_DIM = 32
NHIDDEN = 32
EK = EMBED_TIME // NUM_HEADS          # embed_time_k
LN_EPS = 1e-5

# MXU operand dtype.  Set to jnp.bfloat16 on v6e/v7x for ~2x MXU rate and half the
# vreg/VMEM footprint of the matmul operands (re-validate the 1e-4 tolerance first);
# float32 keeps exact parity with the reference, so it is the default here.
DOT_DTYPE = jnp.float32

# rows of the consolidated (10, E) weight slab
_VEC_ROWS = ['te_w', 'te_b', 'per_mask', 'bq', 'b1', 'ln_g', 'ln_b', 'b2', 'bo']


def mtand_kernel(q_ref, k_ref, v_ref, vecs_ref, kcols_ref, mats_ref, wo_ref,
                 band_ref, bdm_ref, out_ref):
    TB, Lt, _ = q_ref.shape
    Lk = k_ref.shape[2]
    D = v_ref.shape[2]
    E = EMBED_TIME
    H = NUM_HEADS
    f32 = jnp.float32

    def mm(a, b):
        return jnp.dot(a.astype(DOT_DTYPE), b.astype(DOT_DTYPE),
                       preferred_element_type=f32)

    # ---- consolidated weights (static slices; zero runtime cost) ----
    vecs = vecs_ref[...]                                   # (10, E)
    te_w, te_b, pm = vecs[0:1, :], vecs[1:2, :], vecs[2:3, :]
    bq = vecs[3:4, :]
    b1, ln_g, ln_b, b2 = vecs[4:5, :], vecs[5:6, :], vecs[6:7, :], vecs[7:8, :]
    bo = vecs[8:9, :]
    dec = jnp.reshape(vecs[9:10, 0:1], (1, 1, 1))          # decay weight (scalar)

    kc = kcols_ref[...]                                    # (E, 4): column-oriented
    kw_c, kb_c, pm_c, bk_c = kc[:, 0:1], kc[:, 1:2], kc[:, 2:3], kc[:, 3:4]

    Wq = mats_ref[0]                                       # (E, E)
    WkT = mats_ref[1]                                      # (E, E)  (= Wk^T)
    W1 = mats_ref[2]                                       # (D, NHIDDEN)
    W2 = mats_ref[3]                                       # (NHIDDEN, D)
    band = band_ref[...]                                   # (E, H*Lk)  head-band mask
    bdm = bdm_ref[...]                                     # (H*Lk, H*D) block-diag mask

    q_col = q_ref[...]                                     # (TB, Lt, 1)
    k_row = k_ref[...]                                     # (TB, 1, Lk)
    v = v_ref[...]                                         # (TB, Lk, D)

    # ---- value-transfer MLP (identical across query times), batch-folded ----
    v2 = v.reshape(TB * Lk, D)
    z1 = mm(v2, W1) + b1
    mu = jnp.mean(z1, axis=-1, keepdims=True)
    var = jnp.mean((z1 - mu) ** 2, axis=-1, keepdims=True)
    z = (z1 - mu) * lax.rsqrt(var + LN_EPS) * ln_g + ln_b
    z = jnp.maximum(z, 0.0)
    dv = (mm(z, W2) + b2).reshape(TB, Lk, D)

    # ---- query time embedding + projection (rows=(b,t), lanes=E), batch-folded ----
    qf = q_col.reshape(TB * Lt, 1)
    q_aff = qf * te_w + te_b
    qe = pm * jnp.sin(q_aff) + (1.0 - pm) * q_aff
    Q = (mm(qe, Wq) + bq).reshape(TB, Lt, E)

    # ---- key time embedding + projection built directly TRANSPOSED (TB, E, Lk):
    #      only broadcasts + one batched matmul, no relayouts.
    k_aff = kw_c[None] * k_row + kb_c[None]                # (TB, E, Lk)
    ke_T = pm_c[None] * jnp.sin(k_aff) + (1.0 - pm_c[None]) * k_aff
    wkT_b = jnp.broadcast_to(WkT[None].astype(DOT_DTYPE), (TB, E, E))
    K_T = jnp.einsum('bef,bfk->bek', wkT_b, ke_T.astype(DOT_DTYPE),
                     preferred_element_type=f32) + bk_c[None]      # (TB, E, Lk)

    # ---- head-folded scores: lane c = h*Lk + k (128 dense lanes) ----
    K_bd = jnp.tile(K_T, (1, 1, H)) * band[None]                   # (TB, E, H*Lk)
    s = jnp.einsum('bte,bec->btc', Q.astype(DOT_DTYPE), K_bd.astype(DOT_DTYPE),
                   preferred_element_type=f32) * (1.0 / math.sqrt(EK))

    # ---- softmax over keys (per head).  The ROW max is subtracted: it is a constant
    # within every head's lane group, so the normalized softmax is exact.  1/l is
    # folded in after the value matmul on the small (., H*D) result. ----
    m = jnp.max(s, axis=-1, keepdims=True)
    p = jnp.exp(s - m)                                             # (TB, Lt, H*Lk)

    # ---- time-decay gate (EUP reciprocal; VALU stays free) ----
    d_t = q_col - k_row                                            # (TB, Lt, Lk)
    g = d_t * pl.reciprocal(1.0 + dec * d_t, approx=False)
    g_t = jnp.tile(g, (1, 1, H))                                   # (TB, Lt, H*Lk)

    # ---- merged value matmul against block-diagonal [dv; v]:
    #      (Lt, 2*H*Lk=256) @ (2*H*Lk, H*D=256) -> oh already in (Lt, H*D) lane layout.
    dv_bd = jnp.tile(dv, (1, H, H)) * bdm[None]                    # (TB, H*Lk, H*D)
    v_bd = jnp.tile(v, (1, H, H)) * bdm[None]                      # (TB, H*Lk, H*D)
    rhs = jnp.concatenate([dv_bd, v_bd], axis=1)                   # (TB, 2*H*Lk, H*D)
    lhs = jnp.concatenate([p * g_t, p], axis=-1)                   # (TB, Lt, 2*H*Lk)
    oh_raw = jnp.einsum('btr,brc->btc', lhs.astype(DOT_DTYPE), rhs.astype(DOT_DTYPE),
                        preferred_element_type=f32)                # (TB, Lt, H*D)

    # softmax denominator broadcast into the same (h, d) lane layout with one
    # ones-block matmul (the block-diag mask IS the ones matrix), then 1/l on the EUP.
    l_oh = jnp.dot(p.reshape(TB * Lt, H * Lk), bdm, preferred_element_type=f32)
    oh = oh_raw.reshape(TB * Lt, H * D) * pl.reciprocal(l_oh, approx=False)

    # ---- output projection (contraction depth H*D = 256) ----
    out = mm(oh, wo_ref[...]) + bo                                 # (TB*Lt, NHIDDEN)
    out_ref[...] = out.reshape(TB, Lt, NHIDDEN)


def _vmem_capacity_bytes():
    try:
        return int(pltpu.get_tpu_info().vmem_capacity_bytes)
    except Exception:
        return 64 * 1024 * 1024        # conservative (v7x per-TC) fallback


def multi_time_attention(params, query_tt, key_tt, value, *, block_b=64):
    B, Lt = query_tt.shape
    Lk = key_tt.shape[1]
    D = value.shape[-1]
    E, H = EMBED_TIME, NUM_HEADS
    f32 = jnp.float32

    # ---- batch tile: as large as the VMEM budget allows (generation aware) ----
    vmem_cap = _vmem_capacity_bytes()
    # rough per-batch-element live f32 bytes: block-diag value operand + its tiles,
    # score/prob/gate/output intermediates, padded input tiles.
    per_elem = 4 * (4 * H * Lk * H * D + 8 * Lt * H * Lk + 4 * Lt * H * D
                    + 6 * Lk * D + 4 * Lt * 128)
    tb_cap = max(8, (int(0.4 * vmem_cap) // per_elem) // 8 * 8)
    TB = max(1, min(block_b, B, tb_cap))
    # v7x megacore: ensure the (parallel) batch grid has >= 2 steps when B allows,
    # so both TensorCores get work (keeps TB a multiple of 8).
    if B >= 16 and pl.cdiv(B, TB) < 2:
        TB = min(TB, (((B + 1) // 2 + 7) // 8) * 8)
    nb = pl.cdiv(B, TB)
    B_pad = nb * TB

    def pad_b(x):
        if B_pad == B:
            return x
        return jnp.pad(x, [(0, B_pad - B)] + [(0, 0)] * (x.ndim - 1))

    q_col = pad_b(query_tt.astype(f32)[:, :, None])     # (B_pad, Lt, 1)  sublane-major
    k_row = pad_b(key_tt.astype(f32)[:, None, :])       # (B_pad, 1, Lk)  lane-major
    val = pad_b(value.astype(f32))                       # (B_pad, Lk, D)

    # ---- consolidated weights ----
    dec_row = jnp.pad(params['dec_w'].astype(f32), ((0, 0), (0, E - 1)))
    vecs = jnp.concatenate(
        [params[k].astype(f32) for k in _VEC_ROWS] + [dec_row], axis=0)     # (10, E)
    kcols = jnp.concatenate(
        [params['te_w'].T, params['te_b'].T, params['per_mask'].T, params['bk'].T],
        axis=1).astype(f32)                                                  # (E, 4)
    mats = jnp.stack([params['Wq'], params['Wk'].T, params['W1'], params['W2']],
                     axis=0).astype(f32)                                     # (4, E, E)
    wo = params['Wo'].astype(f32)                                            # (H*D, NH)

    # constant masks, built ONCE here (kept VMEM-resident via constant index_map)
    band = (jnp.arange(E)[:, None] // EK ==
            jnp.arange(H * Lk)[None, :] // Lk).astype(f32)                   # (E, H*Lk)
    bdm = (jnp.arange(H * Lk)[:, None] // Lk ==
           jnp.arange(H * D)[None, :] // D).astype(f32)                      # (H*Lk, H*D)

    vmem_limit = int(max(32 * 2**20, min(0.8 * vmem_cap, 120 * 2**20)))

    out = pl.pallas_call(
        mtand_kernel,
        out_shape=jax.ShapeDtypeStruct((B_pad, Lt, NHIDDEN), f32),
        grid_spec=pltpu.PrefetchScalarGridSpec(
            num_scalar_prefetch=0,
            grid=(nb,),
            in_specs=[
                pl.BlockSpec((TB, Lt, 1), lambda b: (b, 0, 0)),
                pl.BlockSpec((TB, 1, Lk), lambda b: (b, 0, 0)),
                pl.BlockSpec((TB, Lk, D), lambda b: (b, 0, 0)),
                pl.BlockSpec(vecs.shape, lambda b: (0, 0)),
                pl.BlockSpec(kcols.shape, lambda b: (0, 0)),
                pl.BlockSpec(mats.shape, lambda b: (0, 0, 0)),
                pl.BlockSpec(wo.shape, lambda b: (0, 0)),
                pl.BlockSpec(band.shape, lambda b: (0, 0)),
                pl.BlockSpec(bdm.shape, lambda b: (0, 0)),
            ],
            out_specs=pl.BlockSpec((TB, Lt, NHIDDEN), lambda b: (b, 0, 0)),
        ),
        compiler_params=pltpu.CompilerParams(
            dimension_semantics=("parallel",),
            vmem_limit_bytes=vmem_limit,
        ),
    )(q_col, k_row, val, vecs, kcols, mats, wo, band, bdm)

    return out[:B]


# ---------------- pure-JAX reference (literal translation of the PyTorch code) ----
def reference_forward(params, query_tt, key_tt, value):
    B, Lt = query_tt.shape
    Lk = key_tt.shape[1]
    D = value.shape[-1]

    # value transfer
    val_rep = jnp.broadcast_to(value[:, None, :, :], (B, Lt, Lk, D))
    d_t = query_tt[:, :, None] - key_tt[:, None, :]                       # (B,Lt,Lk)
    z1 = val_rep @ params['W1'] + params['b1'][0]
    mu = z1.mean(-1, keepdims=True)
    var = ((z1 - mu) ** 2).mean(-1, keepdims=True)
    z = (z1 - mu) / jnp.sqrt(var + LN_EPS) * params['ln_g'][0] + params['ln_b'][0]
    z = jnp.maximum(z, 0.0)
    dv = z @ params['W2'] + params['b2'][0]
    dt4 = d_t[..., None]
    time_decay = 1.0 / (1.0 + params['dec_w'][0, 0] * dt4)
    val_t = dv * time_decay * dt4 + val_rep                                # (B,Lt,Lk,D)

    # time embedding
    def temb(tt):
        aff = tt[..., None] * params['te_w'][0] + params['te_b'][0]
        pm = params['per_mask'][0]
        return pm * jnp.sin(aff) + (1.0 - pm) * aff

    qe = temb(query_tt)
    ke = temb(key_tt)
    Q = (qe @ params['Wq'] + params['bq'][0]).reshape(B, Lt, NUM_HEADS, EK).transpose(0, 2, 1, 3)
    K = (ke @ params['Wk'] + params['bk'][0]).reshape(B, Lk, NUM_HEADS, EK).transpose(0, 2, 1, 3)
    scores = jnp.einsum('bhte,bhke->bhtk', Q, K) / math.sqrt(EK)
    p = jax.nn.softmax(scores, axis=-1)                                    # (B,h,Lt,Lk)
    x = jnp.einsum('bhtk,btkd->bhtd', p, val_t)                            # (B,h,Lt,D)
    x = x.transpose(0, 2, 1, 3).reshape(B, Lt, NUM_HEADS * D)
    return x @ params['Wo'] + params['bo'][0]


def init_params(key):
    ks = jax.random.split(key, 14)

    def nrm(k, shape, scale=0.1):
        return (scale * jax.random.normal(k, shape)).astype(jnp.float32)

    E, D, H, HD = EMBED_TIME, INPUT_DIM, NHIDDEN, NUM_HEADS * INPUT_DIM
    # combined time-embedding params: index 0 = linear branch, 1..E-1 = sin(periodic)
    per_mask = jnp.concatenate(
        [jnp.zeros((1, 1), jnp.float32), jnp.ones((1, E - 1), jnp.float32)], axis=-1)
    return dict(
        te_w=nrm(ks[0], (1, E), 0.5),
        te_b=nrm(ks[1], (1, E), 0.5),
        per_mask=per_mask,
        Wq=nrm(ks[2], (E, E)), bq=nrm(ks[3], (1, E)),
        Wk=nrm(ks[4], (E, E)), bk=nrm(ks[5], (1, E)),
        W1=nrm(ks[6], (D, H)), b1=nrm(ks[7], (1, H)),
        ln_g=1.0 + nrm(ks[8], (1, H), 0.05), ln_b=nrm(ks[9], (1, H), 0.05),
        W2=nrm(ks[10], (H, D)), b2=nrm(ks[11], (1, D)),
        dec_w=jnp.full((1, 1), 0.05, jnp.float32),       # Linear(1,1,bias=False)
        Wo=nrm(ks[12], (HD, H)), bo=nrm(ks[13], (1, H)),
    )


if __name__ == "__main__":
    key = jax.random.PRNGKey(0)
    kp, kq, kk, kv = jax.random.split(key, 4)

    B, Lt, Lk = 2, 8, 16
    params = init_params(kp)
    query_tt = jax.random.uniform(kq, (B, Lt), dtype=jnp.float32)
    key_tt = jax.random.uniform(kk, (B, Lk), dtype=jnp.float32)
    value = jax.random.normal(kv, (B, Lk, INPUT_DIM), dtype=jnp.float32)

    out = multi_time_attention(params, query_tt, key_tt, value)
    out = jax.block_until_ready(out)

    ref = reference_forward(params, query_tt, key_tt, value)
    assert out.shape == (B, Lt, NHIDDEN), out.shape
    max_err = float(jnp.max(jnp.abs(out - ref)))
    assert jnp.allclose(out, ref, atol=1e-4, rtol=1e-4), f"max abs err = {max_err}"
    print("KERNEL_OK")
</pallas_src>

<mosaic_0001>
module attributes {stable_mosaic.version = 11 : i64} {
  func.func @mtand_kernel(%arg0: i32, %arg1: memref<2x8x1xf32, #tpu.memory_space<vmem>>, %arg2: memref<2x1x16xf32, #tpu.memory_space<vmem>>, %arg3: memref<2x16x32xf32, #tpu.memory_space<vmem>>, %arg4: memref<10x32xf32, #tpu.memory_space<vmem>>, %arg5: memref<32x4xf32, #tpu.memory_space<vmem>>, %arg6: memref<4x32x32xf32, #tpu.memory_space<vmem>>, %arg7: memref<256x32xf32, #tpu.memory_space<vmem>>, %arg8: memref<32x128xf32, #tpu.memory_space<vmem>>, %arg9: memref<128x256xf32, #tpu.memory_space<vmem>>, %arg10: memref<2x8x32xf32, #tpu.memory_space<vmem>>) attributes {dimension_semantics = [#tpu.dimension_semantics<parallel>], iteration_bounds = array<i64: 1>, scalar_prefetch = 0 : i64, scratch_operands = 0 : i64, tpu.core_type = #tpu.core_type<tc>, window_params = [{transform_indices = @transform_0, window_bounds = array<i64: 2, 8, 1>}, {transform_indices = @transform_1, window_bounds = array<i64: 2, 1, 16>}, {transform_indices = @transform_2, window_bounds = array<i64: 2, 16, 32>}, {pipeline_mode = #tpu.pipeline_mode<synchronous>, transform_indices = @transform_3, window_bounds = array<i64: 10, 32>}, {pipeline_mode = #tpu.pipeline_mode<synchronous>, transform_indices = @transform_4, window_bounds = array<i64: 32, 4>}, {pipeline_mode = #tpu.pipeline_mode<synchronous>, transform_indices = @transform_5, window_bounds = array<i64: 4, 32, 32>}, {pipeline_mode = #tpu.pipeline_mode<synchronous>, transform_indices = @transform_6, window_bounds = array<i64: 256, 32>}, {pipeline_mode = #tpu.pipeline_mode<synchronous>, transform_indices = @transform_7, window_bounds = array<i64: 32, 128>}, {pipeline_mode = #tpu.pipeline_mode<synchronous>, transform_indices = @transform_8, window_bounds = array<i64: 128, 256>}, {transform_indices = @transform_9, window_bounds = array<i64: 2, 8, 32>}]} {
    %c0 = arith.constant 0 : index
    %c0_0 = arith.constant 0 : index
    %0 = vector.load %arg4[%c0, %c0_0] : memref<10x32xf32, #tpu.memory_space<vmem>>, vector<10x32xf32>
    %1 = vector.extract_strided_slice %0 {offsets = [0, 0], sizes = [1, 32], strides = [1, 1]} : vector<10x32xf32> to vector<1x32xf32>
    %2 = vector.extract_strided_slice %0 {offsets = [1, 0], sizes = [1, 32], strides = [1, 1]} : vector<10x32xf32> to vector<1x32xf32>
    %3 = vector.extract_strided_slice %0 {offsets = [2, 0], sizes = [1, 32], strides = [1, 1]} : vector<10x32xf32> to vector<1x32xf32>
    %4 = vector.extract_strided_slice %0 {offsets = [3, 0], sizes = [1, 32], strides = [1, 1]} : vector<10x32xf32> to vector<1x32xf32>
    %5 = vector.extract_strided_slice %0 {offsets = [4, 0], sizes = [1, 32], strides = [1, 1]} : vector<10x32xf32> to vector<1x32xf32>
    %6 = vector.extract_strided_slice %0 {offsets = [5, 0], sizes = [1, 32], strides = [1, 1]} : vector<10x32xf32> to vector<1x32xf32>
    %7 = vector.extract_strided_slice %0 {offsets = [6, 0], sizes = [1, 32], strides = [1, 1]} : vector<10x32xf32> to vector<1x32xf32>
    %8 = vector.extract_strided_slice %0 {offsets = [7, 0], sizes = [1, 32], strides = [1, 1]} : vector<10x32xf32> to vector<1x32xf32>
    %9 = vector.extract_strided_slice %0 {offsets = [8, 0], sizes = [1, 32], strides = [1, 1]} : vector<10x32xf32> to vector<1x32xf32>
    %10 = vector.extract_strided_slice %0 {offsets = [9, 0], sizes = [1, 1], strides = [1, 1]} : vector<10x32xf32> to vector<1x1xf32>
    %11 = vector.shape_cast %10 : vector<1x1xf32> to vector<1x1x1xf32>
    %c0_1 = arith.constant 0 : index
    %c0_2 = arith.constant 0 : index
    %12 = vector.load %arg5[%c0_1, %c0_2] : memref<32x4xf32, #tpu.memory_space<vmem>>, vector<32x4xf32>
    %13 = vector.extract_strided_slice %12 {offsets = [0, 0], sizes = [32, 1], strides = [1, 1]} : vector<32x4xf32> to vector<32x1xf32>
    %14 = vector.extract_strided_slice %12 {offsets = [0, 1], sizes = [32, 1], strides = [1, 1]} : vector<32x4xf32> to vector<32x1xf32>
    %15 = vector.extract_strided_slice %12 {offsets = [0, 2], sizes = [32, 1], strides = [1, 1]} : vector<32x4xf32> to vector<32x1xf32>
    %16 = vector.extract_strided_slice %12 {offsets = [0, 3], sizes = [32, 1], strides = [1, 1]} : vector<32x4xf32> to vector<32x1xf32>
    %c0_3 = arith.constant 0 : index
    %c0_4 = arith.constant 0 : index
    %c0_5 = arith.constant 0 : index
    %17 = vector.load %arg6[%c0_3, %c0_4, %c0_5] : memref<4x32x32xf32, #tpu.memory_space<vmem>>, vector<1x32x32xf32>
    %18 = vector.shape_cast %17 : vector<1x32x32xf32> to vector<32x32xf32>
    %c1 = arith.constant 1 : index
    %c0_6 = arith.constant 0 : index
    %c0_7 = arith.constant 0 : index
    %19 = vector.load %arg6[%c1, %c0_6, %c0_7] : memref<4x32x32xf32, #tpu.memory_space<vmem>>, vector<1x32x32xf32>
    %20 = vector.shape_cast %19 : vector<1x32x32xf32> to vector<32x32xf32>
    %c2 = arith.constant 2 : index
    %c0_8 = arith.constant 0 : index
    %c0_9 = arith.constant 0 : index
    %21 = vector.load %arg6[%c2, %c0_8, %c0_9] : memref<4x32x32xf32, #tpu.memory_space<vmem>>, vector<1x32x32xf32>
    %22 = vector.shape_cast %21 : vector<1x32x32xf32> to vector<32x32xf32>
    %c3 = arith.constant 3 : index
    %c0_10 = arith.constant 0 : index
    %c0_11 = arith.constant 0 : index
    %23 = vector.load %arg6[%c3, %c0_10, %c0_11] : memref<4x32x32xf32, #tpu.memory_space<vmem>>, vector<1x32x32xf32>
    %24 = vector.shape_cast %23 : vector<1x32x32xf32> to vector<32x32xf32>
    %c0_12 = arith.constant 0 : index
    %c0_13 = arith.constant 0 : index
    %25 = vector.load %arg8[%c0_12, %c0_13] : memref<32x128xf32, #tpu.memory_space<vmem>>, vector<32x128xf32>
    %c0_14 = arith.constant 0 : index
    %c0_15 = arith.constant 0 : index
    %26 = vector.load %arg9[%c0_14, %c0_15] : memref<128x256xf32, #tpu.memory_space<vmem>>, vector<128x256xf32>
    %c0_16 = arith.constant 0 : index
    %c0_17 = arith.constant 0 : index
    %c0_18 = arith.constant 0 : index
    %27 = vector.load %arg1[%c0_16, %c0_17, %c0_18] : memref<2x8x1xf32, #tpu.memory_space<vmem>>, vector<2x8x1xf32>
    %c0_19 = arith.constant 0 : index
    %c0_20 = arith.constant 0 : index
    %c0_21 = arith.constant 0 : index
    %28 = vector.load %arg2[%c0_19, %c0_20, %c0_21] : memref<2x1x16xf32, #tpu.memory_space<vmem>>, vector<2x1x16xf32>
    %c0_22 = arith.constant 0 : index
    %c0_23 = arith.constant 0 : index
    %c0_24 = arith.constant 0 : index
    %29 = vector.load %arg3[%c0_22, %c0_23, %c0_24] : memref<2x16x32xf32, #tpu.memory_space<vmem>>, vector<2x16x32xf32>
    %30 = vector.shape_cast %29 : vector<2x16x32xf32> to vector<32x32xf32>
    %cst = arith.constant dense<0.000000e+00> : vector<32x32xf32>
    %31 = tpu.matmul %30, %22, %cst {dimension_numbers = #tpu.dot_dimension_numbers<[1], [0], [0], [1], [0, 0, 1, 1], [], []>} : vector<32x32xf32>, vector<32x32xf32>, vector<32x32xf32> -> vector<32x32xf32>
    %32 = vector.broadcast %5 : vector<1x32xf32> to vector<32x32xf32>
    %33 = arith.addf %31, %32 : vector<32x32xf32>
    %cst_25 = arith.constant dense<0.000000e+00> : vector<32xf32>
    %34 = vector.multi_reduction <add>, %33, %cst_25 [1] : vector<32x32xf32> to vector<32xf32>
    %35 = vector.shape_cast %34 : vector<32xf32> to vector<32x1xf32>
    %cst_26 = arith.constant 3.200000e+01 : f32
    %36 = vector.broadcast %cst_26 : f32 to vector<32x1xf32>
    %37 = arith.divf %35, %36 : vector<32x1xf32>
    %38 = vector.broadcast %37 : vector<32x1xf32> to vector<32x32xf32>
    %39 = arith.subf %33, %38 : vector<32x32xf32>
    %40 = arith.mulf %39, %39 : vector<32x32xf32>
    %cst_27 = arith.constant dense<0.000000e+00> : vector<32xf32>
    %41 = vector.multi_reduction <add>, %40, %cst_27 [1] : vector<32x32xf32> to vector<32xf32>
    %42 = vector.shape_cast %41 : vector<32xf32> to vector<32x1xf32>
    %cst_28 = arith.constant 3.200000e+01 : f32
    %43 = vector.broadcast %cst_28 : f32 to vector<32x1xf32>
    %44 = arith.divf %42, %43 : vector<32x1xf32>
    %45 = vector.broadcast %37 : vector<32x1xf32> to vector<32x32xf32>
    %46 = arith.subf %33, %45 : vector<32x32xf32>
    %cst_29 = arith.constant 9.99999974E-6 : f32
    %47 = vector.broadcast %cst_29 : f32 to vector<32x1xf32>
    %48 = arith.addf %44, %47 : vector<32x1xf32>
    %49 = math.rsqrt %48 : vector<32x1xf32>
    %50 = vector.broadcast %49 : vector<32x1xf32> to vector<32x32xf32>
    %51 = arith.mulf %46, %50 : vector<32x32xf32>
    %52 = vector.broadcast %6 : vector<1x32xf32> to vector<32x32xf32>
    %53 = arith.mulf %51, %52 : vector<32x32xf32>
    %54 = vector.broadcast %7 : vector<1x32xf32> to vector<32x32xf32>
    %55 = arith.addf %53, %54 : vector<32x32xf32>
    %cst_30 = arith.constant 0.000000e+00 : f32
    %56 = vector.broadcast %cst_30 : f32 to vector<32x32xf32>
    %57 = arith.maximumf %55, %56 : vector<32x32xf32>
    %cst_31 = arith.constant dense<0.000000e+00> : vector<32x32xf32>
    %58 = tpu.matmul %57, %24, %cst_31 {dimension_numbers = #tpu.dot_dimension_numbers<[1], [0], [0], [1], [0, 0, 1, 1], [], []>} : vector<32x32xf32>, vector<32x32xf32>, vector<32x32xf32> -> vector<32x32xf32>
    %59 = vector.broadcast %8 : vector<1x32xf32> to vector<32x32xf32>
    %60 = arith.addf %58, %59 : vector<32x32xf32>
    %61 = vector.shape_cast %60 : vector<32x32xf32> to vector<2x16x32xf32>
    %62 = vector.shape_cast %27 : vector<2x8x1xf32> to vector<16x1xf32>
    %63 = vector.broadcast %62 : vector<16x1xf32> to vector<16x32xf32>
    %64 = vector.broadcast %1 : vector<1x32xf32> to vector<16x32xf32>
    %65 = arith.mulf %63, %64 : vector<16x32xf32>
    %66 = vector.broadcast %2 : vector<1x32xf32> to vector<16x32xf32>
    %67 = arith.addf %65, %66 : vector<16x32xf32>
    %68 = math.sin %67 : vector<16x32xf32>
    %69 = vector.broadcast %3 : vector<1x32xf32> to vector<16x32xf32>
    %70 = arith.mulf %69, %68 : vector<16x32xf32>
    %cst_32 = arith.constant 1.000000e+00 : f32
    %71 = vector.broadcast %cst_32 : f32 to vector<1x32xf32>
    %72 = arith.subf %71, %3 : vector<1x32xf32>
    %73 = vector.broadcast %72 : vector<1x32xf32> to vector<16x32xf32>
    %74 = arith.mulf %73, %67 : vector<16x32xf32>
    %75 = arith.addf %70, %74 : vector<16x32xf32>
    %cst_33 = arith.constant dense<0.000000e+00> : vector<16x32xf32>
    %76 = tpu.matmul %75, %18, %cst_33 {dimension_numbers = #tpu.dot_dimension_numbers<[1], [0], [0], [1], [0, 0, 1, 1], [], []>} : vector<16x32xf32>, vector<32x32xf32>, vector<16x32xf32> -> vector<16x32xf32>
    %77 = vector.broadcast %4 : vector<1x32xf32> to vector<16x32xf32>
    %78 = arith.addf %76, %77 : vector<16x32xf32>
    %79 = vector.shape_cast %78 : vector<16x32xf32> to vector<2x8x32xf32>
    %80 = vector.shape_cast %13 : vector<32x1xf32> to vector<1x32x1xf32>
    %81 = vector.broadcast %80 : vector<1x32x1xf32> to vector<2x32x16xf32>
    %82 = vector.broadcast %28 : vector<2x1x16xf32> to vector<2x32x16xf32>
    %83 = arith.mulf %81, %82 : vector<2x32x16xf32>
    %84 = vector.shape_cast %14 : vector<32x1xf32> to vector<1x32x1xf32>
    %85 = vector.broadcast %84 : vector<1x32x1xf32> to vector<2x32x16xf32>
    %86 = arith.addf %83, %85 : vector<2x32x16xf32>
    %87 = vector.shape_cast %15 : vector<32x1xf32> to vector<1x32x1xf32>
    %88 = math.sin %86 : vector<2x32x16xf32>
    %89 = vector.broadcast %87 : vector<1x32x1xf32> to vector<2x32x16xf32>
    %90 = arith.mulf %89, %88 : vector<2x32x16xf32>
    %91 = vector.shape_cast %15 : vector<32x1xf32> to vector<1x32x1xf32>
    %cst_34 = arith.constant 1.000000e+00 : f32
    %92 = vector.broadcast %cst_34 : f32 to vector<1x32x1xf32>
    %93 = arith.subf %92, %91 : vector<1x32x1xf32>
    %94 = vector.broadcast %93 : vector<1x32x1xf32> to vector<2x32x16xf32>
    %95 = arith.mulf %94, %86 : vector<2x32x16xf32>
    %96 = arith.addf %90, %95 : vector<2x32x16xf32>
    %97 = vector.shape_cast %20 : vector<32x32xf32> to vector<1x32x32xf32>
    %98 = vector.shape_cast %97 : vector<1x32x32xf32> to vector<1x32x32xf32>
    %99 = vector.broadcast %98 : vector<1x32x32xf32> to vector<2x32x32xf32>
    "tpu.trace_start"() <{level = 10 : i32, message = "bef,bfk->bek"}> : () -> ()
    %cst_35 = arith.constant dense<0.000000e+00> : vector<2x32x16xf32>
    %100 = tpu.matmul %99, %96, %cst_35 {dimension_numbers = #tpu.dot_dimension_numbers<[2], [1], [1], [2], [0, 0, 0, 1, 1, 2], [0], [0]>} : vector<2x32x32xf32>, vector<2x32x16xf32>, vector<2x32x16xf32> -> vector<2x32x16xf32>
    "tpu.trace_stop"() : () -> ()
    %101 = vector.shape_cast %16 : vector<32x1xf32> to vector<1x32x1xf32>
    %102 = vector.broadcast %101 : vector<1x32x1xf32> to vector<2x32x16xf32>
    %103 = arith.addf %100, %102 : vector<2x32x16xf32>
    %104 = tpu.concatenate %103, %103, %103, %103, %103, %103, %103, %103 in 2 : vector<2x32x16xf32>, vector<2x32x16xf32>, vector<2x32x16xf32>, vector<2x32x16xf32>, vector<2x32x16xf32>, vector<2x32x16xf32>, vector<2x32x16xf32>, vector<2x32x16xf32> -> vector<2x32x128xf32>
    %105 = vector.shape_cast %25 : vector<32x128xf32> to vector<1x32x128xf32>
    %106 = vector.broadcast %105 : vector<1x32x128xf32> to vector<2x32x128xf32>
    %107 = arith.mulf %104, %106 : vector<2x32x128xf32>
    "tpu.trace_start"() <{level = 10 : i32, message = "bte,bec->btc"}> : () -> ()
    %cst_36 = arith.constant dense<0.000000e+00> : vector<2x8x128xf32>
    %108 = tpu.matmul %79, %107, %cst_36 {dimension_numbers = #tpu.dot_dimension_numbers<[2], [1], [1], [2], [0, 0, 0, 1, 1, 2], [0], [0]>} : vector<2x8x32xf32>, vector<2x32x128xf32>, vector<2x8x128xf32> -> vector<2x8x128xf32>
    "tpu.trace_stop"() : () -> ()
    %cst_37 = arith.constant 5.000000e-01 : f32
    %109 = vector.broadcast %cst_37 : f32 to vector<2x8x128xf32>
    %110 = arith.mulf %108, %109 : vector<2x8x128xf32>
    %cst_38 = arith.constant dense<0xFF800000> : vector<2x8xf32>
    %111 = vector.multi_reduction <maximumf>, %110, %cst_38 [2] : vector<2x8x128xf32> to vector<2x8xf32>
    %112 = vector.shape_cast %111 : vector<2x8xf32> to vector<2x8x1xf32>
    %113 = vector.broadcast %112 : vector<2x8x1xf32> to vector<2x8x128xf32>
    %114 = arith.subf %110, %113 : vector<2x8x128xf32>
    %115 = math.exp %114 : vector<2x8x128xf32>
    %116 = vector.broadcast %27 : vector<2x8x1xf32> to vector<2x8x16xf32>
    %117 = vector.broadcast %28 : vector<2x1x16xf32> to vector<2x8x16xf32>
    %118 = arith.subf %116, %117 : vector<2x8x16xf32>
    %119 = vector.broadcast %11 : vector<1x1x1xf32> to vector<2x8x16xf32>
    %120 = arith.mulf %119, %118 : vector<2x8x16xf32>
    %cst_39 = arith.constant 1.000000e+00 : f32
    %121 = vector.broadcast %cst_39 : f32 to vector<2x8x16xf32>
    %122 = arith.addf %121, %120 : vector<2x8x16xf32>
    %123 = tpu.reciprocal %122 : vector<2x8x16xf32> -> vector<2x8x16xf32>
    %124 = arith.mulf %118, %123 : vector<2x8x16xf32>
    %125 = tpu.concatenate %124, %124, %124, %124, %124, %124, %124, %124 in 2 : vector<2x8x16xf32>, vector<2x8x16xf32>, vector<2x8x16xf32>, vector<2x8x16xf32>, vector<2x8x16xf32>, vector<2x8x16xf32>, vector<2x8x16xf32>, vector<2x8x16xf32> -> vector<2x8x128xf32>
    %126 = tpu.concatenate %61, %61, %61, %61, %61, %61, %61, %61 in 1 : vector<2x16x32xf32>, vector<2x16x32xf32>, vector<2x16x32xf32>, vector<2x16x32xf32>, vector<2x16x32xf32>, vector<2x16x32xf32>, vector<2x16x32xf32>, vector<2x16x32xf32> -> vector<2x128x32xf32>
    %127 = tpu.concatenate %126, %126, %126, %126, %126, %126, %126, %126 in 2 : vector<2x128x32xf32>, vector<2x128x32xf32>, vector<2x128x32xf32>, vector<2x128x32xf32>, vector<2x128x32xf32>, vector<2x128x32xf32>, vector<2x128x32xf32>, vector<2x128x32xf32> -> vector<2x128x256xf32>
    %128 = vector.shape_cast %26 : vector<128x256xf32> to vector<1x128x256xf32>
    %129 = vector.broadcast %128 : vector<1x128x256xf32> to vector<2x128x256xf32>
    %130 = arith.mulf %127, %129 : vector<2x128x256xf32>
    %131 = tpu.concatenate %29, %29, %29, %29, %29, %29, %29, %29 in 1 : vector<2x16x32xf32>, vector<2x16x32xf32>, vector<2x16x32xf32>, vector<2x16x32xf32>, vector<2x16x32xf32>, vector<2x16x32xf32>, vector<2x16x32xf32>, vector<2x16x32xf32> -> vector<2x128x32xf32>
    %132 = tpu.concatenate %131, %131, %131, %131, %131, %131, %131, %131 in 2 : vector<2x128x32xf32>, vector<2x128x32xf32>, vector<2x128x32xf32>, vector<2x128x32xf32>, vector<2x128x32xf32>, vector<2x128x32xf32>, vector<2x128x32xf32>, vector<2x128x32xf32> -> vector<2x128x256xf32>
    %133 = vector.shape_cast %26 : vector<128x256xf32> to vector<1x128x256xf32>
    %134 = vector.broadcast %133 : vector<1x128x256xf32> to vector<2x128x256xf32>
    %135 = arith.mulf %132, %134 : vector<2x128x256xf32>
    %136 = tpu.concatenate %130, %135 in 1 : vector<2x128x256xf32>, vector<2x128x256xf32> -> vector<2x256x256xf32>
    %137 = arith.mulf %115, %125 : vector<2x8x128xf32>
    %138 = tpu.concatenate %137, %115 in 2 : vector<2x8x128xf32>, vector<2x8x128xf32> -> vector<2x8x256xf32>
    "tpu.trace_start"() <{level = 10 : i32, message = "btr,brc->btc"}> : () -> ()
    %cst_40 = arith.constant dense<0.000000e+00> : vector<2x8x256xf32>
    %139 = tpu.matmul %138, %136, %cst_40 {dimension_numbers = #tpu.dot_dimension_numbers<[2], [1], [1], [2], [0, 0, 0, 1, 1, 2], [0], [0]>} : vector<2x8x256xf32>, vector<2x256x256xf32>, vector<2x8x256xf32> -> vector<2x8x256xf32>
    "tpu.trace_stop"() : () -> ()
    %140 = vector.shape_cast %115 : vector<2x8x128xf32> to vector<16x128xf32>
    %cst_41 = arith.constant dense<0.000000e+00> : vector<16x256xf32>
    %141 = tpu.matmul %140, %26, %cst_41 {dimension_numbers = #tpu.dot_dimension_numbers<[1], [0], [0], [1], [0, 0, 1, 1], [], []>} : vector<16x128xf32>, vector<128x256xf32>, vector<16x256xf32> -> vector<16x256xf32>
    %142 = vector.shape_cast %139 : vector<2x8x256xf32> to vector<16x256xf32>
    %143 = tpu.reciprocal %141 : vector<16x256xf32> -> vector<16x256xf32>
    %144 = arith.mulf %142, %143 : vector<16x256xf32>
    %c0_42 = arith.constant 0 : index
    %c0_43 = arith.constant 0 : index
    %145 = vector.load %arg7[%c0_42, %c0_43] : memref<256x32xf32, #tpu.memory_space<vmem>>, vector<256x32xf32>
    %cst_44 = arith.constant dense<0.000000e+00> : vector<16x32xf32>
    %146 = tpu.matmul %144, %145, %cst_44 {dimension_numbers = #tpu.dot_dimension_numbers<[1], [0], [0], [1], [0, 0, 1, 1], [], []>} : vector<16x256xf32>, vector<256x32xf32>, vector<16x32xf32> -> vector<16x32xf32>
    %147 = vector.broadcast %9 : vector<1x32xf32> to vector<16x32xf32>
    %148 = arith.addf %146, %147 : vector<16x32xf32>
    %149 = vector.shape_cast %148 : vector<16x32xf32> to vector<2x8x32xf32>
    %c0_45 = arith.constant 0 : index
    %c0_46 = arith.constant 0 : index
    %c0_47 = arith.constant 0 : index
    %150 = vector.load %arg10[%c0_45, %c0_46, %c0_47] : memref<2x8x32xf32, #tpu.memory_space<vmem>>, vector<2x8x32xf32>
    tpu.vector_store %arg10[%c0_45, %c0_46, %c0_47], %149 {strides = array<i32>} : memref<2x8x32xf32, #tpu.memory_space<vmem>>, vector<2x8x32xf32>,
    return
  }
  func.func @transform_0(%arg0: i32) -> (i32, i32, i32) {
    %c0_i32 = arith.constant 0 : i32
    %c0_i32_0 = arith.constant 0 : i32
    %c0_i32_1 = arith.constant 0 : i32
    return %arg0, %c0_i32, %c0_i32_0 : i32, i32, i32
  }
  func.func @transform_1(%arg0: i32) -> (i32, i32, i32) {
    %c0_i32 = arith.constant 0 : i32
    %c0_i32_0 = arith.constant 0 : i32
    %c0_i32_1 = arith.constant 0 : i32
    return %arg0, %c0_i32, %c0_i32_0 : i32, i32, i32
  }
  func.func @transform_2(%arg0: i32) -> (i32, i32, i32) {
    %c0_i32 = arith.constant 0 : i32
    %c0_i32_0 = arith.constant 0 : i32
    %c0_i32_1 = arith.constant 0 : i32
    return %arg0, %c0_i32, %c0_i32_0 : i32, i32, i32
  }
  func.func @transform_3(%arg0: i32) -> (i32, i32) {
    %c0_i32 = arith.constant 0 : i32
    %c0_i32_0 = arith.constant 0 : i32
    %c0_i32_1 = arith.constant 0 : i32
    return %c0_i32, %c0_i32_0 : i32, i32
  }
  func.func @transform_4(%arg0: i32) -> (i32, i32) {
    %c0_i32 = arith.constant 0 : i32
    %c0_i32_0 = arith.constant 0 : i32
    %c0_i32_1 = arith.constant 0 : i32
    return %c0_i32, %c0_i32_0 : i32, i32
  }
  func.func @transform_5(%arg0: i32) -> (i32, i32, i32) {
    %c0_i32 = arith.constant 0 : i32
    %c0_i32_0 = arith.constant 0 : i32
    %c0_i32_1 = arith.constant 0 : i32
    %c0_i32_2 = arith.constant 0 : i32
    return %c0_i32, %c0_i32_0, %c0_i32_1 : i32, i32, i32
  }
  func.func @transform_6(%arg0: i32) -> (i32, i32) {
    %c0_i32 = arith.constant 0 : i32
    %c0_i32_0 = arith.constant 0 : i32
    %c0_i32_1 = arith.constant 0 : i32
    return %c0_i32, %c0_i32_0 : i32, i32
  }
  func.func @transform_7(%arg0: i32) -> (i32, i32) {
    %c0_i32 = arith.constant 0 : i32
    %c0_i32_0 = arith.constant 0 : i32
    %c0_i32_1 = arith.constant 0 : i32
    return %c0_i32, %c0_i32_0 : i32, i32
  }
  func.func @transform_8(%arg0: i32) -> (i32, i32) {
    %c0_i32 = arith.constant 0 : i32
    %c0_i32_0 = arith.constant 0 : i32
    %c0_i32_1 = arith.constant 0 : i32
    return %c0_i32, %c0_i32_0 : i32, i32
  }
  func.func @transform_9(%arg0: i32) -> (i32, i32, i32) {
    %c0_i32 = arith.constant 0 : i32
    %c0_i32_0 = arith.constant 0 : i32
    %c0_i32_1 = arith.constant 0 : i32
    return %arg0, %c0_i32, %c0_i32_0 : i32, i32, i32
  }
}

</mosaic_0001>

<llo_original>
// kernel: tpu_custom_call.1
$region0: #{tpu_custom_call.1}
  #allocation0 [shape = 'u32[]', space=smem, size = 0x4, offset = 0x4, fixed_abs, tag = 'smem constant byte address 0x4 - core index']
  #allocation1 [shape = 'u32[144,128]{1,0:T(1,128)}', space=vmem, size = 0x12000, scoped, tag = 'internal scratch']
  %s0 = inlined_call_operand.vmem [shape: f32[2,8,1], index: 0, kind: input, shape index: {}]
  %s1 = inlined_call_operand.vmem [shape: f32[2,1,16], index: 1, kind: input, shape index: {}]
  %s2 = inlined_call_operand.hbm [shape: f32[2,16,32], index: 2, kind: input, shape index: {}]
  %s3 = inlined_call_operand.vmem [shape: f32[10,32], index: 3, kind: input, shape index: {}]
  %s4 = inlined_call_operand.vmem [shape: f32[32,4], index: 4, kind: input, shape index: {}]
  %s5 = inlined_call_operand.vmem [shape: f32[4,32,32], index: 5, kind: input, shape index: {}]
  %s6 = inlined_call_operand.vmem [shape: f32[256,32], index: 6, kind: input, shape index: {}]
  %s7 = inlined_call_operand.hbm [shape: f32[32,128], index: 7, kind: input, shape index: {}]
  %s8 = inlined_call_operand.vmem [shape: f32[128,256], index: 8, kind: input, shape index: {}]
  %s9 = inlined_call_operand.hbm [shape: f32[2,8,32], index: 9, kind: output, shape index: {}]
  %s10 = sld [smem:[#allocation0]]
  $region54: #{tpu_custom_call.1} parent=0
    _
  %s12 = ssub.s32 1, %s10
  %s13 = scalar_select 0, %s12, %s10
  $region1: #{tpu_custom_call.1} parent=0
    #allocation2 [shape = 'u8[16384]{0}', space=vmem, size = 0x4000, scoped, tag = 'input window, operand 2, single buffered']
    #allocation3 [shape = 's32[1]{0}', space=sflag, size = 0x4, scoped, tag = 'scoped memory for tpu_custom_call.1']
    #allocation4 [shape = 's32[1]{0}', space=sflag, size = 0x4, scoped, tag = 'scoped memory for tpu_custom_call.1']
    #allocation5 [shape = 'u8[16384]{0}', space=vmem, size = 0x4000, scoped, tag = 'input window, operand 7, single buffered']
    #allocation6 [shape = 's32[1]{0}', space=sflag, size = 0x4, scoped, tag = 'scoped memory for tpu_custom_call.1']
    #allocation7 [shape = 'u8[8192]{0}', space=vmem, size = 0x2000, scoped, tag = 'output window, operand 0, single buffered']
    %14 = vsyncpa [#allocation3], 0
    %15 = vsyncpa [#allocation6], 0
    %16 = vsyncpa [#allocation4], 0
    // Predicated region
    $region2: #{tpu_custom_call.1} parent=1 // pred_check
      _
    $region3: #{tpu_custom_call.1} parent=1 // pred_check_branch
      %18 = sbr.rel (0) target = $region5
    $region4: #{tpu_custom_call.1} parent=1 // pred_region
      _
    $region5: #{tpu_custom_call.1} parent=1 // pred_fallthru
      _
    // Predicated region
    $region6: #{tpu_custom_call.1} parent=1 // pred_check
      _
    $region7: #{tpu_custom_call.1} parent=1 // pred_check_branch
      %20 = sbr.rel (0) target = $region9
    $region8: #{tpu_custom_call.1} parent=1 // pred_region
      _
    $region9: #{tpu_custom_call.1} parent=1 // pred_fallthru
      _
    // Predicated region
    $region10: #{tpu_custom_call.1} parent=1 // pred_check
      _
    $region11: #{tpu_custom_call.1} parent=1 // pred_check_branch
      %22 = sbr.rel (0) target = $region13
    $region12: #{tpu_custom_call.1} parent=1 // pred_region
      %s24 = ssub.s32 512, 512
      %25 = vsyncadd [#allocation3], %s24
      %s26 = sshll.u32 [#allocation2], 4
      %s27 = int_to_ptr.vmem [resolvable:$true] %s26
      %32 = dma.hbm_to_vmem [thread:$0]  %s2, 512, %s27, [#allocation3], 128, 128, 8
    $region13: #{tpu_custom_call.1} parent=1 // pred_fallthru
      _
    // Predicated region
    $region14: #{tpu_custom_call.1} parent=1 // pred_check
      _
    $region15: #{tpu_custom_call.1} parent=1 // pred_check_branch
      %34 = sbr.rel (0) target = $region17
    $region16: #{tpu_custom_call.1} parent=1 // pred_region
      _
    $region17: #{tpu_custom_call.1} parent=1 // pred_fallthru
      _
    // Predicated region
    $region18: #{tpu_custom_call.1} parent=1 // pred_check
      _
    $region19: #{tpu_custom_call.1} parent=1 // pred_check_branch
      %36 = sbr.rel (0) target = $region21
    $region20: #{tpu_custom_call.1} parent=1 // pred_region
      _
    $region21: #{tpu_custom_call.1} parent=1 // pred_fallthru
      _
    // Predicated region
    $region22: #{tpu_custom_call.1} parent=1 // pred_check
      _
    $region23: #{tpu_custom_call.1} parent=1 // pred_check_branch
      %38 = sbr.rel (0) target = $region25
    $region24: #{tpu_custom_call.1} parent=1 // pred_region
      _
    $region25: #{tpu_custom_call.1} parent=1 // pred_fallthru
      _
    // Predicated region
    $region26: #{tpu_custom_call.1} parent=1 // pred_check
      _
    $region27: #{tpu_custom_call.1} parent=1 // pred_check_branch
      %40 = sbr.rel (0) target = $region29
    $region28: #{tpu_custom_call.1} parent=1 // pred_region
      _
    $region29: #{tpu_custom_call.1} parent=1 // pred_fallthru
      _
    // Predicated region
    $region30: #{tpu_custom_call.1} parent=1 // pred_check
      _
    $region31: #{tpu_custom_call.1} parent=1 // pred_check_branch
      %42 = sbr.rel (0) target = $region33
    $region32: #{tpu_custom_call.1} parent=1 // pred_region
      %s44 = ssub.s32 512, 512
      %45 = vsyncadd [#allocation6], %s44
      %s46 = sshll.u32 [#allocation5], 4
      %s47 = int_to_ptr.vmem [resolvable:$true] %s46
      %52 = dma.hbm_to_vmem [thread:$0]  %s7, 512, %s47, [#allocation6], 128, 128, 8
    $region33: #{tpu_custom_call.1} parent=1 // pred_fallthru
      _
    // Predicated region
    $region34: #{tpu_custom_call.1} parent=1 // pred_check
      _
    $region35: #{tpu_custom_call.1} parent=1 // pred_check_branch
      %54 = sbr.rel (0) target = $region37
    $region36: #{tpu_custom_call.1} parent=1 // pred_region
      _
    $region37: #{tpu_custom_call.1} parent=1 // pred_fallthru
      _
    // Predicated region
    $region38: #{tpu_custom_call.1} parent=1 // pred_check
      _
    $region39: #{tpu_custom_call.1} parent=1 // pred_check_branch
      %56 = sbr.rel (0) target = $region41
    $region40: #{tpu_custom_call.1} parent=1 // pred_region
      %57 = dma.done [#allocation3], 512
    $region41: #{tpu_custom_call.1} parent=1 // pred_fallthru
      _
    // Predicated region
    $region42: #{tpu_custom_call.1} parent=1 // pred_check
      _
    $region43: #{tpu_custom_call.1} parent=1 // pred_check_branch
      %59 = sbr.rel (0) target = $region45
    $region44: #{tpu_custom_call.1} parent=1 // pred_region
      %60 = dma.done [#allocation6], 512
    $region45: #{tpu_custom_call.1} parent=1 // pred_fallthru
      _
    %v61 = vld [vmem:[%s3] sm:$0xff]
    %v62 = vld [vmem:[%s3 + $0x8] sm:$0x3]
    %v63 = vld [vmem:[%s4] sm:$0xff]
    %v64 = vld [vmem:[%s4 + $0x8] sm:$0xff]
    %v65 = vld [vmem:[%s4 + $0x10] sm:$0xff]
    %v66 = vld [vmem:[%s4 + $0x18] sm:$0xff]
    %v67 = vld [vmem:[%s5] sm:$0xff]
    %v68 = vld [vmem:[%s5 + $0x8] sm:$0xff]
    %v69 = vld [vmem:[%s5 + $0x10] sm:$0xff]
    %v70 = vld [vmem:[%s5 + $0x18] sm:$0xff]
    %s71 = scalar_lea.vmem %s5, 32
    %v72 = vld [vmem:[%s71] sm:$0xff]
    %v73 = vld [vmem:[%s71 + $0x8] sm:$0xff]
    %v74 = vld [vmem:[%s71 + $0x10] sm:$0xff]
    %v75 = vld [vmem:[%s71 + $0x18] sm:$0xff]
    %s76 = scalar_lea.vmem %s5, 64
    %v77 = vld [vmem:[%s76] sm:$0xff]
    %v78 = vld [vmem:[%s76 + $0x8] sm:$0xff]
    %v79 = vld [vmem:[%s76 + $0x10] sm:$0xff]
    %v80 = vld [vmem:[%s76 + $0x18] sm:$0xff]
    %s81 = scalar_lea.vmem %s5, 96
    %v82 = vld [vmem:[%s81] sm:$0xff]
    %v83 = vld [vmem:[%s81 + $0x8] sm:$0xff]
    %v84 = vld [vmem:[%s81 + $0x10] sm:$0xff]
    %v85 = vld [vmem:[%s81 + $0x18] sm:$0xff]
    %v86 = vld [vmem:[#allocation5] sm:$0xff]
    %v87 = vld [vmem:[#allocation5 + $0x8] sm:$0xff]
    %v88 = vld [vmem:[#allocation5 + $0x10] sm:$0xff]
    %v89 = vld [vmem:[#allocation5 + $0x18] sm:$0xff]
    %v90 = vld [vmem:[%s8] sm:$0xff]
    %v91 = vld [vmem:[%s8 + $0x8] sm:$0xff]
    %v92 = vld [vmem:[%s8 + $0x10] sm:$0xff]
    %v93 = vld [vmem:[%s8 + $0x18] sm:$0xff]
    %v94 = vld [vmem:[%s8 + $0x20] sm:$0xff]
    %v95 = vld [vmem:[%s8 + $0x28] sm:$0xff]
    %v96 = vld [vmem:[%s8 + $0x30] sm:$0xff]
    %v97 = vld [vmem:[%s8 + $0x38] sm:$0xff]
    %v98 = vld [vmem:[%s8 + $0x40] sm:$0xff]
    %v99 = vld [vmem:[%s8 + $0x48] sm:$0xff]
    %v100 = vld [vmem:[%s8 + $0x50] sm:$0xff]
    %v101 = vld [vmem:[%s8 + $0x58] sm:$0xff]
    %v102 = vld [vmem:[%s8 + $0x60] sm:$0xff]
    %v103 = vld [vmem:[%s8 + $0x68] sm:$0xff]
    %v104 = vld [vmem:[%s8 + $0x70] sm:$0xff]
    %v105 = vld [vmem:[%s8 + $0x78] sm:$0xff]
    %v106 = vld [vmem:[%s8 + $0x80] sm:$0xff]
    %v107 = vld [vmem:[%s8 + $0x88] sm:$0xff]
    %v108 = vld [vmem:[%s8 + $0x90] sm:$0xff]
    %v109 = vld [vmem:[%s8 + $0x98] sm:$0xff]
    %v110 = vld [vmem:[%s8 + $0xa0] sm:$0xff]
    %v111 = vld [vmem:[%s8 + $0xa8] sm:$0xff]
    %v112 = vld [vmem:[%s8 + $0xb0] sm:$0xff]
    %v113 = vld [vmem:[%s8 + $0xb8] sm:$0xff]
    %v114 = vld [vmem:[%s8 + $0xc0] sm:$0xff]
    %v115 = vld [vmem:[%s8 + $0xc8] sm:$0xff]
    %v116 = vld [vmem:[%s8 + $0xd0] sm:$0xff]
    %v117 = vld [vmem:[%s8 + $0xd8] sm:$0xff]
    %v118 = vld [vmem:[%s8 + $0xe0] sm:$0xff]
    %v119 = vld [vmem:[%s8 + $0xe8] sm:$0xff]
    %v120 = vld [vmem:[%s8 + $0xf0] sm:$0xff]
    %v121 = vld [vmem:[%s8 + $0xf8] sm:$0xff]
    %v122 = vld [vmem:[%s0] sm:$0xff]
    %v123 = vld [vmem:[%s0 + $0x8] sm:$0xff]
    %v124 = vld [vmem:[%s1] sm:$0x1]
    %v125 = vld [vmem:[%s1 + $0x1] sm:$0x1]
    %v126 = vld [vmem:[#allocation2] sm:$0xff]
    %v127 = vld [vmem:[#allocation2 + $0x8] sm:$0xff]
    %v128 = vld [vmem:[#allocation2 + $0x10] sm:$0xff]
    %v129 = vld [vmem:[#allocation2 + $0x18] sm:$0xff]
    %v130 = vlaneseq
    %v131 = vshrl.u32 %v130, 7
    %v132 = vsub.s32 4, %v131
    %v133 = vrot.slane %v61, %v132
    %vm134 = vcmask 261120
    %v136 = vsel %vm134, %v126, 0
    %v139 = vsel %vm134, %v127, 0
    %v142 = vsel %vm134, %v128, 0
    %v145 = vsel %vm134, %v129, 0
    %147 = vmatprep.subr.mxu0 0.0
    %148 = vmatpush1.msra.mxu0 %v77
    %149 = vmatprep.subr.mxu0 0.0
    %150 = vmatpush1.msra.mxu0 %v78
    %151 = vmatprep.subr.mxu0 0.0
    %152 = vmatpush1.msra.mxu0 %v79
    %153 = vmatprep.subr.mxu0 0.0
    %154 = vmatpush1.msra.mxu0 %v80
    %155 = vmatprep.subr.mxu0 0.0
    %156 = vmatpush1.msra.mxu0 0.0
    %157 = vmatprep.subr.mxu0 0.0
    %158 = vmatpush1.msra.mxu0 0.0
    %159 = vmatprep.subr.mxu0 0.0
    %160 = vmatpush1.msra.mxu0 0.0
    %161 = vmatprep.subr.mxu0 0.0
    %162 = vmatpush1.msra.mxu0 0.0
    %163 = vmatprep.subr.mxu0 0.0
    %164 = vmatpush1.msra.mxu0 0.0
    %165 = vmatprep.subr.mxu0 0.0
    %166 = vmatpush1.msra.mxu0 0.0
    %167 = vmatprep.subr.mxu0 0.0
    %168 = vmatpush1.msra.mxu0 0.0
    %169 = vmatprep.subr.mxu0 0.0
    %170 = vmatpush1.msra.mxu0 0.0
    %171 = vmatprep.subr.mxu0 0.0
    %172 = vmatpush1.msra.mxu0 0.0
    %173 = vmatprep.subr.mxu0 0.0
    %174 = vmatpush1.msra.mxu0 0.0
    %175 = vmatprep.subr.mxu0 0.0
    %176 = vmatpush1.msra.mxu0 0.0
    %177 = vmatprep.subr.mxu0 0.0
    %178 = vmatpush1.msra.mxu0 0.0
    %179 = vmatprep.subr.mxu0 0.0
    %180 = vmatpush1.msra.mxu0 0.0
    %181 = vmatprep.subr.mxu0 0.0
    %182 = vmatpush1.msra.mxu0 0.0
    %183 = vmatprep.subr.mxu0 0.0
    %184 = vmatpush1.msra.mxu0 0.0
    %185 = vmatprep.subr.mxu0 0.0
    %186 = vmatpush1.msra.mxu0 0.0
    %187 = vmatprep.subr.mxu0 0.0
    %188 = vmatpush1.msra.mxu0 0.0
    %189 = vmatprep.subr.mxu0 0.0
    %190 = vmatpush1.msra.mxu0 0.0
    %191 = vmatprep.subr.mxu0 0.0
    %192 = vmatpush1.msra.mxu0 0.0
    %193 = vmatprep.subr.mxu0 0.0
    %194 = vmatpush1.msra.mxu0 0.0
    %195 = vmatprep.subr.mxu0 0.0
    %196 = vmatpush1.msra.mxu0 0.0
    %197 = vmatprep.subr.mxu0 0.0
    %198 = vmatpush1.msra.mxu0 0.0
    %199 = vmatprep.subr.mxu0 0.0
    %200 = vmatpush1.msra.mxu0 0.0
    %201 = vmatprep.subr.mxu0 0.0
    %202 = vmatpush1.msra.mxu0 0.0
    %203 = vmatprep.subr.mxu0 0.0
    %204 = vmatpush1.msra.mxu0 0.0
    %205 = vmatprep.subr.mxu0 0.0
    %206 = vmatpush1.msra.mxu0 0.0
    %207 = vmatprep.subr.mxu0 0.0
    %208 = vmatpush1.msra.mxu0 0.0
    %209 = vmatprep.subr.mxu0 0.0
    %210 = vmatpush1.msra.mxu0 0.0
    %211 = vmatprep.mubr.f32.mxu0 0.0
    %212 = vmatmul.mubr.f32.gmra.mrb[0].mxu0 %v136
    %v213 = vpop.f32.mrb[0].mxu0
    %v214 = vadd.f32 %v133, %v213
    %v215 = vpop.f32.mrb[0].mxu0
    %216 = vmatprep.mubr.f32.mxu0 0.0
    %217 = vmatmul.mubr.f32.gmra.mrb[0].mxu0 %v139
    %v218 = vpop.f32.mrb[0].mxu0
    %v219 = vadd.f32 %v133, %v218
    %v220 = vpop.f32.mrb[0].mxu0
    %221 = vmatprep.mubr.f32.mxu0 0.0
    %222 = vmatmul.mubr.f32.gmra.mrb[0].mxu0 %v142
    %v223 = vpop.f32.mrb[0].mxu0
    %v224 = vadd.f32 %v133, %v223
    %v225 = vpop.f32.mrb[0].mxu0
    %226 = vmatprep.mubr.f32.mxu0 0.0
    %227 = vmatmul.mubr.f32.gmra.mrb[0].mxu0 %v145
    %v228 = vpop.f32.mrb[0].mxu0
    %v229 = vadd.f32 %v133, %v228
    %v230 = vpop.f32.mrb[0].mxu0
    %231 = vdwg.mxu0
    %v232 = vsel %vm134, %v214, 0.0
    %233 = vadd.xlane.f32.xlu0 %v232
    %v234 = vpop.xlane.xlu0 %233
    %v235 = vsel %vm134, %v219, 0.0
    %236 = vadd.xlane.f32.xlu0 %v235
    %v237 = vpop.xlane.xlu0 %236
    %v238 = vsel %vm134, %v224, 0.0
    %239 = vadd.xlane.f32.xlu0 %v238
    %v240 = vpop.xlane.xlu0 %239
    %v241 = vsel %vm134, %v229, 0.0
    %242 = vadd.xlane.f32.xlu0 %v241
    %v243 = vpop.xlane.xlu0 %242
    %v244 = vrcp.pop 32.0
    %v245 = vmul.f32 %v234, %v244
    %v246 = vmul.f32 %v237, %v244
    %v247 = vmul.f32 %v240, %v244
    %v248 = vmul.f32 %v243, %v244
    %v249 = vsub.f32 %v214, %v245
    %v250 = vsub.f32 %v219, %v246
    %v251 = vsub.f32 %v224, %v247
    %v252 = vsub.f32 %v229, %v248
    %v253 = vmul.f32 %v249, %v249
    %v254 = vmul.f32 %v250, %v250
    %v255 = vmul.f32 %v251, %v251
    %v256 = vmul.f32 %v252, %v252
    %v257 = vsel %vm134, %v253, 0.0
    %258 = vadd.xlane.f32.xlu0 %v257
    %v259 = vpop.xlane.xlu0 %258
    %v260 = vsel %vm134, %v254, 0.0
    %261 = vadd.xlane.f32.xlu0 %v260
    %v262 = vpop.xlane.xlu0 %261
    %v263 = vsel %vm134, %v255, 0.0
    %264 = vadd.xlane.f32.xlu0 %v263
    %v265 = vpop.xlane.xlu0 %264
    %v266 = vsel %vm134, %v256, 0.0
    %267 = vadd.xlane.f32.xlu0 %v266
    %v268 = vpop.xlane.xlu0 %267
    %v269 = vmul.f32 %v259, %v244
    %v270 = vmul.f32 %v262, %v244
    %v271 = vmul.f32 %v265, %v244
    %v272 = vmul.f32 %v268, %v244
    %v273 = vadd.f32 %v269, 1e-05
    %v274 = vadd.f32 %v270, 1e-05
    %v275 = vadd.f32 %v271, 1e-05
    %v276 = vadd.f32 %v272, 1e-05
    %v277 = vrsqrt.pop %v273
    %v278 = vrsqrt.pop %v274
    %v279 = vrsqrt.pop %v275
    %v280 = vrsqrt.pop %v276
    %v281 = vmul.f32 %v249, %v277
    %v282 = vmul.f32 %v250, %v278
    %v283 = vmul.f32 %v251, %v279
    %v284 = vmul.f32 %v252, %v280
    %v285 = vlaneseq
    %v286 = vshrl.u32 %v285, 7
    %v287 = vsub.s32 5, %v286
    %v288 = vrot.slane %v61, %v287
    %v289 = vmul.f32 %v281, %v288
    %v290 = vmul.f32 %v282, %v288
    %v291 = vmul.f32 %v283, %v288
    %v292 = vmul.f32 %v284, %v288
    %v293 = vlaneseq
    %v294 = vshrl.u32 %v293, 7
    %v295 = vsub.s32 6, %v294
    %v296 = vrot.slane %v61, %v295
    %v297 = vadd.f32 %v289, %v296
    %v298 = vadd.f32 %v290, %v296
    %v299 = vadd.f32 %v291, %v296
    %v300 = vadd.f32 %v292, %v296
    %v301 = vmax.f32 %v297, 0.0
    %v302 = vmax.f32 %v298, 0.0
    %v303 = vmax.f32 %v299, 0.0
    %v304 = vmax.f32 %v300, 0.0
    %v305 = vlaneseq
    %v306 = vshrl.u32 %v305, 7
    %v307 = vsub.s32 7, %v306
    %v308 = vrot.slane %v61, %v307
    %v310 = vsel %vm134, %v301, 0
    %v313 = vsel %vm134, %v302, 0
    %v316 = vsel %vm134, %v303, 0
    %v319 = vsel %vm134, %v304, 0
    %321 = vmatprep.subr.mxu0 0.0
    %322 = vmatpush1.msra.mxu0 %v82
    %323 = vmatprep.subr.mxu0 0.0
    %324 = vmatpush1.msra.mxu0 %v83
    %325 = vmatprep.subr.mxu0 0.0
    %326 = vmatpush1.msra.mxu0 %v84
    %327 = vmatprep.subr.mxu0 0.0
    %328 = vmatpush1.msra.mxu0 %v85
    %329 = vmatprep.subr.mxu0 0.0
    %330 = vmatpush1.msra.mxu0 0.0
    %331 = vmatprep.subr.mxu0 0.0
    %332 = vmatpush1.msra.mxu0 0.0
    %333 = vmatprep.subr.mxu0 0.0
    %334 = vmatpush1.msra.mxu0 0.0
    %335 = vmatprep.subr.mxu0 0.0
    %336 = vmatpush1.msra.mxu0 0.0
    %337 = vmatprep.subr.mxu0 0.0
    %338 = vmatpush1.msra.mxu0 0.0
    %339 = vmatprep.subr.mxu0 0.0
    %340 = vmatpush1.msra.mxu0 0.0
    %341 = vmatprep.subr.mxu0 0.0
    %342 = vmatpush1.msra.mxu0 0.0
    %343 = vmatprep.subr.mxu0 0.0
    %344 = vmatpush1.msra.mxu0 0.0
    %345 = vmatprep.subr.mxu0 0.0
    %346 = vmatpush1.msra.mxu0 0.0
    %347 = vmatprep.subr.mxu0 0.0
    %348 = vmatpush1.msra.mxu0 0.0
    %349 = vmatprep.subr.mxu0 0.0
    %350 = vmatpush1.msra.mxu0 0.0
    %351 = vmatprep.subr.mxu0 0.0
    %352 = vmatpush1.msra.mxu0 0.0
    %353 = vmatprep.subr.mxu0 0.0
    %354 = vmatpush1.msra.mxu0 0.0
    %355 = vmatprep.subr.mxu0 0.0
    %356 = vmatpush1.msra.mxu0 0.0
    %357 = vmatprep.subr.mxu0 0.0
    %358 = vmatpush1.msra.mxu0 0.0
    %359 = vmatprep.subr.mxu0 0.0
    %360 = vmatpush1.msra.mxu0 0.0
    %361 = vmatprep.subr.mxu0 0.0
    %362 = vmatpush1.msra.mxu0 0.0
    %363 = vmatprep.subr.mxu0 0.0
    %364 = vmatpush1.msra.mxu0 0.0
    %365 = vmatprep.subr.mxu0 0.0
    %366 = vmatpush1.msra.mxu0 0.0
    %367 = vmatprep.subr.mxu0 0.0
    %368 = vmatpush1.msra.mxu0 0.0
    %369 = vmatprep.subr.mxu0 0.0
    %370 = vmatpush1.msra.mxu0 0.0
    %371 = vmatprep.subr.mxu0 0.0
    %372 = vmatpush1.msra.mxu0 0.0
    %373 = vmatprep.subr.mxu0 0.0
    %374 = vmatpush1.msra.mxu0 0.0
    %375 = vmatprep.subr.mxu0 0.0
    %376 = vmatpush1.msra.mxu0 0.0
    %377 = vmatprep.subr.mxu0 0.0
    %378 = vmatpush1.msra.mxu0 0.0
    %379 = vmatprep.subr.mxu0 0.0
    %380 = vmatpush1.msra.mxu0 0.0
    %381 = vmatprep.subr.mxu0 0.0
    %382 = vmatpush1.msra.mxu0 0.0
    %383 = vmatprep.subr.mxu0 0.0
    %384 = vmatpush1.msra.mxu0 0.0
    %385 = vmatprep.mubr.f32.mxu0 0.0
    %386 = vmatmul.mubr.f32.gmra.mrb[0].mxu0 %v310
    %v387 = vpop.f32.mrb[0].mxu0
    %v388 = vadd.f32 %v308, %v387
    %v389 = vpop.f32.mrb[0].mxu0
    %390 = vmatprep.mubr.f32.mxu0 0.0
    %391 = vmatmul.mubr.f32.gmra.mrb[0].mxu0 %v313
    %v392 = vpop.f32.mrb[0].mxu0
    %v393 = vadd.f32 %v308, %v392
    %v394 = vpop.f32.mrb[0].mxu0
    %395 = vmatprep.mubr.f32.mxu0 0.0
    %396 = vmatmul.mubr.f32.gmra.mrb[0].mxu0 %v316
    %v397 = vpop.f32.mrb[0].mxu0
    %v398 = vadd.f32 %v308, %v397
    %v399 = vpop.f32.mrb[0].mxu0
    %400 = vmatprep.mubr.f32.mxu0 0.0
    %401 = vmatmul.mubr.f32.gmra.mrb[0].mxu0 %v319
    %v402 = vpop.f32.mrb[0].mxu0
    %v403 = vadd.f32 %v308, %v402
    %v404 = vpop.f32.mrb[0].mxu0
    %405 = vdwg.mxu0
    %407 = vset.pattern.permute.xlu0 0
    %408 = vperm.xlu0 %407, %v122
    %v409 = vpop.permute.xlu0 %408
    %412 = vset.pattern.permute.xlu0 0
    %413 = vperm.xlu0 %412, %v123
    %v414 = vpop.permute.xlu0 %413
    %v416 = vlaneseq
    %v417 = vshrl.u32 %v416, 7
    %v418 = vsub.s32 0, %v417
    %v419 = vrot.slane %v61, %v418
    %v420 = vmul.f32 %v409, %v419
    %v421 = vmul.f32 %v414, %v419
    %v422 = vlaneseq
    %v423 = vshrl.u32 %v422, 7
    %v424 = vsub.s32 1, %v423
    %v425 = vrot.slane %v61, %v424
    %v426 = vadd.f32 %v420, %v425
    %v427 = vadd.f32 %v421, %v425
    %v428 = vand.u32 2147483647, %v426
    %vm429 = vcmp.le.f32.partialorder %v428, 0.7853982
    %vm430 = vcmp.lt.s32.totalorder %v426, 0
    %v431 = vand.u32 %v426, 2139095040
    %v432 = vshrl.u32 %v431, 23
    %v433 = vsub.s32 %v432, 127
    %v434 = vand.u32 2147483647, %v426
    %v435 = vand.u32 %v434, 8388607
    %v436 = vor.u32 %v435, 8388608
    %v437 = vsub.s32 0, %v436
    %v438 = vadd.s32 %v433, 1
    %vm439 = vcmp.gt.s32.totalorder %v438, 0
    %v440 = vsel %vm439, %v438, 0
    %v441 = vshrl.u32 %v440, 5
    %v442 = vand.u32 %v440, 31
    %v443 = vsub.s32 32, %v442
    %v444 = vshrl.u32 683565275, %v443
    %v445 = vshll.u32 683565275, %v442
    %v446 = vshrl.u32 2475754826, %v443
    %v447 = vor.u32 %v445, %v446
    %v448 = vshll.u32 2475754826, %v442
    %v449 = vshrl.u32 2131351028, %v443
    %v450 = vor.u32 %v448, %v449
    %v451 = vshll.u32 2131351028, %v442
    %v452 = vshrl.u32 2102212464, %v443
    %v453 = vor.u32 %v451, %v452
    %v454 = vshll.u32 2102212464, %v442
    %v455 = vshrl.u32 920167782, %v443
    %v456 = vor.u32 %v454, %v455
    %v457 = vshll.u32 920167782, %v442
    %v458 = vshrl.u32 1326507024, %v443
    %v459 = vor.u32 %v457, %v458
    %vm460 = vcmp.lt.s32.totalorder %v441, 1
    %vm461 = vcmp.lt.s32.totalorder %v441, 2
    %vm462 = vcmp.lt.s32.totalorder %v441, 3
    %vm463 = vcmp.lt.s32.totalorder %v441, 4
    %v464 = vsel %vm460, %v444, %v447
    %v465 = vsel %vm463, %v453, 2102212464
    %v466 = vsel %vm462, %v450, %v465
    %v467 = vsel %vm461, %v464, %v466
    %v468 = vsel %vm460, %v447, %v450
    %v469 = vsel %vm463, %v456, 920167782
    %v470 = vsel %vm462, %v453, %v469
    %v471 = vsel %vm461, %v468, %v470
    %v472 = vsel %vm460, %v450, %v453
    %v473 = vsel %vm463, %v459, 1326507024
    %v474 = vsel %vm462, %v456, %v473
    %v475 = vsel %vm461, %v472, %v474
    %v476 = vshll.u32 %v436, 8
    %v477 = vmul.u32.u64.compose %v476, %v475
    %v478 = vextract.low.u32 %v477
    %v479 = vextract.high.u32 %v477
    %v480 = vmul.u32.u64.compose %v476, %v471
    %v481 = vextract.low.u32 %v480
    %v482 = vextract.high.u32 %v480
    %v483 = vmul.u32 %v476, %v467
    %v484 = vadd.s32 %v479, %v481
    %vm485 = vc.u32 %v479, %v481
    %v486 = vadd.s32 %v482, 1
    %v487 = vsel %vm485, %v486, %v482
    %v488 = vadd.s32 %v483, %v487
    %v489 = vadd.s32 %v488, 536870912
    %v490 = vshrl.u32 %v489, 30
    %v491 = vshll.u32 %v490, 30
    %v492 = vsub.s32 %v488, %v491
    %vm493 = vcmp.lt.s32.totalorder %v492, 0
    %v494 = vsub.s32 0, %v492
    %v495 = vsel %vm493, %v494, %v492
    %v496 = vclz %v495
    %v497 = vsub.s32 %v496, 2
    %vm498 = vcmp.gt.s32.totalorder 0, %v497
    %v499 = vsel %vm498, 0, %v497
    %v500 = vsub.s32 32, %v499
    %v501 = vshll.u32 %v492, %v499
    %v502 = vshrl.u32 %v484, %v500
    %v503 = vor.u32 %v501, %v502
    %v504 = vsub.s32 4294967266, %v499
    %v505 = vadd.s32 %v504, 127
    %v506 = vshll.u32 %v505, 23
    %v507 = vor.u32 4788187, %v506
    %v508 = vand.u32 2147483647, %v507
    %v510 = vcvt.s32.f32 %v503
    %v511 = vmul.f32 %v510, %v508
    %v512 = vxor.u32 %v511, 2147483648
    %v513 = vsel %vm430, %v512, %v511
    %v514 = vsub.s32 4, %v490
    %v515 = vsel %vm430, %v514, %v490
    %v516 = vsel %vm429, %v426, %v513
    %v517 = vsel %vm429, 0, %v515
    %v518 = vcosq.f32.pop %v516
    %v519 = vsinq.f32.pop %v516
    %vm520 = vweird.f32 %v426
    %v521 = vadd.s32 %v517, 3
    %v522 = vand.u32 %v521, 3
    %vm523 = vcmp.lt.s32.totalorder %v522, 2
    %vm524 = vcmp.eq.s32.totalorder %v522, 0
    %v525 = vxor.u32 %v519, 2147483648
    %v526 = vsel %vm524, %v518, %v525
    %vm527 = vcmp.eq.s32.totalorder %v522, 2
    %v528 = vxor.u32 %v518, 2147483648
    %v529 = vsel %vm527, %v528, %v519
    %v530 = vsel %vm523, %v526, %v529
    %v531 = vsel %vm520, nan, %v530
    %v532 = vand.u32 2147483647, %v427
    %vm533 = vcmp.le.f32.partialorder %v532, 0.7853982
    %vm534 = vcmp.lt.s32.totalorder %v427, 0
    %v535 = vand.u32 %v427, 2139095040
    %v536 = vshrl.u32 %v535, 23
    %v537 = vsub.s32 %v536, 127
    %v538 = vand.u32 2147483647, %v427
    %v539 = vand.u32 %v538, 8388607
    %v540 = vor.u32 %v539, 8388608
    %v541 = vsub.s32 0, %v540
    %v542 = vadd.s32 %v537, 1
    %vm543 = vcmp.gt.s32.totalorder %v542, 0
    %v544 = vsel %vm543, %v542, 0
    %v545 = vshrl.u32 %v544, 5
    %v546 = vand.u32 %v544, 31
    %v547 = vsub.s32 32, %v546
    %v548 = vshrl.u32 683565275, %v547
    %v549 = vshll.u32 683565275, %v546
    %v550 = vshrl.u32 2475754826, %v547
    %v551 = vor.u32 %v549, %v550
    %v552 = vshll.u32 2475754826, %v546
    %v553 = vshrl.u32 2131351028, %v547
    %v554 = vor.u32 %v552, %v553
    %v555 = vshll.u32 2131351028, %v546
    %v556 = vshrl.u32 2102212464, %v547
    %v557 = vor.u32 %v555, %v556
    %v558 = vshll.u32 2102212464, %v546
    %v559 = vshrl.u32 920167782, %v547
    %v560 = vor.u32 %v558, %v559
    %v561 = vshll.u32 920167782, %v546
    %v562 = vshrl.u32 1326507024, %v547
    %v563 = vor.u32 %v561, %v562
    %vm564 = vcmp.lt.s32.totalorder %v545, 1
    %vm565 = vcmp.lt.s32.totalorder %v545, 2
    %vm566 = vcmp.lt.s32.totalorder %v545, 3
    %vm567 = vcmp.lt.s32.totalorder %v545, 4
    %v568 = vsel %vm564, %v548, %v551
    %v569 = vsel %vm567, %v557, 2102212464
    %v570 = vsel %vm566, %v554, %v569
    %v571 = vsel %vm565, %v568, %v570
    %v572 = vsel %vm564, %v551, %v554
    %v573 = vsel %vm567, %v560, 920167782
    %v574 = vsel %vm566, %v557, %v573
    %v575 = vsel %vm565, %v572, %v574
    %v576 = vsel %vm564, %v554, %v557
    %v577 = vsel %vm567, %v563, 1326507024
    %v578 = vsel %vm566, %v560, %v577
    %v579 = vsel %vm565, %v576, %v578
    %v580 = vshll.u32 %v540, 8
    %v581 = vmul.u32.u64.compose %v580, %v579
    %v582 = vextract.low.u32 %v581
    %v583 = vextract.high.u32 %v581
    %v584 = vmul.u32.u64.compose %v580, %v575
    %v585 = vextract.low.u32 %v584
    %v586 = vextract.high.u32 %v584
    %v587 = vmul.u32 %v580, %v571
    %v588 = vadd.s32 %v583, %v585
    %vm589 = vc.u32 %v583, %v585
    %v590 = vadd.s32 %v586, 1
    %v591 = vsel %vm589, %v590, %v586
    %v592 = vadd.s32 %v587, %v591
    %v593 = vadd.s32 %v592, 536870912
    %v594 = vshrl.u32 %v593, 30
    %v595 = vshll.u32 %v594, 30
    %v596 = vsub.s32 %v592, %v595
    %vm597 = vcmp.lt.s32.totalorder %v596, 0
    %v598 = vsub.s32 0, %v596
    %v599 = vsel %vm597, %v598, %v596
    %v600 = vclz %v599
    %v601 = vsub.s32 %v600, 2
    %vm602 = vcmp.gt.s32.totalorder 0, %v601
    %v603 = vsel %vm602, 0, %v601
    %v604 = vsub.s32 32, %v603
    %v605 = vshll.u32 %v596, %v603
    %v606 = vshrl.u32 %v588, %v604
    %v607 = vor.u32 %v605, %v606
    %v608 = vsub.s32 4294967266, %v603
    %v609 = vadd.s32 %v608, 127
    %v610 = vshll.u32 %v609, 23
    %v611 = vor.u32 4788187, %v610
    %v612 = vand.u32 2147483647, %v611
    %v614 = vcvt.s32.f32 %v607
    %v615 = vmul.f32 %v614, %v612
    %v616 = vxor.u32 %v615, 2147483648
    %v617 = vsel %vm534, %v616, %v615
    %v618 = vsub.s32 4, %v594
    %v619 = vsel %vm534, %v618, %v594
    %v620 = vsel %vm533, %v427, %v617
    %v621 = vsel %vm533, 0, %v619
    %v622 = vcosq.f32.pop %v620
    %v623 = vsinq.f32.pop %v620
    %vm624 = vweird.f32 %v427
    %v625 = vadd.s32 %v621, 3
    %v626 = vand.u32 %v625, 3
    %vm627 = vcmp.lt.s32.totalorder %v626, 2
    %vm628 = vcmp.eq.s32.totalorder %v626, 0
    %v629 = vxor.u32 %v623, 2147483648
    %v630 = vsel %vm628, %v622, %v629
    %vm631 = vcmp.eq.s32.totalorder %v626, 2
    %v632 = vxor.u32 %v622, 2147483648
    %v633 = vsel %vm631, %v632, %v623
    %v634 = vsel %vm627, %v630, %v633
    %v635 = vsel %vm624, nan, %v634
    %v636 = vlaneseq
    %v637 = vshrl.u32 %v636, 7
    %v638 = vsub.s32 2, %v637
    %v639 = vrot.slane %v61, %v638
    %v640 = vmul.f32 %v639, %v531
    %v641 = vmul.f32 %v639, %v635
    %v642 = vsub.f32 1.0, %v61
    %v643 = vlaneseq
    %v644 = vshrl.u32 %v643, 7
    %v645 = vsub.s32 2, %v644
    %v646 = vrot.slane %v642, %v645
    %v647 = vmul.f32 %v646, %v426
    %v648 = vmul.f32 %v646, %v427
    %v649 = vadd.f32 %v640, %v647
    %v650 = vadd.f32 %v641, %v648
    %v651 = vlaneseq
    %v652 = vshrl.u32 %v651, 7
    %v653 = vsub.s32 3, %v652
    %v654 = vrot.slane %v61, %v653
    %v656 = vsel %vm134, %v649, 0
    %v659 = vsel %vm134, %v650, 0
    %661 = vmatprep.subr.mxu0 0.0
    %662 = vmatpush1.msra.mxu0 %v67
    %663 = vmatprep.subr.mxu0 0.0
    %664 = vmatpush1.msra.mxu0 %v68
    %665 = vmatprep.subr.mxu0 0.0
    %666 = vmatpush1.msra.mxu0 %v69
    %667 = vmatprep.subr.mxu0 0.0
    %668 = vmatpush1.msra.mxu0 %v70
    %669 = vmatprep.subr.mxu0 0.0
    %670 = vmatpush1.msra.mxu0 0.0
    %671 = vmatprep.subr.mxu0 0.0
    %672 = vmatpush1.msra.mxu0 0.0
    %673 = vmatprep.subr.mxu0 0.0
    %674 = vmatpush1.msra.mxu0 0.0
    %675 = vmatprep.subr.mxu0 0.0
    %676 = vmatpush1.msra.mxu0 0.0
    %677 = vmatprep.subr.mxu0 0.0
    %678 = vmatpush1.msra.mxu0 0.0
    %679 = vmatprep.subr.mxu0 0.0
    %680 = vmatpush1.msra.mxu0 0.0
    %681 = vmatprep.subr.mxu0 0.0
    %682 = vmatpush1.msra.mxu0 0.0
    %683 = vmatprep.subr.mxu0 0.0
    %684 = vmatpush1.msra.mxu0 0.0
    %685 = vmatprep.subr.mxu0 0.0
    %686 = vmatpush1.msra.mxu0 0.0
    %687 = vmatprep.subr.mxu0 0.0
    %688 = vmatpush1.msra.mxu0 0.0
    %689 = vmatprep.subr.mxu0 0.0
    %690 = vmatpush1.msra.mxu0 0.0
    %691 = vmatprep.subr.mxu0 0.0
    %692 = vmatpush1.msra.mxu0 0.0
    %693 = vmatprep.subr.mxu0 0.0
    %694 = vmatpush1.msra.mxu0 0.0
    %695 = vmatprep.subr.mxu0 0.0
    %696 = vmatpush1.msra.mxu0 0.0
    %697 = vmatprep.subr.mxu0 0.0
    %698 = vmatpush1.msra.mxu0 0.0
    %699 = vmatprep.subr.mxu0 0.0
    %700 = vmatpush1.msra.mxu0 0.0
    %701 = vmatprep.subr.mxu0 0.0
    %702 = vmatpush1.msra.mxu0 0.0
    %703 = vmatprep.subr.mxu0 0.0
    %704 = vmatpush1.msra.mxu0 0.0
    %705 = vmatprep.subr.mxu0 0.0
    %706 = vmatpush1.msra.mxu0 0.0
    %707 = vmatprep.subr.mxu0 0.0
    %708 = vmatpush1.msra.mxu0 0.0
    %709 = vmatprep.subr.mxu0 0.0
    %710 = vmatpush1.msra.mxu0 0.0
    %711 = vmatprep.subr.mxu0 0.0
    %712 = vmatpush1.msra.mxu0 0.0
    %713 = vmatprep.subr.mxu0 0.0
    %714 = vmatpush1.msra.mxu0 0.0
    %715 = vmatprep.subr.mxu0 0.0
    %716 = vmatpush1.msra.mxu0 0.0
    %717 = vmatprep.subr.mxu0 0.0
    %718 = vmatpush1.msra.mxu0 0.0
    %719 = vmatprep.subr.mxu0 0.0
    %720 = vmatpush1.msra.mxu0 0.0
    %721 = vmatprep.subr.mxu0 0.0
    %722 = vmatpush1.msra.mxu0 0.0
    %723 = vmatprep.subr.mxu0 0.0
    %724 = vmatpush1.msra.mxu0 0.0
    %725 = vmatprep.mubr.f32.mxu0 0.0
    %726 = vmatmul.mubr.f32.gmra.mrb[0].mxu0 %v656
    %v727 = vpop.f32.mrb[0].mxu0
    %v728 = vadd.f32 %v654, %v727
    %v729 = vpop.f32.mrb[0].mxu0
    %730 = vmatprep.mubr.f32.mxu0 0.0
    %731 = vmatmul.mubr.f32.gmra.mrb[0].mxu0 %v659
    %v732 = vpop.f32.mrb[0].mxu0
    %v733 = vadd.f32 %v654, %v732
    %v734 = vpop.f32.mrb[0].mxu0
    %735 = vdwg.mxu0
    %737 = vset.pattern.permute.xlu0 0
    %738 = vperm.xlu0 %737, %v63
    %v739 = vpop.permute.xlu0 %738
    %742 = vset.pattern.permute.xlu0 0
    %743 = vperm.xlu0 %742, %v64
    %v744 = vpop.permute.xlu0 %743
    %747 = vset.pattern.permute.xlu0 0
    %748 = vperm.xlu0 %747, %v65
    %v749 = vpop.permute.xlu0 %748
    %752 = vset.pattern.permute.xlu0 0
    %753 = vperm.xlu0 %752, %v66
    %v754 = vpop.permute.xlu0 %753
    %v758 = vlaneseq
    %v759 = vshrl.u32 %v758, 7
    %v760 = vsub.s32 0, %v759
    %v761 = vrot.slane %v124, %v760
    %v762 = vlaneseq
    %v763 = vshrl.u32 %v762, 7
    %v764 = vsub.s32 0, %v763
    %v765 = vrot.slane %v125, %v764
    %v768 = vmul.f32 %v739, %v761
    %v769 = vmul.f32 %v744, %v761
    %v770 = vmul.f32 %v749, %v761
    %v771 = vmul.f32 %v754, %v761
    %v772 = vmul.f32 %v739, %v765
    %v773 = vmul.f32 %v744, %v765
    %v774 = vmul.f32 %v749, %v765
    %v775 = vmul.f32 %v754, %v765
    %776 = vset.pattern.permute.xlu0 1
    %777 = vperm.xlu0 %776, %v63
    %v778 = vpop.permute.xlu0 %777
    %780 = vset.pattern.permute.xlu0 1
    %781 = vperm.xlu0 %780, %v64
    %v782 = vpop.permute.xlu0 %781
    %784 = vset.pattern.permute.xlu0 1
    %785 = vperm.xlu0 %784, %v65
    %v786 = vpop.permute.xlu0 %785
    %788 = vset.pattern.permute.xlu0 1
    %789 = vperm.xlu0 %788, %v66
    %v790 = vpop.permute.xlu0 %789
    %v792 = vadd.f32 %v768, %v778
    %v793 = vadd.f32 %v769, %v782
    %v794 = vadd.f32 %v770, %v786
    %v795 = vadd.f32 %v771, %v790
    %v796 = vadd.f32 %v772, %v778
    %v797 = vadd.f32 %v773, %v782
    %v798 = vadd.f32 %v774, %v786
    %v799 = vadd.f32 %v775, %v790
    %v800 = vand.u32 2147483647, %v792
    %vm801 = vcmp.le.f32.partialorder %v800, 0.7853982
    %vm802 = vcmp.lt.s32.totalorder %v792, 0
    %v803 = vand.u32 %v792, 2139095040
    %v804 = vshrl.u32 %v803, 23
    %v805 = vsub.s32 %v804, 127
    %v806 = vand.u32 2147483647, %v792
    %v807 = vand.u32 %v806, 8388607
    %v808 = vor.u32 %v807, 8388608
    %v809 = vsub.s32 0, %v808
    %v810 = vadd.s32 %v805, 1
    %vm811 = vcmp.gt.s32.totalorder %v810, 0
    %v812 = vsel %vm811, %v810, 0
    %v813 = vshrl.u32 %v812, 5
    %v814 = vand.u32 %v812, 31
    %v815 = vsub.s32 32, %v814
    %v816 = vshrl.u32 683565275, %v815
    %v817 = vshll.u32 683565275, %v814
    %v818 = vshrl.u32 2475754826, %v815
    %v819 = vor.u32 %v817, %v818
    %v820 = vshll.u32 2475754826, %v814
    %v821 = vshrl.u32 2131351028, %v815
    %v822 = vor.u32 %v820, %v821
    %v823 = vshll.u32 2131351028, %v814
    %v824 = vshrl.u32 2102212464, %v815
    %v825 = vor.u32 %v823, %v824
    %v826 = vshll.u32 2102212464, %v814
    %v827 = vshrl.u32 920167782, %v815
    %v828 = vor.u32 %v826, %v827
    %v829 = vshll.u32 920167782, %v814
    %v830 = vshrl.u32 1326507024, %v815
    %v831 = vor.u32 %v829, %v830
    %vm832 = vcmp.lt.s32.totalorder %v813, 1
    %vm833 = vcmp.lt.s32.totalorder %v813, 2
    %vm834 = vcmp.lt.s32.totalorder %v813, 3
    %vm835 = vcmp.lt.s32.totalorder %v813, 4
    %v836 = vsel %vm832, %v816, %v819
    %v837 = vsel %vm835, %v825, 2102212464
    %v838 = vsel %vm834, %v822, %v837
    %v839 = vsel %vm833, %v836, %v838
    %v840 = vsel %vm832, %v819, %v822
    %v841 = vsel %vm835, %v828, 920167782
    %v842 = vsel %vm834, %v825, %v841
    %v843 = vsel %vm833, %v840, %v842
    %v844 = vsel %vm832, %v822, %v825
    %v845 = vsel %vm835, %v831, 1326507024
    %v846 = vsel %vm834, %v828, %v845
    %v847 = vsel %vm833, %v844, %v846
    %v848 = vshll.u32 %v808, 8
    %v849 = vmul.u32.u64.compose %v848, %v847
    %v850 = vextract.low.u32 %v849
    %v851 = vextract.high.u32 %v849
    %v852 = vmul.u32.u64.compose %v848, %v843
    %v853 = vextract.low.u32 %v852
    %v854 = vextract.high.u32 %v852
    %v855 = vmul.u32 %v848, %v839
    %v856 = vadd.s32 %v851, %v853
    %vm857 = vc.u32 %v851, %v853
    %v858 = vadd.s32 %v854, 1
    %v859 = vsel %vm857, %v858, %v854
    %v860 = vadd.s32 %v855, %v859
    %v861 = vadd.s32 %v860, 536870912
    %v862 = vshrl.u32 %v861, 30
    %v863 = vshll.u32 %v862, 30
    %v864 = vsub.s32 %v860, %v863
    %vm865 = vcmp.lt.s32.totalorder %v864, 0
    %v866 = vsub.s32 0, %v864
    %v867 = vsel %vm865, %v866, %v864
    %v868 = vclz %v867
    %v869 = vsub.s32 %v868, 2
    %vm870 = vcmp.gt.s32.totalorder 0, %v869
    %v871 = vsel %vm870, 0, %v869
    %v872 = vsub.s32 32, %v871
    %v873 = vshll.u32 %v864, %v871
    %v874 = vshrl.u32 %v856, %v872
    %v875 = vor.u32 %v873, %v874
    %v876 = vsub.s32 4294967266, %v871
    %v877 = vadd.s32 %v876, 127
    %v878 = vshll.u32 %v877, 23
    %v879 = vor.u32 4788187, %v878
    %v880 = vand.u32 2147483647, %v879
    %v882 = vcvt.s32.f32 %v875
    %v883 = vmul.f32 %v882, %v880
    %v884 = vxor.u32 %v883, 2147483648
    %v885 = vsel %vm802, %v884, %v883
    %v886 = vsub.s32 4, %v862
    %v887 = vsel %vm802, %v886, %v862
    %v888 = vsel %vm801, %v792, %v885
    %v889 = vsel %vm801, 0, %v887
    %v890 = vcosq.f32.pop %v888
    %v891 = vsinq.f32.pop %v888
    %vm892 = vweird.f32 %v792
    %v893 = vadd.s32 %v889, 3
    %v894 = vand.u32 %v893, 3
    %vm895 = vcmp.lt.s32.totalorder %v894, 2
    %vm896 = vcmp.eq.s32.totalorder %v894, 0
    %v897 = vxor.u32 %v891, 2147483648
    %v898 = vsel %vm896, %v890, %v897
    %vm899 = vcmp.eq.s32.totalorder %v894, 2
    %v900 = vxor.u32 %v890, 2147483648
    %v901 = vsel %vm899, %v900, %v891
    %v902 = vsel %vm895, %v898, %v901
    %v903 = vsel %vm892, nan, %v902
    %v904 = vand.u32 2147483647, %v793
    %vm905 = vcmp.le.f32.partialorder %v904, 0.7853982
    %vm906 = vcmp.lt.s32.totalorder %v793, 0
    %v907 = vand.u32 %v793, 2139095040
    %v908 = vshrl.u32 %v907, 23
    %v909 = vsub.s32 %v908, 127
    %v910 = vand.u32 2147483647, %v793
    %v911 = vand.u32 %v910, 8388607
    %v912 = vor.u32 %v911, 8388608
    %v913 = vsub.s32 0, %v912
    %v914 = vadd.s32 %v909, 1
    %vm915 = vcmp.gt.s32.totalorder %v914, 0
    %v916 = vsel %vm915, %v914, 0
    %v917 = vshrl.u32 %v916, 5
    %v918 = vand.u32 %v916, 31
    %v919 = vsub.s32 32, %v918
    %v920 = vshrl.u32 683565275, %v919
    %v921 = vshll.u32 683565275, %v918
    %v922 = vshrl.u32 2475754826, %v919
    %v923 = vor.u32 %v921, %v922
    %v924 = vshll.u32 2475754826, %v918
    %v925 = vshrl.u32 2131351028, %v919
    %v926 = vor.u32 %v924, %v925
    %v927 = vshll.u32 2131351028, %v918
    %v928 = vshrl.u32 2102212464, %v919
    %v929 = vor.u32 %v927, %v928
    %v930 = vshll.u32 2102212464, %v918
    %v931 = vshrl.u32 920167782, %v919
    %v932 = vor.u32 %v930, %v931
    %v933 = vshll.u32 920167782, %v918
    %v934 = vshrl.u32 1326507024, %v919
    %v935 = vor.u32 %v933, %v934
    %vm936 = vcmp.lt.s32.totalorder %v917, 1
    %vm937 = vcmp.lt.s32.totalorder %v917, 2
    %vm938 = vcmp.lt.s32.totalorder %v917, 3
    %vm939 = vcmp.lt.s32.totalorder %v917, 4
    %v940 = vsel %vm936, %v920, %v923
    %v941 = vsel %vm939, %v929, 2102212464
    %v942 = vsel %vm938, %v926, %v941
    %v943 = vsel %vm937, %v940, %v942
    %v944 = vsel %vm936, %v923, %v926
    %v945 = vsel %vm939, %v932, 920167782
    %v946 = vsel %vm938, %v929, %v945
    %v947 = vsel %vm937, %v944, %v946
    %v948 = vsel %vm936, %v926, %v929
    %v949 = vsel %vm939, %v935, 1326507024
    %v950 = vsel %vm938, %v932, %v949
    %v951 = vsel %vm937, %v948, %v950
    %v952 = vshll.u32 %v912, 8
    %v953 = vmul.u32.u64.compose %v952, %v951
    %v954 = vextract.low.u32 %v953
    %v955 = vextract.high.u32 %v953
    %v956 = vmul.u32.u64.compose %v952, %v947
    %v957 = vextract.low.u32 %v956
    %v958 = vextract.high.u32 %v956
    %v959 = vmul.u32 %v952, %v943
    %v960 = vadd.s32 %v955, %v957
    %vm961 = vc.u32 %v955, %v957
    %v962 = vadd.s32 %v958, 1
    %v963 = vsel %vm961, %v962, %v958
    %v964 = vadd.s32 %v959, %v963
    %v965 = vadd.s32 %v964, 536870912
    %v966 = vshrl.u32 %v965, 30
    %v967 = vshll.u32 %v966, 30
    %v968 = vsub.s32 %v964, %v967
    %vm969 = vcmp.lt.s32.totalorder %v968, 0
    %v970 = vsub.s32 0, %v968
    %v971 = vsel %vm969, %v970, %v968
    %v972 = vclz %v971
    %v973 = vsub.s32 %v972, 2
    %vm974 = vcmp.gt.s32.totalorder 0, %v973
    %v975 = vsel %vm974, 0, %v973
    %v976 = vsub.s32 32, %v975
    %v977 = vshll.u32 %v968, %v975
    %v978 = vshrl.u32 %v960, %v976
    %v979 = vor.u32 %v977, %v978
    %v980 = vsub.s32 4294967266, %v975
    %v981 = vadd.s32 %v980, 127
    %v982 = vshll.u32 %v981, 23
    %v983 = vor.u32 4788187, %v982
    %v984 = vand.u32 2147483647, %v983
    %v986 = vcvt.s32.f32 %v979
    %v987 = vmul.f32 %v986, %v984
    %v988 = vxor.u32 %v987, 2147483648
    %v989 = vsel %vm906, %v988, %v987
    %v990 = vsub.s32 4, %v966
    %v991 = vsel %vm906, %v990, %v966
    %v992 = vsel %vm905, %v793, %v989
    %v993 = vsel %vm905, 0, %v991
    %v994 = vcosq.f32.pop %v992
    %v995 = vsinq.f32.pop %v992
    %vm996 = vweird.f32 %v793
    %v997 = vadd.s32 %v993, 3
    %v998 = vand.u32 %v997, 3
    %vm999 = vcmp.lt.s32.totalorder %v998, 2
    %vm1000 = vcmp.eq.s32.totalorder %v998, 0
    %v1001 = vxor.u32 %v995, 2147483648
    %v1002 = vsel %vm1000, %v994, %v1001
    %vm1003 = vcmp.eq.s32.totalorder %v998, 2
    %v1004 = vxor.u32 %v994, 2147483648
    %v1005 = vsel %vm1003, %v1004, %v995
    %v1006 = vsel %vm999, %v1002, %v1005
    %v1007 = vsel %vm996, nan, %v1006
    %v1008 = vand.u32 2147483647, %v794
    %vm1009 = vcmp.le.f32.partialorder %v1008, 0.7853982
    %vm1010 = vcmp.lt.s32.totalorder %v794, 0
    %v1011 = vand.u32 %v794, 2139095040
    %v1012 = vshrl.u32 %v1011, 23
    %v1013 = vsub.s32 %v1012, 127
    %v1014 = vand.u32 2147483647, %v794
    %v1015 = vand.u32 %v1014, 8388607
    %v1016 = vor.u32 %v1015, 8388608
    %v1017 = vsub.s32 0, %v1016
    %v1018 = vadd.s32 %v1013, 1
    %vm1019 = vcmp.gt.s32.totalorder %v1018, 0
    %v1020 = vsel %vm1019, %v1018, 0
    %v1021 = vshrl.u32 %v1020, 5
    %v1022 = vand.u32 %v1020, 31
    %v1023 = vsub.s32 32, %v1022
    %v1024 = vshrl.u32 683565275, %v1023
    %v1025 = vshll.u32 683565275, %v1022
    %v1026 = vshrl.u32 2475754826, %v1023
    %v1027 = vor.u32 %v1025, %v1026
    %v1028 = vshll.u32 2475754826, %v1022
    %v1029 = vshrl.u32 2131351028, %v1023
    %v1030 = vor.u32 %v1028, %v1029
    %v1031 = vshll.u32 2131351028, %v1022
    %v1032 = vshrl.u32 2102212464, %v1023
    %v1033 = vor.u32 %v1031, %v1032
    %v1034 = vshll.u32 2102212464, %v1022
    %v1035 = vshrl.u32 920167782, %v1023
    %v1036 = vor.u32 %v1034, %v1035
    %v1037 = vshll.u32 920167782, %v1022
    %v1038 = vshrl.u32 1326507024, %v1023
    %v1039 = vor.u32 %v1037, %v1038
    %vm1040 = vcmp.lt.s32.totalorder %v1021, 1
    %vm1041 = vcmp.lt.s32.totalorder %v1021, 2
    %vm1042 = vcmp.lt.s32.totalorder %v1021, 3
    %vm1043 = vcmp.lt.s32.totalorder %v1021, 4
    %v1044 = vsel %vm1040, %v1024, %v1027
    %v1045 = vsel %vm1043, %v1033, 2102212464
    %v1046 = vsel %vm1042, %v1030, %v1045
    %v1047 = vsel %vm1041, %v1044, %v1046
    %v1048 = vsel %vm1040, %v1027, %v1030
    %v1049 = vsel %vm1043, %v1036, 920167782
    %v1050 = vsel %vm1042, %v1033, %v1049
    %v1051 = vsel %vm1041, %v1048, %v1050
    %v1052 = vsel %vm1040, %v1030, %v1033
    %v1053 = vsel %vm1043, %v1039, 1326507024
    %v1054 = vsel %vm1042, %v1036, %v1053
    %v1055 = vsel %vm1041, %v1052, %v1054
    %v1056 = vshll.u32 %v1016, 8
    %v1057 = vmul.u32.u64.compose %v1056, %v1055
    %v1058 = vextract.low.u32 %v1057
    %v1059 = vextract.high.u32 %v1057
    %v1060 = vmul.u32.u64.compose %v1056, %v1051
    %v1061 = vextract.low.u32 %v1060
    %v1062 = vextract.high.u32 %v1060
    %v1063 = vmul.u32 %v1056, %v1047
    %v1064 = vadd.s32 %v1059, %v1061
    %vm1065 = vc.u32 %v1059, %v1061
    %v1066 = vadd.s32 %v1062, 1
    %v1067 = vsel %vm1065, %v1066, %v1062
    %v1068 = vadd.s32 %v1063, %v1067
    %v1069 = vadd.s32 %v1068, 536870912
    %v1070 = vshrl.u32 %v1069, 30
    %v1071 = vshll.u32 %v1070, 30
    %v1072 = vsub.s32 %v1068, %v1071
    %vm1073 = vcmp.lt.s32.totalorder %v1072, 0
    %v1074 = vsub.s32 0, %v1072
    %v1075 = vsel %vm1073, %v1074, %v1072
    %v1076 = vclz %v1075
    %v1077 = vsub.s32 %v1076, 2
    %vm1078 = vcmp.gt.s32.totalorder 0, %v1077
    %v1079 = vsel %vm1078, 0, %v1077
    %v1080 = vsub.s32 32, %v1079
    %v1081 = vshll.u32 %v1072, %v1079
    %v1082 = vshrl.u32 %v1064, %v1080
    %v1083 = vor.u32 %v1081, %v1082
    %v1084 = vsub.s32 4294967266, %v1079
    %v1085 = vadd.s32 %v1084, 127
    %v1086 = vshll.u32 %v1085, 23
    %v1087 = vor.u32 4788187, %v1086
    %v1088 = vand.u32 2147483647, %v1087
    %v1090 = vcvt.s32.f32 %v1083
    %v1091 = vmul.f32 %v1090, %v1088
    %v1092 = vxor.u32 %v1091, 2147483648
    %v1093 = vsel %vm1010, %v1092, %v1091
    %v1094 = vsub.s32 4, %v1070
    %v1095 = vsel %vm1010, %v1094, %v1070
    %v1096 = vsel %vm1009, %v794, %v1093
    %v1097 = vsel %vm1009, 0, %v1095
    %v1098 = vcosq.f32.pop %v1096
    %v1099 = vsinq.f32.pop %v1096
    %vm1100 = vweird.f32 %v794
    %v1101 = vadd.s32 %v1097, 3
    %v1102 = vand.u32 %v1101, 3
    %vm1103 = vcmp.lt.s32.totalorder %v1102, 2
    %vm1104 = vcmp.eq.s32.totalorder %v1102, 0
    %v1105 = vxor.u32 %v1099, 2147483648
    %v1106 = vsel %vm1104, %v1098, %v1105
    %vm1107 = vcmp.eq.s32.totalorder %v1102, 2
    %v1108 = vxor.u32 %v1098, 2147483648
    %v1109 = vsel %vm1107, %v1108, %v1099
    %v1110 = vsel %vm1103, %v1106, %v1109
    %v1111 = vsel %vm1100, nan, %v1110
    %v1112 = vand.u32 2147483647, %v795
    %vm1113 = vcmp.le.f32.partialorder %v1112, 0.7853982
    %vm1114 = vcmp.lt.s32.totalorder %v795, 0
    %v1115 = vand.u32 %v795, 2139095040
    %v1116 = vshrl.u32 %v1115, 23
    %v1117 = vsub.s32 %v1116, 127
    %v1118 = vand.u32 2147483647, %v795
    %v1119 = vand.u32 %v1118, 8388607
    %v1120 = vor.u32 %v1119, 8388608
    %v1121 = vsub.s32 0, %v1120
    %v1122 = vadd.s32 %v1117, 1
    %vm1123 = vcmp.gt.s32.totalorder %v1122, 0
    %v1124 = vsel %vm1123, %v1122, 0
    %v1125 = vshrl.u32 %v1124, 5
    %v1126 = vand.u32 %v1124, 31
    %v1127 = vsub.s32 32, %v1126
    %v1128 = vshrl.u32 683565275, %v1127
    %v1129 = vshll.u32 683565275, %v1126
    %v1130 = vshrl.u32 2475754826, %v1127
    %v1131 = vor.u32 %v1129, %v1130
    %v1132 = vshll.u32 2475754826, %v1126
    %v1133 = vshrl.u32 2131351028, %v1127
    %v1134 = vor.u32 %v1132, %v1133
    %v1135 = vshll.u32 2131351028, %v1126
    %v1136 = vshrl.u32 2102212464, %v1127
    %v1137 = vor.u32 %v1135, %v1136
    %v1138 = vshll.u32 2102212464, %v1126
    %v1139 = vshrl.u32 920167782, %v1127
    %v1140 = vor.u32 %v1138, %v1139
    %v1141 = vshll.u32 920167782, %v1126
    %v1142 = vshrl.u32 1326507024, %v1127
    %v1143 = vor.u32 %v1141, %v1142
    %vm1144 = vcmp.lt.s32.totalorder %v1125, 1
    %vm1145 = vcmp.lt.s32.totalorder %v1125, 2
    %vm1146 = vcmp.lt.s32.totalorder %v1125, 3
    %vm1147 = vcmp.lt.s32.totalorder %v1125, 4
    %v1148 = vsel %vm1144, %v1128, %v1131
    %v1149 = vsel %vm1147, %v1137, 2102212464
    %v1150 = vsel %vm1146, %v1134, %v1149
    %v1151 = vsel %vm1145, %v1148, %v1150
    %v1152 = vsel %vm1144, %v1131, %v1134
    %v1153 = vsel %vm1147, %v1140, 920167782
    %v1154 = vsel %vm1146, %v1137, %v1153
    %v1155 = vsel %vm1145, %v1152, %v1154
    %v1156 = vsel %vm1144, %v1134, %v1137
    %v1157 = vsel %vm1147, %v1143, 1326507024
    %v1158 = vsel %vm1146, %v1140, %v1157
    %v1159 = vsel %vm1145, %v1156, %v1158
    %v1160 = vshll.u32 %v1120, 8
    %v1161 = vmul.u32.u64.compose %v1160, %v1159
    %v1162 = vextract.low.u32 %v1161
    %v1163 = vextract.high.u32 %v1161
    %v1164 = vmul.u32.u64.compose %v1160, %v1155
    %v1165 = vextract.low.u32 %v1164
    %v1166 = vextract.high.u32 %v1164
    %v1167 = vmul.u32 %v1160, %v1151
    %v1168 = vadd.s32 %v1163, %v1165
    %vm1169 = vc.u32 %v1163, %v1165
    %v1170 = vadd.s32 %v1166, 1
    %v1171 = vsel %vm1169, %v1170, %v1166
    %v1172 = vadd.s32 %v1167, %v1171
    %v1173 = vadd.s32 %v1172, 536870912
    %v1174 = vshrl.u32 %v1173, 30
    %v1175 = vshll.u32 %v1174, 30
    %v1176 = vsub.s32 %v1172, %v1175
    %vm1177 = vcmp.lt.s32.totalorder %v1176, 0
    %v1178 = vsub.s32 0, %v1176
    %v1179 = vsel %vm1177, %v1178, %v1176
    %v1180 = vclz %v1179
    %v1181 = vsub.s32 %v1180, 2
    %vm1182 = vcmp.gt.s32.totalorder 0, %v1181
    %v1183 = vsel %vm1182, 0, %v1181
    %v1184 = vsub.s32 32, %v1183
    %v1185 = vshll.u32 %v1176, %v1183
    %v1186 = vshrl.u32 %v1168, %v1184
    %v1187 = vor.u32 %v1185, %v1186
    %v1188 = vsub.s32 4294967266, %v1183
    %v1189 = vadd.s32 %v1188, 127
    %v1190 = vshll.u32 %v1189, 23
    %v1191 = vor.u32 4788187, %v1190
    %v1192 = vand.u32 2147483647, %v1191
    %v1194 = vcvt.s32.f32 %v1187
    %v1195 = vmul.f32 %v1194, %v1192
    %v1196 = vxor.u32 %v1195, 2147483648
    %v1197 = vsel %vm1114, %v1196, %v1195
    %v1198 = vsub.s32 4, %v1174
    %v1199 = vsel %vm1114, %v1198, %v1174
    %v1200 = vsel %vm1113, %v795, %v1197
    %v1201 = vsel %vm1113, 0, %v1199
    %v1202 = vcosq.f32.pop %v1200
    %v1203 = vsinq.f32.pop %v1200
    %vm1204 = vweird.f32 %v795
    %v1205 = vadd.s32 %v1201, 3
    %v1206 = vand.u32 %v1205, 3
    %vm1207 = vcmp.lt.s32.totalorder %v1206, 2
    %vm1208 = vcmp.eq.s32.totalorder %v1206, 0
    %v1209 = vxor.u32 %v1203, 2147483648
    %v1210 = vsel %vm1208, %v1202, %v1209
    %vm1211 = vcmp.eq.s32.totalorder %v1206, 2
    %v1212 = vxor.u32 %v1202, 2147483648
    %v1213 = vsel %vm1211, %v1212, %v1203
    %v1214 = vsel %vm1207, %v1210, %v1213
    %v1215 = vsel %vm1204, nan, %v1214
    %v1216 = vand.u32 2147483647, %v796
    %vm1217 = vcmp.le.f32.partialorder %v1216, 0.7853982
    %vm1218 = vcmp.lt.s32.totalorder %v796, 0
    %v1219 = vand.u32 %v796, 2139095040
    %v1220 = vshrl.u32 %v1219, 23
    %v1221 = vsub.s32 %v1220, 127
    %v1222 = vand.u32 2147483647, %v796
    %v1223 = vand.u32 %v1222, 8388607
    %v1224 = vor.u32 %v1223, 8388608
    %v1225 = vsub.s32 0, %v1224
    %v1226 = vadd.s32 %v1221, 1
    %vm1227 = vcmp.gt.s32.totalorder %v1226, 0
    %v1228 = vsel %vm1227, %v1226, 0
    %v1229 = vshrl.u32 %v1228, 5
    %v1230 = vand.u32 %v1228, 31
    %v1231 = vsub.s32 32, %v1230
    %v1232 = vshrl.u32 683565275, %v1231
    %v1233 = vshll.u32 683565275, %v1230
    %v1234 = vshrl.u32 2475754826, %v1231
    %v1235 = vor.u32 %v1233, %v1234
    %v1236 = vshll.u32 2475754826, %v1230
    %v1237 = vshrl.u32 2131351028, %v1231
    %v1238 = vor.u32 %v1236, %v1237
    %v1239 = vshll.u32 2131351028, %v1230
    %v1240 = vshrl.u32 2102212464, %v1231
    %v1241 = vor.u32 %v1239, %v1240
    %v1242 = vshll.u32 2102212464, %v1230
    %v1243 = vshrl.u32 920167782, %v1231
    %v1244 = vor.u32 %v1242, %v1243
    %v1245 = vshll.u32 920167782, %v1230
    %v1246 = vshrl.u32 1326507024, %v1231
    %v1247 = vor.u32 %v1245, %v1246
    %vm1248 = vcmp.lt.s32.totalorder %v1229, 1
    %vm1249 = vcmp.lt.s32.totalorder %v1229, 2
    %vm1250 = vcmp.lt.s32.totalorder %v1229, 3
    %vm1251 = vcmp.lt.s32.totalorder %v1229, 4
    %v1252 = vsel %vm1248, %v1232, %v1235
    %v1253 = vsel %vm1251, %v1241, 2102212464
    %v1254 = vsel %vm1250, %v1238, %v1253
    %v1255 = vsel %vm1249, %v1252, %v1254
    %v1256 = vsel %vm1248, %v1235, %v1238
    %v1257 = vsel %vm1251, %v1244, 920167782
    %v1258 = vsel %vm1250, %v1241, %v1257
    %v1259 = vsel %vm1249, %v1256, %v1258
    %v1260 = vsel %vm1248, %v1238, %v1241
    %v1261 = vsel %vm1251, %v1247, 1326507024
    %v1262 = vsel %vm1250, %v1244, %v1261
    %v1263 = vsel %vm1249, %v1260, %v1262
    %v1264 = vshll.u32 %v1224, 8
    %v1265 = vmul.u32.u64.compose %v1264, %v1263
    %v1266 = vextract.low.u32 %v1265
    %v1267 = vextract.high.u32 %v1265
    %v1268 = vmul.u32.u64.compose %v1264, %v1259
    %v1269 = vextract.low.u32 %v1268
    %v1270 = vextract.high.u32 %v1268
    %v1271 = vmul.u32 %v1264, %v1255
    %v1272 = vadd.s32 %v1267, %v1269
    %vm1273 = vc.u32 %v1267, %v1269
    %v1274 = vadd.s32 %v1270, 1
    %v1275 = vsel %vm1273, %v1274, %v1270
    %v1276 = vadd.s32 %v1271, %v1275
    %v1277 = vadd.s32 %v1276, 536870912
    %v1278 = vshrl.u32 %v1277, 30
    %v1279 = vshll.u32 %v1278, 30
    %v1280 = vsub.s32 %v1276, %v1279
    %vm1281 = vcmp.lt.s32.totalorder %v1280, 0
    %v1282 = vsub.s32 0, %v1280
    %v1283 = vsel %vm1281, %v1282, %v1280
    %v1284 = vclz %v1283
    %v1285 = vsub.s32 %v1284, 2
    %vm1286 = vcmp.gt.s32.totalorder 0, %v1285
    %v1287 = vsel %vm1286, 0, %v1285
    %v1288 = vsub.s32 32, %v1287
    %v1289 = vshll.u32 %v1280, %v1287
    %v1290 = vshrl.u32 %v1272, %v1288
    %v1291 = vor.u32 %v1289, %v1290
    %v1292 = vsub.s32 4294967266, %v1287
    %v1293 = vadd.s32 %v1292, 127
    %v1294 = vshll.u32 %v1293, 23
    %v1295 = vor.u32 4788187, %v1294
    %v1296 = vand.u32 2147483647, %v1295
    %v1298 = vcvt.s32.f32 %v1291
    %v1299 = vmul.f32 %v1298, %v1296
    %v1300 = vxor.u32 %v1299, 2147483648
    %v1301 = vsel %vm1218, %v1300, %v1299
    %v1302 = vsub.s32 4, %v1278
    %v1303 = vsel %vm1218, %v1302, %v1278
    %v1304 = vsel %vm1217, %v796, %v1301
    %v1305 = vsel %vm1217, 0, %v1303
    %v1306 = vcosq.f32.pop %v1304
    %v1307 = vsinq.f32.pop %v1304
    %vm1308 = vweird.f32 %v796
    %v1309 = vadd.s32 %v1305, 3
    %v1310 = vand.u32 %v1309, 3
    %vm1311 = vcmp.lt.s32.totalorder %v1310, 2
    %vm1312 = vcmp.eq.s32.totalorder %v1310, 0
    %v1313 = vxor.u32 %v1307, 2147483648
    %v1314 = vsel %vm1312, %v1306, %v1313
    %vm1315 = vcmp.eq.s32.totalorder %v1310, 2
    %v1316 = vxor.u32 %v1306, 2147483648
    %v1317 = vsel %vm1315, %v1316, %v1307
    %v1318 = vsel %vm1311, %v1314, %v1317
    %v1319 = vsel %vm1308, nan, %v1318
    %v1320 = vand.u32 2147483647, %v797
    %vm1321 = vcmp.le.f32.partialorder %v1320, 0.7853982
    %vm1322 = vcmp.lt.s32.totalorder %v797, 0
    %v1323 = vand.u32 %v797, 2139095040
    %v1324 = vshrl.u32 %v1323, 23
    %v1325 = vsub.s32 %v1324, 127
    %v1326 = vand.u32 2147483647, %v797
    %v1327 = vand.u32 %v1326, 8388607
    %v1328 = vor.u32 %v1327, 8388608
    %v1329 = vsub.s32 0, %v1328
    %v1330 = vadd.s32 %v1325, 1
    %vm1331 = vcmp.gt.s32.totalorder %v1330, 0
    %v1332 = vsel %vm1331, %v1330, 0
    %v1333 = vshrl.u32 %v1332, 5
    %v1334 = vand.u32 %v1332, 31
    %v1335 = vsub.s32 32, %v1334
    %v1336 = vshrl.u32 683565275, %v1335
    %v1337 = vshll.u32 683565275, %v1334
    %v1338 = vshrl.u32 2475754826, %v1335
    %v1339 = vor.u32 %v1337, %v1338
    %v1340 = vshll.u32 2475754826, %v1334
    %v1341 = vshrl.u32 2131351028, %v1335
    %v1342 = vor.u32 %v1340, %v1341
    %v1343 = vshll.u32 2131351028, %v1334
    %v1344 = vshrl.u32 2102212464, %v1335
    %v1345 = vor.u32 %v1343, %v1344
    %v1346 = vshll.u32 2102212464, %v1334
    %v1347 = vshrl.u32 920167782, %v1335
    %v1348 = vor.u32 %v1346, %v1347
    %v1349 = vshll.u32 920167782, %v1334
    %v1350 = vshrl.u32 1326507024, %v1335
    %v1351 = vor.u32 %v1349, %v1350
    %vm1352 = vcmp.lt.s32.totalorder %v1333, 1
    %vm1353 = vcmp.lt.s32.totalorder %v1333, 2
    %vm1354 = vcmp.lt.s32.totalorder %v1333, 3
    %vm1355 = vcmp.lt.s32.totalorder %v1333, 4
    %v1356 = vsel %vm1352, %v1336, %v1339
    %v1357 = vsel %vm1355, %v1345, 2102212464
    %v1358 = vsel %vm1354, %v1342, %v1357
    %v1359 = vsel %vm1353, %v1356, %v1358
    %v1360 = vsel %vm1352, %v1339, %v1342
    %v1361 = vsel %vm1355, %v1348, 920167782
    %v1362 = vsel %vm1354, %v1345, %v1361
    %v1363 = vsel %vm1353, %v1360, %v1362
    %v1364 = vsel %vm1352, %v1342, %v1345
    %v1365 = vsel %vm1355, %v1351, 1326507024
    %v1366 = vsel %vm1354, %v1348, %v1365
    %v1367 = vsel %vm1353, %v1364, %v1366
    %v1368 = vshll.u32 %v1328, 8
    %v1369 = vmul.u32.u64.compose %v1368, %v1367
    %v1370 = vextract.low.u32 %v1369
    %v1371 = vextract.high.u32 %v1369
    %v1372 = vmul.u32.u64.compose %v1368, %v1363
    %v1373 = vextract.low.u32 %v1372
    %v1374 = vextract.high.u32 %v1372
    %v1375 = vmul.u32 %v1368, %v1359
    %v1376 = vadd.s32 %v1371, %v1373
    %vm1377 = vc.u32 %v1371, %v1373
    %v1378 = vadd.s32 %v1374, 1
    %v1379 = vsel %vm1377, %v1378, %v1374
    %v1380 = vadd.s32 %v1375, %v1379
    %v1381 = vadd.s32 %v1380, 536870912
    %v1382 = vshrl.u32 %v1381, 30
    %v1383 = vshll.u32 %v1382, 30
    %v1384 = vsub.s32 %v1380, %v1383
    %vm1385 = vcmp.lt.s32.totalorder %v1384, 0
    %v1386 = vsub.s32 0, %v1384
    %v1387 = vsel %vm1385, %v1386, %v1384
    %v1388 = vclz %v1387
    %v1389 = vsub.s32 %v1388, 2
    %vm1390 = vcmp.gt.s32.totalorder 0, %v1389
    %v1391 = vsel %vm1390, 0, %v1389
    %v1392 = vsub.s32 32, %v1391
    %v1393 = vshll.u32 %v1384, %v1391
    %v1394 = vshrl.u32 %v1376, %v1392
    %v1395 = vor.u32 %v1393, %v1394
    %v1396 = vsub.s32 4294967266, %v1391
    %v1397 = vadd.s32 %v1396, 127
    %v1398 = vshll.u32 %v1397, 23
    %v1399 = vor.u32 4788187, %v1398
    %v1400 = vand.u32 2147483647, %v1399
    %v1402 = vcvt.s32.f32 %v1395
    %v1403 = vmul.f32 %v1402, %v1400
    %v1404 = vxor.u32 %v1403, 2147483648
    %v1405 = vsel %vm1322, %v1404, %v1403
    %v1406 = vsub.s32 4, %v1382
    %v1407 = vsel %vm1322, %v1406, %v1382
    %v1408 = vsel %vm1321, %v797, %v1405
    %v1409 = vsel %vm1321, 0, %v1407
    %v1410 = vcosq.f32.pop %v1408
    %v1411 = vsinq.f32.pop %v1408
    %vm1412 = vweird.f32 %v797
    %v1413 = vadd.s32 %v1409, 3
    %v1414 = vand.u32 %v1413, 3
    %vm1415 = vcmp.lt.s32.totalorder %v1414, 2
    %vm1416 = vcmp.eq.s32.totalorder %v1414, 0
    %v1417 = vxor.u32 %v1411, 2147483648
    %v1418 = vsel %vm1416, %v1410, %v1417
    %vm1419 = vcmp.eq.s32.totalorder %v1414, 2
    %v1420 = vxor.u32 %v1410, 2147483648
    %v1421 = vsel %vm1419, %v1420, %v1411
    %v1422 = vsel %vm1415, %v1418, %v1421
    %v1423 = vsel %vm1412, nan, %v1422
    %v1424 = vand.u32 2147483647, %v798
    %vm1425 = vcmp.le.f32.partialorder %v1424, 0.7853982
    %vm1426 = vcmp.lt.s32.totalorder %v798, 0
    %v1427 = vand.u32 %v798, 2139095040
    %v1428 = vshrl.u32 %v1427, 23
    %v1429 = vsub.s32 %v1428, 127
    %v1430 = vand.u32 2147483647, %v798
    %v1431 = vand.u32 %v1430, 8388607
    %v1432 = vor.u32 %v1431, 8388608
    %v1433 = vsub.s32 0, %v1432
    %v1434 = vadd.s32 %v1429, 1
    %vm1435 = vcmp.gt.s32.totalorder %v1434, 0
    %v1436 = vsel %vm1435, %v1434, 0
    %v1437 = vshrl.u32 %v1436, 5
    %v1438 = vand.u32 %v1436, 31
    %v1439 = vsub.s32 32, %v1438
    %v1440 = vshrl.u32 683565275, %v1439
    %v1441 = vshll.u32 683565275, %v1438
    %v1442 = vshrl.u32 2475754826, %v1439
    %v1443 = vor.u32 %v1441, %v1442
    %v1444 = vshll.u32 2475754826, %v1438
    %v1445 = vshrl.u32 2131351028, %v1439
    %v1446 = vor.u32 %v1444, %v1445
    %v1447 = vshll.u32 2131351028, %v1438
    %v1448 = vshrl.u32 2102212464, %v1439
    %v1449 = vor.u32 %v1447, %v1448
    %v1450 = vshll.u32 2102212464, %v1438
    %v1451 = vshrl.u32 920167782, %v1439
    %v1452 = vor.u32 %v1450, %v1451
    %v1453 = vshll.u32 920167782, %v1438
    %v1454 = vshrl.u32 1326507024, %v1439
    %v1455 = vor.u32 %v1453, %v1454
    %vm1456 = vcmp.lt.s32.totalorder %v1437, 1
    %vm1457 = vcmp.lt.s32.totalorder %v1437, 2
    %vm1458 = vcmp.lt.s32.totalorder %v1437, 3
    %vm1459 = vcmp.lt.s32.totalorder %v1437, 4
    %v1460 = vsel %vm1456, %v1440, %v1443
    %v1461 = vsel %vm1459, %v1449, 2102212464
    %v1462 = vsel %vm1458, %v1446, %v1461
    %v1463 = vsel %vm1457, %v1460, %v1462
    %v1464 = vsel %vm1456, %v1443, %v1446
    %v1465 = vsel %vm1459, %v1452, 920167782
    %v1466 = vsel %vm1458, %v1449, %v1465
    %v1467 = vsel %vm1457, %v1464, %v1466
    %v1468 = vsel %vm1456, %v1446, %v1449
    %v1469 = vsel %vm1459, %v1455, 1326507024
    %v1470 = vsel %vm1458, %v1452, %v1469
    %v1471 = vsel %vm1457, %v1468, %v1470
    %v1472 = vshll.u32 %v1432, 8
    %v1473 = vmul.u32.u64.compose %v1472, %v1471
    %v1474 = vextract.low.u32 %v1473
    %v1475 = vextract.high.u32 %v1473
    %v1476 = vmul.u32.u64.compose %v1472, %v1467
    %v1477 = vextract.low.u32 %v1476
    %v1478 = vextract.high.u32 %v1476
    %v1479 = vmul.u32 %v1472, %v1463
    %v1480 = vadd.s32 %v1475, %v1477
    %vm1481 = vc.u32 %v1475, %v1477
    %v1482 = vadd.s32 %v1478, 1
    %v1483 = vsel %vm1481, %v1482, %v1478
    %v1484 = vadd.s32 %v1479, %v1483
    %v1485 = vadd.s32 %v1484, 536870912
    %v1486 = vshrl.u32 %v1485, 30
    %v1487 = vshll.u32 %v1486, 30
    %v1488 = vsub.s32 %v1484, %v1487
    %vm1489 = vcmp.lt.s32.totalorder %v1488, 0
    %v1490 = vsub.s32 0, %v1488
    %v1491 = vsel %vm1489, %v1490, %v1488
    %v1492 = vclz %v1491
    %v1493 = vsub.s32 %v1492, 2
    %vm1494 = vcmp.gt.s32.totalorder 0, %v1493
    %v1495 = vsel %vm1494, 0, %v1493
    %v1496 = vsub.s32 32, %v1495
    %v1497 = vshll.u32 %v1488, %v1495
    %v1498 = vshrl.u32 %v1480, %v1496
    %v1499 = vor.u32 %v1497, %v1498
    %v1500 = vsub.s32 4294967266, %v1495
    %v1501 = vadd.s32 %v1500, 127
    %v1502 = vshll.u32 %v1501, 23
    %v1503 = vor.u32 4788187, %v1502
    %v1504 = vand.u32 2147483647, %v1503
    %v1506 = vcvt.s32.f32 %v1499
    %v1507 = vmul.f32 %v1506, %v1504
    %v1508 = vxor.u32 %v1507, 2147483648
    %v1509 = vsel %vm1426, %v1508, %v1507
    %v1510 = vsub.s32 4, %v1486
    %v1511 = vsel %vm1426, %v1510, %v1486
    %v1512 = vsel %vm1425, %v798, %v1509
    %v1513 = vsel %vm1425, 0, %v1511
    %v1514 = vcosq.f32.pop %v1512
    %v1515 = vsinq.f32.pop %v1512
    %vm1516 = vweird.f32 %v798
    %v1517 = vadd.s32 %v1513, 3
    %v1518 = vand.u32 %v1517, 3
    %vm1519 = vcmp.lt.s32.totalorder %v1518, 2
    %vm1520 = vcmp.eq.s32.totalorder %v1518, 0
    %v1521 = vxor.u32 %v1515, 2147483648
    %v1522 = vsel %vm1520, %v1514, %v1521
    %vm1523 = vcmp.eq.s32.totalorder %v1518, 2
    %v1524 = vxor.u32 %v1514, 2147483648
    %v1525 = vsel %vm1523, %v1524, %v1515
    %v1526 = vsel %vm1519, %v1522, %v1525
    %v1527 = vsel %vm1516, nan, %v1526
    %v1528 = vand.u32 2147483647, %v799
    %vm1529 = vcmp.le.f32.partialorder %v1528, 0.7853982
    %vm1530 = vcmp.lt.s32.totalorder %v799, 0
    %v1531 = vand.u32 %v799, 2139095040
    %v1532 = vshrl.u32 %v1531, 23
    %v1533 = vsub.s32 %v1532, 127
    %v1534 = vand.u32 2147483647, %v799
    %v1535 = vand.u32 %v1534, 8388607
    %v1536 = vor.u32 %v1535, 8388608
    %v1537 = vsub.s32 0, %v1536
    %v1538 = vadd.s32 %v1533, 1
    %vm1539 = vcmp.gt.s32.totalorder %v1538, 0
    %v1540 = vsel %vm1539, %v1538, 0
    %v1541 = vshrl.u32 %v1540, 5
    %v1542 = vand.u32 %v1540, 31
    %v1543 = vsub.s32 32, %v1542
    %v1544 = vshrl.u32 683565275, %v1543
    %v1545 = vshll.u32 683565275, %v1542
    %v1546 = vshrl.u32 2475754826, %v1543
    %v1547 = vor.u32 %v1545, %v1546
    %v1548 = vshll.u32 2475754826, %v1542
    %v1549 = vshrl.u32 2131351028, %v1543
    %v1550 = vor.u32 %v1548, %v1549
    %v1551 = vshll.u32 2131351028, %v1542
    %v1552 = vshrl.u32 2102212464, %v1543
    %v1553 = vor.u32 %v1551, %v1552
    %v1554 = vshll.u32 2102212464, %v1542
    %v1555 = vshrl.u32 920167782, %v1543
    %v1556 = vor.u32 %v1554, %v1555
    %v1557 = vshll.u32 920167782, %v1542
    %v1558 = vshrl.u32 1326507024, %v1543
    %v1559 = vor.u32 %v1557, %v1558
    %vm1560 = vcmp.lt.s32.totalorder %v1541, 1
    %vm1561 = vcmp.lt.s32.totalorder %v1541, 2
    %vm1562 = vcmp.lt.s32.totalorder %v1541, 3
    %vm1563 = vcmp.lt.s32.totalorder %v1541, 4
    %v1564 = vsel %vm1560, %v1544, %v1547
    %v1565 = vsel %vm1563, %v1553, 2102212464
    %v1566 = vsel %vm1562, %v1550, %v1565
    %v1567 = vsel %vm1561, %v1564, %v1566
    %v1568 = vsel %vm1560, %v1547, %v1550
    %v1569 = vsel %vm1563, %v1556, 920167782
    %v1570 = vsel %vm1562, %v1553, %v1569
    %v1571 = vsel %vm1561, %v1568, %v1570
    %v1572 = vsel %vm1560, %v1550, %v1553
    %v1573 = vsel %vm1563, %v1559, 1326507024
    %v1574 = vsel %vm1562, %v1556, %v1573
    %v1575 = vsel %vm1561, %v1572, %v1574
    %v1576 = vshll.u32 %v1536, 8
    %v1577 = vmul.u32.u64.compose %v1576, %v1575
    %v1578 = vextract.low.u32 %v1577
    %v1579 = vextract.high.u32 %v1577
    %v1580 = vmul.u32.u64.compose %v1576, %v1571
    %v1581 = vextract.low.u32 %v1580
    %v1582 = vextract.high.u32 %v1580
    %v1583 = vmul.u32 %v1576, %v1567
    %v1584 = vadd.s32 %v1579, %v1581
    %vm1585 = vc.u32 %v1579, %v1581
    %v1586 = vadd.s32 %v1582, 1
    %v1587 = vsel %vm1585, %v1586, %v1582
    %v1588 = vadd.s32 %v1583, %v1587
    %v1589 = vadd.s32 %v1588, 536870912
    %v1590 = vshrl.u32 %v1589, 30
    %v1591 = vshll.u32 %v1590, 30
    %v1592 = vsub.s32 %v1588, %v1591
    %vm1593 = vcmp.lt.s32.totalorder %v1592, 0
    %v1594 = vsub.s32 0, %v1592
    %v1595 = vsel %vm1593, %v1594, %v1592
    %v1596 = vclz %v1595
    %v1597 = vsub.s32 %v1596, 2
    %vm1598 = vcmp.gt.s32.totalorder 0, %v1597
    %v1599 = vsel %vm1598, 0, %v1597
    %v1600 = vsub.s32 32, %v1599
    %v1601 = vshll.u32 %v1592, %v1599
    %v1602 = vshrl.u32 %v1584, %v1600
    %v1603 = vor.u32 %v1601, %v1602
    %v1604 = vsub.s32 4294967266, %v1599
    %v1605 = vadd.s32 %v1604, 127
    %v1606 = vshll.u32 %v1605, 23
    %v1607 = vor.u32 4788187, %v1606
    %v1608 = vand.u32 2147483647, %v1607
    %v1610 = vcvt.s32.f32 %v1603
    %v1611 = vmul.f32 %v1610, %v1608
    %v1612 = vxor.u32 %v1611, 2147483648
    %v1613 = vsel %vm1530, %v1612, %v1611
    %v1614 = vsub.s32 4, %v1590
    %v1615 = vsel %vm1530, %v1614, %v1590
    %v1616 = vsel %vm1529, %v799, %v1613
    %v1617 = vsel %vm1529, 0, %v1615
    %v1618 = vcosq.f32.pop %v1616
    %v1619 = vsinq.f32.pop %v1616
    %vm1620 = vweird.f32 %v799
    %v1621 = vadd.s32 %v1617, 3
    %v1622 = vand.u32 %v1621, 3
    %vm1623 = vcmp.lt.s32.totalorder %v1622, 2
    %vm1624 = vcmp.eq.s32.totalorder %v1622, 0
    %v1625 = vxor.u32 %v1619, 2147483648
    %v1626 = vsel %vm1624, %v1618, %v1625
    %vm1627 = vcmp.eq.s32.totalorder %v1622, 2
    %v1628 = vxor.u32 %v1618, 2147483648
    %v1629 = vsel %vm1627, %v1628, %v1619
    %v1630 = vsel %vm1623, %v1626, %v1629
    %v1631 = vsel %vm1620, nan, %v1630
    %1632 = vset.pattern.permute.xlu0 2
    %1633 = vperm.xlu0 %1632, %v63
    %v1634 = vpop.permute.xlu0 %1633
    %1636 = vset.pattern.permute.xlu0 2
    %1637 = vperm.xlu0 %1636, %v64
    %v1638 = vpop.permute.xlu0 %1637
    %1640 = vset.pattern.permute.xlu0 2
    %1641 = vperm.xlu0 %1640, %v65
    %v1642 = vpop.permute.xlu0 %1641
    %1644 = vset.pattern.permute.xlu0 2
    %1645 = vperm.xlu0 %1644, %v66
    %v1646 = vpop.permute.xlu0 %1645
    %v1648 = vmul.f32 %v1634, %v903
    %v1649 = vmul.f32 %v1638, %v1007
    %v1650 = vmul.f32 %v1642, %v1111
    %v1651 = vmul.f32 %v1646, %v1215
    %v1652 = vmul.f32 %v1634, %v1319
    %v1653 = vmul.f32 %v1638, %v1423
    %v1654 = vmul.f32 %v1642, %v1527
    %v1655 = vmul.f32 %v1646, %v1631
    %v1656 = vsub.f32 1.0, %v63
    %v1657 = vsub.f32 1.0, %v64
    %v1658 = vsub.f32 1.0, %v65
    %v1659 = vsub.f32 1.0, %v66
    %1661 = vset.pattern.permute.xlu0 2
    %1662 = vperm.xlu0 %1661, %v1656
    %v1663 = vpop.permute.xlu0 %1662
    %1666 = vset.pattern.permute.xlu0 2
    %1667 = vperm.xlu0 %1666, %v1657
    %v1668 = vpop.permute.xlu0 %1667
    %1671 = vset.pattern.permute.xlu0 2
    %1672 = vperm.xlu0 %1671, %v1658
    %v1673 = vpop.permute.xlu0 %1672
    %1676 = vset.pattern.permute.xlu0 2
    %1677 = vperm.xlu0 %1676, %v1659
    %v1678 = vpop.permute.xlu0 %1677
    %v1680 = vmul.f32 %v1663, %v792
    %v1681 = vmul.f32 %v1668, %v793
    %v1682 = vmul.f32 %v1673, %v794
    %v1683 = vmul.f32 %v1678, %v795
    %v1684 = vmul.f32 %v1663, %v796
    %v1685 = vmul.f32 %v1668, %v797
    %v1686 = vmul.f32 %v1673, %v798
    %v1687 = vmul.f32 %v1678, %v799
    %v1688 = vadd.f32 %v1648, %v1680
    %v1689 = vadd.f32 %v1649, %v1681
    %v1690 = vadd.f32 %v1650, %v1682
    %v1691 = vadd.f32 %v1651, %v1683
    %v1692 = vadd.f32 %v1652, %v1684
    %v1693 = vadd.f32 %v1653, %v1685
    %v1694 = vadd.f32 %v1654, %v1686
    %v1695 = vadd.f32 %v1655, %v1687
    %1696 = vset.pattern.permute.xlu0 3
    %1697 = vperm.xlu0 %1696, %v63
    %v1698 = vpop.permute.xlu0 %1697
    %1700 = vset.pattern.permute.xlu0 3
    %1701 = vperm.xlu0 %1700, %v64
    %v1702 = vpop.permute.xlu0 %1701
    %1704 = vset.pattern.permute.xlu0 3
    %1705 = vperm.xlu0 %1704, %v65
    %v1706 = vpop.permute.xlu0 %1705
    %1708 = vset.pattern.permute.xlu0 3
    %1709 = vperm.xlu0 %1708, %v66
    %v1710 = vpop.permute.xlu0 %1709
    %v1713 = vsel %vm134, %v72, 0
    %v1716 = vsel %vm134, %v73, 0
    %v1719 = vsel %vm134, %v74, 0
    %v1722 = vsel %vm134, %v75, 0
    %1724 = vmatprep.subr.mxu0 0.0
    %1725 = vmatpush1.msra.mxu0 %v1688
    %1726 = vmatprep.subr.mxu0 0.0
    %1727 = vmatpush1.msra.mxu0 %v1689
    %1728 = vmatprep.subr.mxu0 0.0
    %1729 = vmatpush1.msra.mxu0 %v1690
    %1730 = vmatprep.subr.mxu0 0.0
    %1731 = vmatpush1.msra.mxu0 %v1691
    %1732 = vmatprep.subr.mxu0 0.0
    %1733 = vmatpush1.msra.mxu0 0.0
    %1734 = vmatprep.subr.mxu0 0.0
    %1735 = vmatpush1.msra.mxu0 0.0
    %1736 = vmatprep.subr.mxu0 0.0
    %1737 = vmatpush1.msra.mxu0 0.0
    %1738 = vmatprep.subr.mxu0 0.0
    %1739 = vmatpush1.msra.mxu0 0.0
    %1740 = vmatprep.subr.mxu0 0.0
    %1741 = vmatpush1.msra.mxu0 0.0
    %1742 = vmatprep.subr.mxu0 0.0
    %1743 = vmatpush1.msra.mxu0 0.0
    %1744 = vmatprep.subr.mxu0 0.0
    %1745 = vmatpush1.msra.mxu0 0.0
    %1746 = vmatprep.subr.mxu0 0.0
    %1747 = vmatpush1.msra.mxu0 0.0
    %1748 = vmatprep.subr.mxu0 0.0
    %1749 = vmatpush1.msra.mxu0 0.0
    %1750 = vmatprep.subr.mxu0 0.0
    %1751 = vmatpush1.msra.mxu0 0.0
    %1752 = vmatprep.subr.mxu0 0.0
    %1753 = vmatpush1.msra.mxu0 0.0
    %1754 = vmatprep.subr.mxu0 0.0
    %1755 = vmatpush1.msra.mxu0 0.0
    %1756 = vmatprep.subr.mxu0 0.0
    %1757 = vmatpush1.msra.mxu0 0.0
    %1758 = vmatprep.subr.mxu0 0.0
    %1759 = vmatpush1.msra.mxu0 0.0
    %1760 = vmatprep.subr.mxu0 0.0
    %1761 = vmatpush1.msra.mxu0 0.0
    %1762 = vmatprep.subr.mxu0 0.0
    %1763 = vmatpush1.msra.mxu0 0.0
    %1764 = vmatprep.subr.mxu0 0.0
    %1765 = vmatpush1.msra.mxu0 0.0
    %1766 = vmatprep.subr.mxu0 0.0
    %1767 = vmatpush1.msra.mxu0 0.0
    %1768 = vmatprep.subr.mxu0 0.0
    %1769 = vmatpush1.msra.mxu0 0.0
    %1770 = vmatprep.subr.mxu0 0.0
    %1771 = vmatpush1.msra.mxu0 0.0
    %1772 = vmatprep.subr.mxu0 0.0
    %1773 = vmatpush1.msra.mxu0 0.0
    %1774 = vmatprep.subr.mxu0 0.0
    %1775 = vmatpush1.msra.mxu0 0.0
    %1776 = vmatprep.subr.mxu0 0.0
    %1777 = vmatpush1.msra.mxu0 0.0
    %1778 = vmatprep.subr.mxu0 0.0
    %1779 = vmatpush1.msra.mxu0 0.0
    %1780 = vmatprep.subr.mxu0 0.0
    %1781 = vmatpush1.msra.mxu0 0.0
    %1782 = vmatprep.subr.mxu0 0.0
    %1783 = vmatpush1.msra.mxu0 0.0
    %1784 = vmatprep.subr.mxu0 0.0
    %1785 = vmatpush1.msra.mxu0 0.0
    %1786 = vmatprep.subr.mxu0 0.0
    %1787 = vmatpush1.msra.mxu0 0.0
    %1788 = vmatprep.mubr.f32.mxu0 0.0
    %1789 = vmatmul.mubr.f32.gmra.mrb[0].mxu0 %v1713
    %v1790 = vpop.f32.mrb[0].mxu0
    %v1791 = vadd.f32 %v1698, %v1790
    %v1792 = vpop.f32.mrb[0].mxu0
    %1793 = vmatprep.mubr.f32.mxu0 0.0
    %1794 = vmatmul.mubr.f32.gmra.mrb[0].mxu0 %v1716
    %v1795 = vpop.f32.mrb[0].mxu0
    %v1796 = vadd.f32 %v1702, %v1795
    %v1797 = vpop.f32.mrb[0].mxu0
    %1798 = vmatprep.mubr.f32.mxu0 0.0
    %1799 = vmatmul.mubr.f32.gmra.mrb[0].mxu0 %v1719
    %v1800 = vpop.f32.mrb[0].mxu0
    %v1801 = vadd.f32 %v1706, %v1800
    %v1802 = vpop.f32.mrb[0].mxu0
    %1803 = vmatprep.mubr.f32.mxu0 0.0
    %1804 = vmatmul.mubr.f32.gmra.mrb[0].mxu0 %v1722
    %v1805 = vpop.f32.mrb[0].mxu0
    %v1806 = vadd.f32 %v1710, %v1805
    %v1807 = vpop.f32.mrb[0].mxu0
    %1808 = vdwg.mxu0
    %1809 = vmatprep.subr.mxu0 0.0
    %1810 = vmatpush1.msra.mxu0 %v1692
    %1811 = vmatprep.subr.mxu0 0.0
    %1812 = vmatpush1.msra.mxu0 %v1693
    %1813 = vmatprep.subr.mxu0 0.0
    %1814 = vmatpush1.msra.mxu0 %v1694
    %1815 = vmatprep.subr.mxu0 0.0
    %1816 = vmatpush1.msra.mxu0 %v1695
    %1817 = vmatprep.subr.mxu0 0.0
    %1818 = vmatpush1.msra.mxu0 0.0
    %1819 = vmatprep.subr.mxu0 0.0
    %1820 = vmatpush1.msra.mxu0 0.0
    %1821 = vmatprep.subr.mxu0 0.0
    %1822 = vmatpush1.msra.mxu0 0.0
    %1823 = vmatprep.subr.mxu0 0.0
    %1824 = vmatpush1.msra.mxu0 0.0
    %1825 = vmatprep.subr.mxu0 0.0
    %1826 = vmatpush1.msra.mxu0 0.0
    %1827 = vmatprep.subr.mxu0 0.0
    %1828 = vmatpush1.msra.mxu0 0.0
    %1829 = vmatprep.subr.mxu0 0.0
    %1830 = vmatpush1.msra.mxu0 0.0
    %1831 = vmatprep.subr.mxu0 0.0
    %1832 = vmatpush1.msra.mxu0 0.0
    %1833 = vmatprep.subr.mxu0 0.0
    %1834 = vmatpush1.msra.mxu0 0.0
    %1835 = vmatprep.subr.mxu0 0.0
    %1836 = vmatpush1.msra.mxu0 0.0
    %1837 = vmatprep.subr.mxu0 0.0
    %1838 = vmatpush1.msra.mxu0 0.0
    %1839 = vmatprep.subr.mxu0 0.0
    %1840 = vmatpush1.msra.mxu0 0.0
    %1841 = vmatprep.subr.mxu0 0.0
    %1842 = vmatpush1.msra.mxu0 0.0
    %1843 = vmatprep.subr.mxu0 0.0
    %1844 = vmatpush1.msra.mxu0 0.0
    %1845 = vmatprep.subr.mxu0 0.0
    %1846 = vmatpush1.msra.mxu0 0.0
    %1847 = vmatprep.subr.mxu0 0.0
    %1848 = vmatpush1.msra.mxu0 0.0
    %1849 = vmatprep.subr.mxu0 0.0
    %1850 = vmatpush1.msra.mxu0 0.0
    %1851 = vmatprep.subr.mxu0 0.0
    %1852 = vmatpush1.msra.mxu0 0.0
    %1853 = vmatprep.subr.mxu0 0.0
    %1854 = vmatpush1.msra.mxu0 0.0
    %1855 = vmatprep.subr.mxu0 0.0
    %1856 = vmatpush1.msra.mxu0 0.0
    %1857 = vmatprep.subr.mxu0 0.0
    %1858 = vmatpush1.msra.mxu0 0.0
    %1859 = vmatprep.subr.mxu0 0.0
    %1860 = vmatpush1.msra.mxu0 0.0
    %1861 = vmatprep.subr.mxu0 0.0
    %1862 = vmatpush1.msra.mxu0 0.0
    %1863 = vmatprep.subr.mxu0 0.0
    %1864 = vmatpush1.msra.mxu0 0.0
    %1865 = vmatprep.subr.mxu0 0.0
    %1866 = vmatpush1.msra.mxu0 0.0
    %1867 = vmatprep.subr.mxu0 0.0
    %1868 = vmatpush1.msra.mxu0 0.0
    %1869 = vmatprep.subr.mxu0 0.0
    %1870 = vmatpush1.msra.mxu0 0.0
    %1871 = vmatprep.subr.mxu0 0.0
    %1872 = vmatpush1.msra.mxu0 0.0
    %1873 = vmatprep.mubr.f32.mxu0 0.0
    %1874 = vmatmul.mubr.f32.gmra.mrb[0].mxu0 %v1713
    %v1875 = vpop.f32.mrb[0].mxu0
    %v1876 = vadd.f32 %v1698, %v1875
    %v1877 = vpop.f32.mrb[0].mxu0
    %1878 = vmatprep.mubr.f32.mxu0 0.0
    %1879 = vmatmul.mubr.f32.gmra.mrb[0].mxu0 %v1716
    %v1880 = vpop.f32.mrb[0].mxu0
    %v1881 = vadd.f32 %v1702, %v1880
    %v1882 = vpop.f32.mrb[0].mxu0
    %1883 = vmatprep.mubr.f32.mxu0 0.0
    %1884 = vmatmul.mubr.f32.gmra.mrb[0].mxu0 %v1719
    %v1885 = vpop.f32.mrb[0].mxu0
    %v1886 = vadd.f32 %v1706, %v1885
    %v1887 = vpop.f32.mrb[0].mxu0
    %1888 = vmatprep.mubr.f32.mxu0 0.0
    %1889 = vmatmul.mubr.f32.gmra.mrb[0].mxu0 %v1722
    %v1890 = vpop.f32.mrb[0].mxu0
    %v1891 = vadd.f32 %v1710, %v1890
    %v1892 = vpop.f32.mrb[0].mxu0
    %1893 = vdwg.mxu0
    %1902 = vrot.lane.b32.xlu0 %v1791, 16
    %v1903 = vpop.permute.xlu0 %1902
    %1904 = vrot.lane.b32.xlu0 %v1796, 16
    %v1905 = vpop.permute.xlu0 %1904
    %1906 = vrot.lane.b32.xlu0 %v1801, 16
    %v1907 = vpop.permute.xlu0 %1906
    %1908 = vrot.lane.b32.xlu0 %v1806, 16
    %v1909 = vpop.permute.xlu0 %1908
    %1910 = vrot.lane.b32.xlu0 %v1876, 16
    %v1911 = vpop.permute.xlu0 %1910
    %1912 = vrot.lane.b32.xlu0 %v1881, 16
    %v1913 = vpop.permute.xlu0 %1912
    %1914 = vrot.lane.b32.xlu0 %v1886, 16
    %v1915 = vpop.permute.xlu0 %1914
    %1916 = vrot.lane.b32.xlu0 %v1891, 16
    %v1917 = vpop.permute.xlu0 %1916
    %1926 = vrot.lane.b32.xlu0 %v1791, 32
    %v1927 = vpop.permute.xlu0 %1926
    %1928 = vrot.lane.b32.xlu0 %v1796, 32
    %v1929 = vpop.permute.xlu0 %1928
    %1930 = vrot.lane.b32.xlu0 %v1801, 32
    %v1931 = vpop.permute.xlu0 %1930
    %1932 = vrot.lane.b32.xlu0 %v1806, 32
    %v1933 = vpop.permute.xlu0 %1932
    %1934 = vrot.lane.b32.xlu0 %v1876, 32
    %v1935 = vpop.permute.xlu0 %1934
    %1936 = vrot.lane.b32.xlu0 %v1881, 32
    %v1937 = vpop.permute.xlu0 %1936
    %1938 = vrot.lane.b32.xlu0 %v1886, 32
    %v1939 = vpop.permute.xlu0 %1938
    %1940 = vrot.lane.b32.xlu0 %v1891, 32
    %v1941 = vpop.permute.xlu0 %1940
    %1950 = vrot.lane.b32.xlu0 %v1791, 48
    %v1951 = vpop.permute.xlu0 %1950
    %1952 = vrot.lane.b32.xlu0 %v1796, 48
    %v1953 = vpop.permute.xlu0 %1952
    %1954 = vrot.lane.b32.xlu0 %v1801, 48
    %v1955 = vpop.permute.xlu0 %1954
    %1956 = vrot.lane.b32.xlu0 %v1806, 48
    %v1957 = vpop.permute.xlu0 %1956
    %1958 = vrot.lane.b32.xlu0 %v1876, 48
    %v1959 = vpop.permute.xlu0 %1958
    %1960 = vrot.lane.b32.xlu0 %v1881, 48
    %v1961 = vpop.permute.xlu0 %1960
    %1962 = vrot.lane.b32.xlu0 %v1886, 48
    %v1963 = vpop.permute.xlu0 %1962
    %1964 = vrot.lane.b32.xlu0 %v1891, 48
    %v1965 = vpop.permute.xlu0 %1964
    %1974 = vrot.lane.b32.xlu0 %v1791, 64
    %v1975 = vpop.permute.xlu0 %1974
    %1976 = vrot.lane.b32.xlu0 %v1796, 64
    %v1977 = vpop.permute.xlu0 %1976
    %1978 = vrot.lane.b32.xlu0 %v1801, 64
    %v1979 = vpop.permute.xlu0 %1978
    %1980 = vrot.lane.b32.xlu0 %v1806, 64
    %v1981 = vpop.permute.xlu0 %1980
    %1982 = vrot.lane.b32.xlu0 %v1876, 64
    %v1983 = vpop.permute.xlu0 %1982
    %1984 = vrot.lane.b32.xlu0 %v1881, 64
    %v1985 = vpop.permute.xlu0 %1984
    %1986 = vrot.lane.b32.xlu0 %v1886, 64
    %v1987 = vpop.permute.xlu0 %1986
    %1988 = vrot.lane.b32.xlu0 %v1891, 64
    %v1989 = vpop.permute.xlu0 %1988
    %1998 = vrot.lane.b32.xlu0 %v1791, 80
    %v1999 = vpop.permute.xlu0 %1998
    %2000 = vrot.lane.b32.xlu0 %v1796, 80
    %v2001 = vpop.permute.xlu0 %2000
    %2002 = vrot.lane.b32.xlu0 %v1801, 80
    %v2003 = vpop.permute.xlu0 %2002
    %2004 = vrot.lane.b32.xlu0 %v1806, 80
    %v2005 = vpop.permute.xlu0 %2004
    %2006 = vrot.lane.b32.xlu0 %v1876, 80
    %v2007 = vpop.permute.xlu0 %2006
    %2008 = vrot.lane.b32.xlu0 %v1881, 80
    %v2009 = vpop.permute.xlu0 %2008
    %2010 = vrot.lane.b32.xlu0 %v1886, 80
    %v2011 = vpop.permute.xlu0 %2010
    %2012 = vrot.lane.b32.xlu0 %v1891, 80
    %v2013 = vpop.permute.xlu0 %2012
    %2022 = vrot.lane.b32.xlu0 %v1791, 96
    %v2023 = vpop.permute.xlu0 %2022
    %2024 = vrot.lane.b32.xlu0 %v1796, 96
    %v2025 = vpop.permute.xlu0 %2024
    %2026 = vrot.lane.b32.xlu0 %v1801, 96
    %v2027 = vpop.permute.xlu0 %2026
    %2028 = vrot.lane.b32.xlu0 %v1806, 96
    %v2029 = vpop.permute.xlu0 %2028
    %2030 = vrot.lane.b32.xlu0 %v1876, 96
    %v2031 = vpop.permute.xlu0 %2030
    %2032 = vrot.lane.b32.xlu0 %v1881, 96
    %v2033 = vpop.permute.xlu0 %2032
    %2034 = vrot.lane.b32.xlu0 %v1886, 96
    %v2035 = vpop.permute.xlu0 %2034
    %2036 = vrot.lane.b32.xlu0 %v1891, 96
    %v2037 = vpop.permute.xlu0 %2036
    %2046 = vrot.lane.b32.xlu0 %v1791, 112
    %v2047 = vpop.permute.xlu0 %2046
    %2048 = vrot.lane.b32.xlu0 %v1796, 112
    %v2049 = vpop.permute.xlu0 %2048
    %2050 = vrot.lane.b32.xlu0 %v1801, 112
    %v2051 = vpop.permute.xlu0 %2050
    %2052 = vrot.lane.b32.xlu0 %v1806, 112
    %v2053 = vpop.permute.xlu0 %2052
    %2054 = vrot.lane.b32.xlu0 %v1876, 112
    %v2055 = vpop.permute.xlu0 %2054
    %2056 = vrot.lane.b32.xlu0 %v1881, 112
    %v2057 = vpop.permute.xlu0 %2056
    %2058 = vrot.lane.b32.xlu0 %v1886, 112
    %v2059 = vpop.permute.xlu0 %2058
    %2060 = vrot.lane.b32.xlu0 %v1891, 112
    %v2061 = vpop.permute.xlu0 %2060
    %vm2070 = vcmask 130048
    %v2071 = vsel %vm2070, %v1791, %v1903
    %v2072 = vsel %vm2070, %v1796, %v1905
    %v2073 = vsel %vm2070, %v1801, %v1907
    %v2074 = vsel %vm2070, %v1806, %v1909
    %v2075 = vsel %vm2070, %v1876, %v1911
    %v2076 = vsel %vm2070, %v1881, %v1913
    %v2077 = vsel %vm2070, %v1886, %v1915
    %v2078 = vsel %vm2070, %v1891, %v1917
    %v2079 = vsel %vm134, %v2071, %v1927
    %v2080 = vsel %vm134, %v2072, %v1929
    %v2081 = vsel %vm134, %v2073, %v1931
    %v2082 = vsel %vm134, %v2074, %v1933
    %v2083 = vsel %vm134, %v2075, %v1935
    %v2084 = vsel %vm134, %v2076, %v1937
    %v2085 = vsel %vm134, %v2077, %v1939
    %v2086 = vsel %vm134, %v2078, %v1941
    %vm2087 = vcmask 392192
    %v2088 = vsel %vm2087, %v2079, %v1951
    %v2089 = vsel %vm2087, %v2080, %v1953
    %v2090 = vsel %vm2087, %v2081, %v1955
    %v2091 = vsel %vm2087, %v2082, %v1957
    %v2092 = vsel %vm2087, %v2083, %v1959
    %v2093 = vsel %vm2087, %v2084, %v1961
    %v2094 = vsel %vm2087, %v2085, %v1963
    %v2095 = vsel %vm2087, %v2086, %v1965
    %vm2096 = vcmask 523264
    %v2097 = vsel %vm2096, %v2088, %v1975
    %v2098 = vsel %vm2096, %v2089, %v1977
    %v2099 = vsel %vm2096, %v2090, %v1979
    %v2100 = vsel %vm2096, %v2091, %v1981
    %v2101 = vsel %vm2096, %v2092, %v1983
    %v2102 = vsel %vm2096, %v2093, %v1985
    %v2103 = vsel %vm2096, %v2094, %v1987
    %v2104 = vsel %vm2096, %v2095, %v1989
    %vm2105 = vcmask 654336
    %v2106 = vsel %vm2105, %v2097, %v1999
    %v2107 = vsel %vm2105, %v2098, %v2001
    %v2108 = vsel %vm2105, %v2099, %v2003
    %v2109 = vsel %vm2105, %v2100, %v2005
    %v2110 = vsel %vm2105, %v2101, %v2007
    %v2111 = vsel %vm2105, %v2102, %v2009
    %v2112 = vsel %vm2105, %v2103, %v2011
    %v2113 = vsel %vm2105, %v2104, %v2013
    %vm2114 = vcmask 785408
    %v2115 = vsel %vm2114, %v2106, %v2023
    %v2116 = vsel %vm2114, %v2107, %v2025
    %v2117 = vsel %vm2114, %v2108, %v2027
    %v2118 = vsel %vm2114, %v2109, %v2029
    %v2119 = vsel %vm2114, %v2110, %v2031
    %v2120 = vsel %vm2114, %v2111, %v2033
    %v2121 = vsel %vm2114, %v2112, %v2035
    %v2122 = vsel %vm2114, %v2113, %v2037
    %vm2123 = vcmask 916480
    %v2124 = vsel %vm2123, %v2115, %v2047
    %v2125 = vsel %vm2123, %v2116, %v2049
    %v2126 = vsel %vm2123, %v2117, %v2051
    %v2127 = vsel %vm2123, %v2118, %v2053
    %v2128 = vsel %vm2123, %v2119, %v2055
    %v2129 = vsel %vm2123, %v2120, %v2057
    %v2130 = vsel %vm2123, %v2121, %v2059
    %v2131 = vsel %vm2123, %v2122, %v2061
    %v2132 = vmul.f32 %v2124, %v86
    %v2133 = vmul.f32 %v2125, %v87
    %v2134 = vmul.f32 %v2126, %v88
    %v2135 = vmul.f32 %v2127, %v89
    %v2136 = vmul.f32 %v2128, %v86
    %v2137 = vmul.f32 %v2129, %v87
    %v2138 = vmul.f32 %v2130, %v88
    %v2139 = vmul.f32 %v2131, %v89
    %v2141 = vsel %vm134, %v728, 0
    %2143 = vmatprep.subr.mxu0 0.0
    %2144 = vmatpush1.msra.mxu0 %v2132
    %2145 = vmatprep.subr.mxu0 0.0
    %2146 = vmatpush1.msra.mxu0 %v2133
    %2147 = vmatprep.subr.mxu0 0.0
    %2148 = vmatpush1.msra.mxu0 %v2134
    %2149 = vmatprep.subr.mxu0 0.0
    %2150 = vmatpush1.msra.mxu0 %v2135
    %2151 = vmatprep.subr.mxu0 0.0
    %2152 = vmatpush1.msra.mxu0 0.0
    %2153 = vmatprep.subr.mxu0 0.0
    %2154 = vmatpush1.msra.mxu0 0.0
    %2155 = vmatprep.subr.mxu0 0.0
    %2156 = vmatpush1.msra.mxu0 0.0
    %2157 = vmatprep.subr.mxu0 0.0
    %2158 = vmatpush1.msra.mxu0 0.0
    %2159 = vmatprep.subr.mxu0 0.0
    %2160 = vmatpush1.msra.mxu0 0.0
    %2161 = vmatprep.subr.mxu0 0.0
    %2162 = vmatpush1.msra.mxu0 0.0
    %2163 = vmatprep.subr.mxu0 0.0
    %2164 = vmatpush1.msra.mxu0 0.0
    %2165 = vmatprep.subr.mxu0 0.0
    %2166 = vmatpush1.msra.mxu0 0.0
    %2167 = vmatprep.subr.mxu0 0.0
    %2168 = vmatpush1.msra.mxu0 0.0
    %2169 = vmatprep.subr.mxu0 0.0
    %2170 = vmatpush1.msra.mxu0 0.0
    %2171 = vmatprep.subr.mxu0 0.0
    %2172 = vmatpush1.msra.mxu0 0.0
    %2173 = vmatprep.subr.mxu0 0.0
    %2174 = vmatpush1.msra.mxu0 0.0
    %2175 = vmatprep.subr.mxu0 0.0
    %2176 = vmatpush1.msra.mxu0 0.0
    %2177 = vmatprep.subr.mxu0 0.0
    %2178 = vmatpush1.msra.mxu0 0.0
    %2179 = vmatprep.subr.mxu0 0.0
    %2180 = vmatpush1.msra.mxu0 0.0
    %2181 = vmatprep.subr.mxu0 0.0
    %2182 = vmatpush1.msra.mxu0 0.0
    %2183 = vmatprep.subr.mxu0 0.0
    %2184 = vmatpush1.msra.mxu0 0.0
    %2185 = vmatprep.subr.mxu0 0.0
    %2186 = vmatpush1.msra.mxu0 0.0
    %2187 = vmatprep.subr.mxu0 0.0
    %2188 = vmatpush1.msra.mxu0 0.0
    %2189 = vmatprep.subr.mxu0 0.0
    %2190 = vmatpush1.msra.mxu0 0.0
    %2191 = vmatprep.subr.mxu0 0.0
    %2192 = vmatpush1.msra.mxu0 0.0
    %2193 = vmatprep.subr.mxu0 0.0
    %2194 = vmatpush1.msra.mxu0 0.0
    %2195 = vmatprep.subr.mxu0 0.0
    %2196 = vmatpush1.msra.mxu0 0.0
    %2197 = vmatprep.subr.mxu0 0.0
    %2198 = vmatpush1.msra.mxu0 0.0
    %2199 = vmatprep.subr.mxu0 0.0
    %2200 = vmatpush1.msra.mxu0 0.0
    %2201 = vmatprep.subr.mxu0 0.0
    %2202 = vmatpush1.msra.mxu0 0.0
    %2203 = vmatprep.subr.mxu0 0.0
    %2204 = vmatpush1.msra.mxu0 0.0
    %2205 = vmatprep.subr.mxu0 0.0
    %2206 = vmatpush1.msra.mxu0 0.0
    %2207 = vmatprep.mubr.f32.mxu0 0.0
    %2208 = vmatmul.mubr.f32.gmra.mrb[0].mxu0 %v2141
    %v2209 = vpop.f32.mrb[0].mxu0
    %v2210 = vadd.f32 0.0, %v2209
    %v2211 = vpop.f32.mrb[0].mxu0
    %2212 = vdwg.mxu0
    %v2214 = vsel %vm134, %v733, 0
    %2216 = vmatprep.subr.mxu0 0.0
    %2217 = vmatpush1.msra.mxu0 %v2136
    %2218 = vmatprep.subr.mxu0 0.0
    %2219 = vmatpush1.msra.mxu0 %v2137
    %2220 = vmatprep.subr.mxu0 0.0
    %2221 = vmatpush1.msra.mxu0 %v2138
    %2222 = vmatprep.subr.mxu0 0.0
    %2223 = vmatpush1.msra.mxu0 %v2139
    %2224 = vmatprep.subr.mxu0 0.0
    %2225 = vmatpush1.msra.mxu0 0.0
    %2226 = vmatprep.subr.mxu0 0.0
    %2227 = vmatpush1.msra.mxu0 0.0
    %2228 = vmatprep.subr.mxu0 0.0
    %2229 = vmatpush1.msra.mxu0 0.0
    %2230 = vmatprep.subr.mxu0 0.0
    %2231 = vmatpush1.msra.mxu0 0.0
    %2232 = vmatprep.subr.mxu0 0.0
    %2233 = vmatpush1.msra.mxu0 0.0
    %2234 = vmatprep.subr.mxu0 0.0
    %2235 = vmatpush1.msra.mxu0 0.0
    %2236 = vmatprep.subr.mxu0 0.0
    %2237 = vmatpush1.msra.mxu0 0.0
    %2238 = vmatprep.subr.mxu0 0.0
    %2239 = vmatpush1.msra.mxu0 0.0
    %2240 = vmatprep.subr.mxu0 0.0
    %2241 = vmatpush1.msra.mxu0 0.0
    %2242 = vmatprep.subr.mxu0 0.0
    %2243 = vmatpush1.msra.mxu0 0.0
    %2244 = vmatprep.subr.mxu0 0.0
    %2245 = vmatpush1.msra.mxu0 0.0
    %2246 = vmatprep.subr.mxu0 0.0
    %2247 = vmatpush1.msra.mxu0 0.0
    %2248 = vmatprep.subr.mxu0 0.0
    %2249 = vmatpush1.msra.mxu0 0.0
    %2250 = vmatprep.subr.mxu0 0.0
    %2251 = vmatpush1.msra.mxu0 0.0
    %2252 = vmatprep.subr.mxu0 0.0
    %2253 = vmatpush1.msra.mxu0 0.0
    %2254 = vmatprep.subr.mxu0 0.0
    %2255 = vmatpush1.msra.mxu0 0.0
    %2256 = vmatprep.subr.mxu0 0.0
    %2257 = vmatpush1.msra.mxu0 0.0
    %2258 = vmatprep.subr.mxu0 0.0
    %2259 = vmatpush1.msra.mxu0 0.0
    %2260 = vmatprep.subr.mxu0 0.0
    %2261 = vmatpush1.msra.mxu0 0.0
    %2262 = vmatprep.subr.mxu0 0.0
    %2263 = vmatpush1.msra.mxu0 0.0
    %2264 = vmatprep.subr.mxu0 0.0
    %2265 = vmatpush1.msra.mxu0 0.0
    %2266 = vmatprep.subr.mxu0 0.0
    %2267 = vmatpush1.msra.mxu0 0.0
    %2268 = vmatprep.subr.mxu0 0.0
    %2269 = vmatpush1.msra.mxu0 0.0
    %2270 = vmatprep.subr.mxu0 0.0
    %2271 = vmatpush1.msra.mxu0 0.0
    %2272 = vmatprep.subr.mxu0 0.0
    %2273 = vmatpush1.msra.mxu0 0.0
    %2274 = vmatprep.subr.mxu0 0.0
    %2275 = vmatpush1.msra.mxu0 0.0
    %2276 = vmatprep.subr.mxu0 0.0
    %2277 = vmatpush1.msra.mxu0 0.0
    %2278 = vmatprep.subr.mxu0 0.0
    %2279 = vmatpush1.msra.mxu0 0.0
    %2280 = vmatprep.mubr.f32.mxu0 0.0
    %2281 = vmatmul.mubr.f32.gmra.mrb[0].mxu0 %v2214
    %v2282 = vpop.f32.mrb[0].mxu0
    %v2283 = vadd.f32 0.0, %v2282
    %v2284 = vpop.f32.mrb[0].mxu0
    %2285 = vdwg.mxu0
    %v2286 = vmul.f32 %v2210, 0.5
    %v2287 = vmul.f32 %v2283, 0.5
    %2288 = vmax.xlane.f32.xlu0 %v2286
    %v2289 = vpop.xlane.xlu0 %2288
    %2290 = vmax.xlane.f32.xlu0 %v2287
    %v2291 = vpop.xlane.xlu0 %2290
    %v2292 = vsub.f32 %v2286, %v2289
    %v2293 = vsub.f32 %v2287, %v2291
    %v2294 = vmul.f32 %v2292, 1.442695
    %v2295 = vpow.pop %v2294
    %v2296 = vmul.f32 %v2293, 1.442695
    %v2297 = vpow.pop %v2296
    %v2298 = vsub.f32 %v409, %v761
    %v2299 = vsub.f32 %v414, %v765
    %v2301 = vrot.slane %v62, 1
    %s2302 = vtos %v2301
    %v2303 = vstv %s2302
    %v2305 = vmul.f32 %v2303, %v2298
    %v2306 = vmul.f32 %v2303, %v2299
    %v2307 = vadd.f32 %v2305, 1.0
    %v2308 = vadd.f32 %v2306, 1.0
    %v2309 = vrcp.pop %v2307
    %v2310 = vrcp.pop %v2308
    %v2311 = vmul.f32 %v2298, %v2309
    %v2312 = vmul.f32 %v2299, %v2310
    %2315 = vrot.lane.b32.xlu0 %v2311, 16
    %v2316 = vpop.permute.xlu0 %2315
    %2317 = vrot.lane.b32.xlu0 %v2312, 16
    %v2318 = vpop.permute.xlu0 %2317
    %2321 = vrot.lane.b32.xlu0 %v2311, 32
    %v2322 = vpop.permute.xlu0 %2321
    %2323 = vrot.lane.b32.xlu0 %v2312, 32
    %v2324 = vpop.permute.xlu0 %2323
    %2327 = vrot.lane.b32.xlu0 %v2311, 48
    %v2328 = vpop.permute.xlu0 %2327
    %2329 = vrot.lane.b32.xlu0 %v2312, 48
    %v2330 = vpop.permute.xlu0 %2329
    %2333 = vrot.lane.b32.xlu0 %v2311, 64
    %v2334 = vpop.permute.xlu0 %2333
    %2335 = vrot.lane.b32.xlu0 %v2312, 64
    %v2336 = vpop.permute.xlu0 %2335
    %2339 = vrot.lane.b32.xlu0 %v2311, 80
    %v2340 = vpop.permute.xlu0 %2339
    %2341 = vrot.lane.b32.xlu0 %v2312, 80
    %v2342 = vpop.permute.xlu0 %2341
    %2345 = vrot.lane.b32.xlu0 %v2311, 96
    %v2346 = vpop.permute.xlu0 %2345
    %2347 = vrot.lane.b32.xlu0 %v2312, 96
    %v2348 = vpop.permute.xlu0 %2347
    %2351 = vrot.lane.b32.xlu0 %v2311, 112
    %v2352 = vpop.permute.xlu0 %2351
    %2353 = vrot.lane.b32.xlu0 %v2312, 112
    %v2354 = vpop.permute.xlu0 %2353
    %v2357 = vsel %vm2070, %v2311, %v2316
    %v2358 = vsel %vm2070, %v2312, %v2318
    %v2359 = vsel %vm134, %v2357, %v2322
    %v2360 = vsel %vm134, %v2358, %v2324
    %v2361 = vsel %vm2087, %v2359, %v2328
    %v2362 = vsel %vm2087, %v2360, %v2330
    %v2363 = vsel %vm2096, %v2361, %v2334
    %v2364 = vsel %vm2096, %v2362, %v2336
    %v2365 = vsel %vm2105, %v2363, %v2340
    %v2366 = vsel %vm2105, %v2364, %v2342
    %v2367 = vsel %vm2114, %v2365, %v2346
    %v2368 = vsel %vm2114, %v2366, %v2348
    %v2369 = vsel %vm2123, %v2367, %v2352
    %v2370 = vsel %vm2123, %v2368, %v2354
    %2375 = vrot.lane.b32.xlu0 %v388, 32
    %v2376 = vpop.permute.xlu0 %2375
    %2377 = vrot.lane.b32.xlu0 %v393, 32
    %v2378 = vpop.permute.xlu0 %2377
    %2379 = vrot.lane.b32.xlu0 %v398, 32
    %v2380 = vpop.permute.xlu0 %2379
    %2381 = vrot.lane.b32.xlu0 %v403, 32
    %v2382 = vpop.permute.xlu0 %2381
    %2387 = vrot.lane.b32.xlu0 %v388, 64
    %v2388 = vpop.permute.xlu0 %2387
    %2389 = vrot.lane.b32.xlu0 %v393, 64
    %v2390 = vpop.permute.xlu0 %2389
    %2391 = vrot.lane.b32.xlu0 %v398, 64
    %v2392 = vpop.permute.xlu0 %2391
    %2393 = vrot.lane.b32.xlu0 %v403, 64
    %v2394 = vpop.permute.xlu0 %2393
    %2399 = vrot.lane.b32.xlu0 %v388, 96
    %v2400 = vpop.permute.xlu0 %2399
    %2401 = vrot.lane.b32.xlu0 %v393, 96
    %v2402 = vpop.permute.xlu0 %2401
    %2403 = vrot.lane.b32.xlu0 %v398, 96
    %v2404 = vpop.permute.xlu0 %2403
    %2405 = vrot.lane.b32.xlu0 %v403, 96
    %v2406 = vpop.permute.xlu0 %2405
    %v2411 = vsel %vm134, %v388, %v2376
    %v2412 = vsel %vm134, %v393, %v2378
    %v2413 = vsel %vm134, %v398, %v2380
    %v2414 = vsel %vm134, %v403, %v2382
    %v2415 = vsel %vm2096, %v2411, %v2388
    %v2416 = vsel %vm2096, %v2412, %v2390
    %v2417 = vsel %vm2096, %v2413, %v2392
    %v2418 = vsel %vm2096, %v2414, %v2394
    %v2419 = vsel %vm2114, %v2415, %v2400
    %v2420 = vsel %vm2114, %v2416, %v2402
    %v2421 = vsel %vm2114, %v2417, %v2404
    %v2422 = vsel %vm2114, %v2418, %v2406
    %v2423 = vmul.f32 %v2419, %v90
    %v2424 = vmul.f32 %v2419, %v91
    %v2425 = vmul.f32 %v2420, %v92
    %v2426 = vmul.f32 %v2420, %v93
    %v2427 = vmul.f32 %v2419, %v94
    %v2428 = vmul.f32 %v2419, %v95
    %v2429 = vmul.f32 %v2420, %v96
    %v2430 = vmul.f32 %v2420, %v97
    %v2431 = vmul.f32 %v2419, %v98
    %v2432 = vmul.f32 %v2419, %v99
    %v2433 = vmul.f32 %v2420, %v100
    %v2434 = vmul.f32 %v2420, %v101
    %v2435 = vmul.f32 %v2419, %v102
    %v2436 = vmul.f32 %v2419, %v103
    %v2437 = vmul.f32 %v2420, %v104
    %v2438 = vmul.f32 %v2420, %v105
    %v2439 = vmul.f32 %v2419, %v106
    %v2440 = vmul.f32 %v2419, %v107
    %v2441 = vmul.f32 %v2420, %v108
    %v2442 = vmul.f32 %v2420, %v109
    %v2443 = vmul.f32 %v2419, %v110
    %v2444 = vmul.f32 %v2419, %v111
    %v2445 = vmul.f32 %v2420, %v112
    %v2446 = vmul.f32 %v2420, %v113
    %v2447 = vmul.f32 %v2419, %v114
    %v2448 = vmul.f32 %v2419, %v115
    %v2449 = vmul.f32 %v2420, %v116
    %v2450 = vmul.f32 %v2420, %v117
    %v2451 = vmul.f32 %v2419, %v118
    %v2452 = vmul.f32 %v2419, %v119
    %v2453 = vmul.f32 %v2420, %v120
    %v2454 = vmul.f32 %v2420, %v121
    %v2455 = vmul.f32 %v2421, %v90
    %v2456 = vmul.f32 %v2421, %v91
    %v2457 = vmul.f32 %v2422, %v92
    %v2458 = vmul.f32 %v2422, %v93
    %v2459 = vmul.f32 %v2421, %v94
    %v2460 = vmul.f32 %v2421, %v95
    %v2461 = vmul.f32 %v2422, %v96
    %v2462 = vmul.f32 %v2422, %v97
    %v2463 = vmul.f32 %v2421, %v98
    %v2464 = vmul.f32 %v2421, %v99
    %v2465 = vmul.f32 %v2422, %v100
    %v2466 = vmul.f32 %v2422, %v101
    %v2467 = vmul.f32 %v2421, %v102
    %v2468 = vmul.f32 %v2421, %v103
    %v2469 = vmul.f32 %v2422, %v104
    %v2470 = vmul.f32 %v2422, %v105
    %v2471 = vmul.f32 %v2421, %v106
    %v2472 = vmul.f32 %v2421, %v107
    %v2473 = vmul.f32 %v2422, %v108
    %v2474 = vmul.f32 %v2422, %v109
    %v2475 = vmul.f32 %v2421, %v110
    %v2476 = vmul.f32 %v2421, %v111
    %v2477 = vmul.f32 %v2422, %v112
    %v2478 = vmul.f32 %v2422, %v113
    %v2479 = vmul.f32 %v2421, %v114
    %v2480 = vmul.f32 %v2421, %v115
    %v2481 = vmul.f32 %v2422, %v116
    %v2482 = vmul.f32 %v2422, %v117
    %v2483 = vmul.f32 %v2421, %v118
    %v2484 = vmul.f32 %v2421, %v119
    %v2485 = vmul.f32 %v2422, %v120
    %v2486 = vmul.f32 %v2422, %v121
    %2487 = vrot.lane.b32.xlu0 %v126, 32
    %v2488 = vpop.permute.xlu0 %2487
    %2489 = vrot.lane.b32.xlu0 %v127, 32
    %v2490 = vpop.permute.xlu0 %2489
    %2491 = vrot.lane.b32.xlu0 %v128, 32
    %v2492 = vpop.permute.xlu0 %2491
    %2493 = vrot.lane.b32.xlu0 %v129, 32
    %v2494 = vpop.permute.xlu0 %2493
    %2499 = vrot.lane.b32.xlu0 %v126, 64
    %v2500 = vpop.permute.xlu0 %2499
    %2501 = vrot.lane.b32.xlu0 %v127, 64
    %v2502 = vpop.permute.xlu0 %2501
    %2503 = vrot.lane.b32.xlu0 %v128, 64
    %v2504 = vpop.permute.xlu0 %2503
    %2505 = vrot.lane.b32.xlu0 %v129, 64
    %v2506 = vpop.permute.xlu0 %2505
    %2511 = vrot.lane.b32.xlu0 %v126, 96
    %v2512 = vpop.permute.xlu0 %2511
    %2513 = vrot.lane.b32.xlu0 %v127, 96
    %v2514 = vpop.permute.xlu0 %2513
    %2515 = vrot.lane.b32.xlu0 %v128, 96
    %v2516 = vpop.permute.xlu0 %2515
    %2517 = vrot.lane.b32.xlu0 %v129, 96
    %v2518 = vpop.permute.xlu0 %2517
    %v2523 = vsel %vm134, %v126, %v2488
    %v2524 = vsel %vm134, %v127, %v2490
    %v2525 = vsel %vm134, %v128, %v2492
    %v2526 = vsel %vm134, %v129, %v2494
    %v2527 = vsel %vm2096, %v2523, %v2500
    %v2528 = vsel %vm2096, %v2524, %v2502
    %v2529 = vsel %vm2096, %v2525, %v2504
    %v2530 = vsel %vm2096, %v2526, %v2506
    %v2531 = vsel %vm2114, %v2527, %v2512
    %v2532 = vsel %vm2114, %v2528, %v2514
    %v2533 = vsel %vm2114, %v2529, %v2516
    %v2534 = vsel %vm2114, %v2530, %v2518
    %v2535 = vmul.f32 %v2531, %v90
    %v2536 = vmul.f32 %v2531, %v91
    %v2537 = vmul.f32 %v2532, %v92
    %v2538 = vmul.f32 %v2532, %v93
    %v2539 = vmul.f32 %v2531, %v94
    %v2540 = vmul.f32 %v2531, %v95
    %v2541 = vmul.f32 %v2532, %v96
    %v2542 = vmul.f32 %v2532, %v97
    %v2543 = vmul.f32 %v2531, %v98
    %v2544 = vmul.f32 %v2531, %v99
    %v2545 = vmul.f32 %v2532, %v100
    %v2546 = vmul.f32 %v2532, %v101
    %v2547 = vmul.f32 %v2531, %v102
    %v2548 = vmul.f32 %v2531, %v103
    %v2549 = vmul.f32 %v2532, %v104
    %v2550 = vmul.f32 %v2532, %v105
    %v2551 = vmul.f32 %v2531, %v106
    %v2552 = vmul.f32 %v2531, %v107
    %v2553 = vmul.f32 %v2532, %v108
    %v2554 = vmul.f32 %v2532, %v109
    %v2555 = vmul.f32 %v2531, %v110
    %v2556 = vmul.f32 %v2531, %v111
    %v2557 = vmul.f32 %v2532, %v112
    %v2558 = vmul.f32 %v2532, %v113
    %v2559 = vmul.f32 %v2531, %v114
    %v2560 = vmul.f32 %v2531, %v115
    %v2561 = vmul.f32 %v2532, %v116
    %v2562 = vmul.f32 %v2532, %v117
    %v2563 = vmul.f32 %v2531, %v118
    %v2564 = vmul.f32 %v2531, %v119
    %v2565 = vmul.f32 %v2532, %v120
    %v2566 = vmul.f32 %v2532, %v121
    %v2567 = vmul.f32 %v2533, %v90
    %v2568 = vmul.f32 %v2533, %v91
    %v2569 = vmul.f32 %v2534, %v92
    %v2570 = vmul.f32 %v2534, %v93
    %v2571 = vmul.f32 %v2533, %v94
    %v2572 = vmul.f32 %v2533, %v95
    %v2573 = vmul.f32 %v2534, %v96
    %v2574 = vmul.f32 %v2534, %v97
    %v2575 = vmul.f32 %v2533, %v98
    %v2576 = vmul.f32 %v2533, %v99
    %v2577 = vmul.f32 %v2534, %v100
    %v2578 = vmul.f32 %v2534, %v101
    %v2579 = vmul.f32 %v2533, %v102
    %v2580 = vmul.f32 %v2533, %v103
    %v2581 = vmul.f32 %v2534, %v104
    %v2582 = vmul.f32 %v2534, %v105
    %v2583 = vmul.f32 %v2533, %v106
    %v2584 = vmul.f32 %v2533, %v107
    %v2585 = vmul.f32 %v2534, %v108
    %v2586 = vmul.f32 %v2534, %v109
    %v2587 = vmul.f32 %v2533, %v110
    %v2588 = vmul.f32 %v2533, %v111
    %v2589 = vmul.f32 %v2534, %v112
    %v2590 = vmul.f32 %v2534, %v113
    %v2591 = vmul.f32 %v2533, %v114
    %v2592 = vmul.f32 %v2533, %v115
    %v2593 = vmul.f32 %v2534, %v116
    %v2594 = vmul.f32 %v2534, %v117
    %v2595 = vmul.f32 %v2533, %v118
    %v2596 = vmul.f32 %v2533, %v119
    %v2597 = vmul.f32 %v2534, %v120
    %v2598 = vmul.f32 %v2534, %v121
    %v2599 = vmul.f32 %v2295, %v2369
    %v2600 = vmul.f32 %v2297, %v2370
    %2601 = vmatprep.subr.mxu0 %v2424
    %2602 = vmatpush1.msra.mxu0 %v2423
    %2603 = vmatprep.subr.mxu0 %v2426
    %2604 = vmatpush1.msra.mxu0 %v2425
    %2605 = vmatprep.subr.mxu0 %v2428
    %2606 = vmatpush1.msra.mxu0 %v2427
    %2607 = vmatprep.subr.mxu0 %v2430
    %2608 = vmatpush1.msra.mxu0 %v2429
    %2609 = vmatprep.subr.mxu0 %v2432
    %2610 = vmatpush1.msra.mxu0 %v2431
    %2611 = vmatprep.subr.mxu0 %v2434
    %2612 = vmatpush1.msra.mxu0 %v2433
    %2613 = vmatprep.subr.mxu0 %v2436
    %2614 = vmatpush1.msra.mxu0 %v2435
    %2615 = vmatprep.subr.mxu0 %v2438
    %2616 = vmatpush1.msra.mxu0 %v2437
    %2617 = vmatprep.subr.mxu0 %v2440
    %2618 = vmatpush1.msra.mxu0 %v2439
    %2619 = vmatprep.subr.mxu0 %v2442
    %2620 = vmatpush1.msra.mxu0 %v2441
    %2621 = vmatprep.subr.mxu0 %v2444
    %2622 = vmatpush1.msra.mxu0 %v2443
    %2623 = vmatprep.subr.mxu0 %v2446
    %2624 = vmatpush1.msra.mxu0 %v2445
    %2625 = vmatprep.subr.mxu0 %v2448
    %2626 = vmatpush1.msra.mxu0 %v2447
    %2627 = vmatprep.subr.mxu0 %v2450
    %2628 = vmatpush1.msra.mxu0 %v2449
    %2629 = vmatprep.subr.mxu0 %v2452
    %2630 = vmatpush1.msra.mxu0 %v2451
    %2631 = vmatprep.subr.mxu0 %v2454
    %2632 = vmatpush1.msra.mxu0 %v2453
    %2633 = vmatprep.subr.mxu0 %v2536
    %2634 = vmatpush1.msra.mxu0 %v2535
    %2635 = vmatprep.subr.mxu0 %v2538
    %2636 = vmatpush1.msra.mxu0 %v2537
    %2637 = vmatprep.subr.mxu0 %v2540
    %2638 = vmatpush1.msra.mxu0 %v2539
    %2639 = vmatprep.subr.mxu0 %v2542
    %2640 = vmatpush1.msra.mxu0 %v2541
    %2641 = vmatprep.subr.mxu0 %v2544
    %2642 = vmatpush1.msra.mxu0 %v2543
    %2643 = vmatprep.subr.mxu0 %v2546
    %2644 = vmatpush1.msra.mxu0 %v2545
    %2645 = vmatprep.subr.mxu0 %v2548
    %2646 = vmatpush1.msra.mxu0 %v2547
    %2647 = vmatprep.subr.mxu0 %v2550
    %2648 = vmatpush1.msra.mxu0 %v2549
    %2649 = vmatprep.subr.mxu0 %v2552
    %2650 = vmatpush1.msra.mxu0 %v2551
    %2651 = vmatprep.subr.mxu0 %v2554
    %2652 = vmatpush1.msra.mxu0 %v2553
    %2653 = vmatprep.subr.mxu0 %v2556
    %2654 = vmatpush1.msra.mxu0 %v2555
    %2655 = vmatprep.subr.mxu0 %v2558
    %2656 = vmatpush1.msra.mxu0 %v2557
    %2657 = vmatprep.subr.mxu0 %v2560
    %2658 = vmatpush1.msra.mxu0 %v2559
    %2659 = vmatprep.subr.mxu0 %v2562
    %2660 = vmatpush1.msra.mxu0 %v2561
    %2661 = vmatprep.subr.mxu0 %v2564
    %2662 = vmatpush1.msra.mxu0 %v2563
    %2663 = vmatprep.subr.mxu0 %v2566
    %2664 = vmatpush1.msra.mxu0 %v2565
    %2665 = vmatprep.mubr.f32.mxu0 %v2295
    %2666 = vmatmul.mubr.f32.gmra.mrb[0].mxu0 %v2599
    %v2667 = vpop.f32.mrb[0].mxu0
    %v2668 = vadd.f32 0.0, %v2667
    %v2669 = vpop.f32.mrb[0].mxu0
    %v2670 = vadd.f32 0.0, %v2669
    %2671 = vdwg.mxu0
    %2672 = vmatprep.subr.mxu0 %v2456
    %2673 = vmatpush1.msra.mxu0 %v2455
    %2674 = vmatprep.subr.mxu0 %v2458
    %2675 = vmatpush1.msra.mxu0 %v2457
    %2676 = vmatprep.subr.mxu0 %v2460
    %2677 = vmatpush1.msra.mxu0 %v2459
    %2678 = vmatprep.subr.mxu0 %v2462
    %2679 = vmatpush1.msra.mxu0 %v2461
    %2680 = vmatprep.subr.mxu0 %v2464
    %2681 = vmatpush1.msra.mxu0 %v2463
    %2682 = vmatprep.subr.mxu0 %v2466
    %2683 = vmatpush1.msra.mxu0 %v2465
    %2684 = vmatprep.subr.mxu0 %v2468
    %2685 = vmatpush1.msra.mxu0 %v2467
    %2686 = vmatprep.subr.mxu0 %v2470
    %2687 = vmatpush1.msra.mxu0 %v2469
    %2688 = vmatprep.subr.mxu0 %v2472
    %2689 = vmatpush1.msra.mxu0 %v2471
    %2690 = vmatprep.subr.mxu0 %v2474
    %2691 = vmatpush1.msra.mxu0 %v2473
    %2692 = vmatprep.subr.mxu0 %v2476
    %2693 = vmatpush1.msra.mxu0 %v2475
    %2694 = vmatprep.subr.mxu0 %v2478
    %2695 = vmatpush1.msra.mxu0 %v2477
    %2696 = vmatprep.subr.mxu0 %v2480
    %2697 = vmatpush1.msra.mxu0 %v2479
    %2698 = vmatprep.subr.mxu0 %v2482
    %2699 = vmatpush1.msra.mxu0 %v2481
    %2700 = vmatprep.subr.mxu0 %v2484
    %2701 = vmatpush1.msra.mxu0 %v2483
    %2702 = vmatprep.subr.mxu0 %v2486
    %2703 = vmatpush1.msra.mxu0 %v2485
    %2704 = vmatprep.subr.mxu0 %v2568
    %2705 = vmatpush1.msra.mxu0 %v2567
    %2706 = vmatprep.subr.mxu0 %v2570
    %2707 = vmatpush1.msra.mxu0 %v2569
    %2708 = vmatprep.subr.mxu0 %v2572
    %2709 = vmatpush1.msra.mxu0 %v2571
    %2710 = vmatprep.subr.mxu0 %v2574
    %2711 = vmatpush1.msra.mxu0 %v2573
    %2712 = vmatprep.subr.mxu0 %v2576
    %2713 = vmatpush1.msra.mxu0 %v2575
    %2714 = vmatprep.subr.mxu0 %v2578
    %2715 = vmatpush1.msra.mxu0 %v2577
    %2716 = vmatprep.subr.mxu0 %v2580
    %2717 = vmatpush1.msra.mxu0 %v2579
    %2718 = vmatprep.subr.mxu0 %v2582
    %2719 = vmatpush1.msra.mxu0 %v2581
    %2720 = vmatprep.subr.mxu0 %v2584
    %2721 = vmatpush1.msra.mxu0 %v2583
    %2722 = vmatprep.subr.mxu0 %v2586
    %2723 = vmatpush1.msra.mxu0 %v2585
    %2724 = vmatprep.subr.mxu0 %v2588
    %2725 = vmatpush1.msra.mxu0 %v2587
    %2726 = vmatprep.subr.mxu0 %v2590
    %2727 = vmatpush1.msra.mxu0 %v2589
    %2728 = vmatprep.subr.mxu0 %v2592
    %2729 = vmatpush1.msra.mxu0 %v2591
    %2730 = vmatprep.subr.mxu0 %v2594
    %2731 = vmatpush1.msra.mxu0 %v2593
    %2732 = vmatprep.subr.mxu0 %v2596
    %2733 = vmatpush1.msra.mxu0 %v2595
    %2734 = vmatprep.subr.mxu0 %v2598
    %2735 = vmatpush1.msra.mxu0 %v2597
    %2736 = vmatprep.mubr.f32.mxu0 %v2297
    %2737 = vmatmul.mubr.f32.gmra.mrb[0].mxu0 %v2600
    %v2738 = vpop.f32.mrb[0].mxu0
    %v2739 = vadd.f32 0.0, %v2738
    %v2740 = vpop.f32.mrb[0].mxu0
    %v2741 = vadd.f32 0.0, %v2740
    %2742 = vdwg.mxu0
    %2743 = vmatprep.subr.mxu0 %v91
    %2744 = vmatpush1.msra.mxu0 %v90
    %2745 = vmatprep.subr.mxu0 %v93
    %2746 = vmatpush1.msra.mxu0 %v92
    %2747 = vmatprep.subr.mxu0 %v95
    %2748 = vmatpush1.msra.mxu0 %v94
    %2749 = vmatprep.subr.mxu0 %v97
    %2750 = vmatpush1.msra.mxu0 %v96
    %2751 = vmatprep.subr.mxu0 %v99
    %2752 = vmatpush1.msra.mxu0 %v98
    %2753 = vmatprep.subr.mxu0 %v101
    %2754 = vmatpush1.msra.mxu0 %v100
    %2755 = vmatprep.subr.mxu0 %v103
    %2756 = vmatpush1.msra.mxu0 %v102
    %2757 = vmatprep.subr.mxu0 %v105
    %2758 = vmatpush1.msra.mxu0 %v104
    %2759 = vmatprep.subr.mxu0 %v107
    %2760 = vmatpush1.msra.mxu0 %v106
    %2761 = vmatprep.subr.mxu0 %v109
    %2762 = vmatpush1.msra.mxu0 %v108
    %2763 = vmatprep.subr.mxu0 %v111
    %2764 = vmatpush1.msra.mxu0 %v110
    %2765 = vmatprep.subr.mxu0 %v113
    %2766 = vmatpush1.msra.mxu0 %v112
    %2767 = vmatprep.subr.mxu0 %v115
    %2768 = vmatpush1.msra.mxu0 %v114
    %2769 = vmatprep.subr.mxu0 %v117
    %2770 = vmatpush1.msra.mxu0 %v116
    %2771 = vmatprep.subr.mxu0 %v119
    %2772 = vmatpush1.msra.mxu0 %v118
    %2773 = vmatprep.subr.mxu0 %v121
    %2774 = vmatpush1.msra.mxu0 %v120
    %2775 = vmatprep.subr.mxu0 0.0
    %2776 = vmatpush1.msra.mxu0 0.0
    %2777 = vmatprep.subr.mxu0 0.0
    %2778 = vmatpush1.msra.mxu0 0.0
    %2779 = vmatprep.subr.mxu0 0.0
    %2780 = vmatpush1.msra.mxu0 0.0
    %2781 = vmatprep.subr.mxu0 0.0
    %2782 = vmatpush1.msra.mxu0 0.0
    %2783 = vmatprep.subr.mxu0 0.0
    %2784 = vmatpush1.msra.mxu0 0.0
    %2785 = vmatprep.subr.mxu0 0.0
    %2786 = vmatpush1.msra.mxu0 0.0
    %2787 = vmatprep.subr.mxu0 0.0
    %2788 = vmatpush1.msra.mxu0 0.0
    %2789 = vmatprep.subr.mxu0 0.0
    %2790 = vmatpush1.msra.mxu0 0.0
    %2791 = vmatprep.subr.mxu0 0.0
    %2792 = vmatpush1.msra.mxu0 0.0
    %2793 = vmatprep.subr.mxu0 0.0
    %2794 = vmatpush1.msra.mxu0 0.0
    %2795 = vmatprep.subr.mxu0 0.0
    %2796 = vmatpush1.msra.mxu0 0.0
    %2797 = vmatprep.subr.mxu0 0.0
    %2798 = vmatpush1.msra.mxu0 0.0
    %2799 = vmatprep.subr.mxu0 0.0
    %2800 = vmatpush1.msra.mxu0 0.0
    %2801 = vmatprep.subr.mxu0 0.0
    %2802 = vmatpush1.msra.mxu0 0.0
    %2803 = vmatprep.subr.mxu0 0.0
    %2804 = vmatpush1.msra.mxu0 0.0
    %2805 = vmatprep.subr.mxu0 0.0
    %2806 = vmatpush1.msra.mxu0 0.0
    %2807 = vmatprep.mubr.f32.mxu0 0.0
    %2808 = vmatmul.mubr.f32.gmra.mrb[0].mxu0 %v2295
    %v2809 = vpop.f32.mrb[0].mxu0
    %v2810 = vadd.f32 0.0, %v2809
    %v2811 = vpop.f32.mrb[0].mxu0
    %v2812 = vadd.f32 0.0, %v2811
    %2813 = vmatprep.mubr.f32.mxu0 0.0
    %2814 = vmatmul.mubr.f32.gmra.mrb[0].mxu0 %v2297
    %v2815 = vpop.f32.mrb[0].mxu0
    %v2816 = vadd.f32 0.0, %v2815
    %v2817 = vpop.f32.mrb[0].mxu0
    %v2818 = vadd.f32 0.0, %v2817
    %2819 = vdwg.mxu0
    %v2820 = vrcp.pop %v2810
    %v2821 = vrcp.pop %v2812
    %v2822 = vrcp.pop %v2816
    %v2823 = vrcp.pop %v2818
    %v2824 = vmul.f32 %v2668, %v2820
    %v2825 = vmul.f32 %v2670, %v2821
    %v2826 = vmul.f32 %v2739, %v2822
    %v2827 = vmul.f32 %v2741, %v2823
    %v2828 = vld [vmem:[%s6] sm:$0xff]
    %v2829 = vld [vmem:[%s6 + $0x8] sm:$0xff]
    %v2830 = vld [vmem:[%s6 + $0x10] sm:$0xff]
    %v2831 = vld [vmem:[%s6 + $0x18] sm:$0xff]
    %v2832 = vld [vmem:[%s6 + $0x20] sm:$0xff]
    %v2833 = vld [vmem:[%s6 + $0x28] sm:$0xff]
    %v2834 = vld [vmem:[%s6 + $0x30] sm:$0xff]
    %v2835 = vld [vmem:[%s6 + $0x38] sm:$0xff]
    %v2836 = vld [vmem:[%s6 + $0x40] sm:$0xff]
    %v2837 = vld [vmem:[%s6 + $0x48] sm:$0xff]
    %v2838 = vld [vmem:[%s6 + $0x50] sm:$0xff]
    %v2839 = vld [vmem:[%s6 + $0x58] sm:$0xff]
    %v2840 = vld [vmem:[%s6 + $0x60] sm:$0xff]
    %v2841 = vld [vmem:[%s6 + $0x68] sm:$0xff]
    %v2842 = vld [vmem:[%s6 + $0x70] sm:$0xff]
    %v2843 = vld [vmem:[%s6 + $0x78] sm:$0xff]
    %v2844 = vld [vmem:[%s6 + $0x80] sm:$0xff]
    %v2845 = vld [vmem:[%s6 + $0x88] sm:$0xff]
    %v2846 = vld [vmem:[%s6 + $0x90] sm:$0xff]
    %v2847 = vld [vmem:[%s6 + $0x98] sm:$0xff]
    %v2848 = vld [vmem:[%s6 + $0xa0] sm:$0xff]
    %v2849 = vld [vmem:[%s6 + $0xa8] sm:$0xff]
    %v2850 = vld [vmem:[%s6 + $0xb0] sm:$0xff]
    %v2851 = vld [vmem:[%s6 + $0xb8] sm:$0xff]
    %v2852 = vld [vmem:[%s6 + $0xc0] sm:$0xff]
    %v2853 = vld [vmem:[%s6 + $0xc8] sm:$0xff]
    %v2854 = vld [vmem:[%s6 + $0xd0] sm:$0xff]
    %v2855 = vld [vmem:[%s6 + $0xd8] sm:$0xff]
    %v2856 = vld [vmem:[%s6 + $0xe0] sm:$0xff]
    %v2857 = vld [vmem:[%s6 + $0xe8] sm:$0xff]
    %v2858 = vld [vmem:[%s6 + $0xf0] sm:$0xff]
    %v2859 = vld [vmem:[%s6 + $0xf8] sm:$0xff]
    %v2860 = vlaneseq
    %v2861 = vshrl.u32 %v2860, 7
    %v2862 = vsub.s32 0, %v2861
    %v2863 = vrot.slane %v62, %v2862
    %2864 = vmatprep.subr.mxu0 0.0
    %2865 = vmatpush1.msra.mxu0 %v2828
    %2866 = vmatprep.subr.mxu0 0.0
    %2867 = vmatpush1.msra.mxu0 %v2829
    %2868 = vmatprep.subr.mxu0 0.0
    %2869 = vmatpush1.msra.mxu0 %v2830
    %2870 = vmatprep.subr.mxu0 0.0
    %2871 = vmatpush1.msra.mxu0 %v2831
    %2872 = vmatprep.subr.mxu0 0.0
    %2873 = vmatpush1.msra.mxu0 %v2832
    %2874 = vmatprep.subr.mxu0 0.0
    %2875 = vmatpush1.msra.mxu0 %v2833
    %2876 = vmatprep.subr.mxu0 0.0
    %2877 = vmatpush1.msra.mxu0 %v2834
    %2878 = vmatprep.subr.mxu0 0.0
    %2879 = vmatpush1.msra.mxu0 %v2835
    %2880 = vmatprep.subr.mxu0 0.0
    %2881 = vmatpush1.msra.mxu0 %v2836
    %2882 = vmatprep.subr.mxu0 0.0
    %2883 = vmatpush1.msra.mxu0 %v2837
    %2884 = vmatprep.subr.mxu0 0.0
    %2885 = vmatpush1.msra.mxu0 %v2838
    %2886 = vmatprep.subr.mxu0 0.0
    %2887 = vmatpush1.msra.mxu0 %v2839
    %2888 = vmatprep.subr.mxu0 0.0
    %2889 = vmatpush1.msra.mxu0 %v2840
    %2890 = vmatprep.subr.mxu0 0.0
    %2891 = vmatpush1.msra.mxu0 %v2841
    %2892 = vmatprep.subr.mxu0 0.0
    %2893 = vmatpush1.msra.mxu0 %v2842
    %2894 = vmatprep.subr.mxu0 0.0
    %2895 = vmatpush1.msra.mxu0 %v2843
    %2896 = vmatprep.subr.mxu0 0.0
    %2897 = vmatpush1.msra.mxu0 %v2844
    %2898 = vmatprep.subr.mxu0 0.0
    %2899 = vmatpush1.msra.mxu0 %v2845
    %2900 = vmatprep.subr.mxu0 0.0
    %2901 = vmatpush1.msra.mxu0 %v2846
    %2902 = vmatprep.subr.mxu0 0.0
    %2903 = vmatpush1.msra.mxu0 %v2847
    %2904 = vmatprep.subr.mxu0 0.0
    %2905 = vmatpush1.msra.mxu0 %v2848
    %2906 = vmatprep.subr.mxu0 0.0
    %2907 = vmatpush1.msra.mxu0 %v2849
    %2908 = vmatprep.subr.mxu0 0.0
    %2909 = vmatpush1.msra.mxu0 %v2850
    %2910 = vmatprep.subr.mxu0 0.0
    %2911 = vmatpush1.msra.mxu0 %v2851
    %2912 = vmatprep.subr.mxu0 0.0
    %2913 = vmatpush1.msra.mxu0 %v2852
    %2914 = vmatprep.subr.mxu0 0.0
    %2915 = vmatpush1.msra.mxu0 %v2853
    %2916 = vmatprep.subr.mxu0 0.0
    %2917 = vmatpush1.msra.mxu0 %v2854
    %2918 = vmatprep.subr.mxu0 0.0
    %2919 = vmatpush1.msra.mxu0 %v2855
    %2920 = vmatprep.subr.mxu0 0.0
    %2921 = vmatpush1.msra.mxu0 %v2856
    %2922 = vmatprep.subr.mxu0 0.0
    %2923 = vmatpush1.msra.mxu0 %v2857
    %2924 = vmatprep.subr.mxu0 0.0
    %2925 = vmatpush1.msra.mxu0 %v2858
    %2926 = vmatprep.subr.mxu0 0.0
    %2927 = vmatpush1.msra.mxu0 %v2859
    %2928 = vmatprep.mubr.f32.mxu0 %v2825
    %2929 = vmatmul.mubr.f32.gmra.mrb[0].mxu0 %v2824
    %v2930 = vpop.f32.mrb[0].mxu0
    %v2931 = vadd.f32 %v2863, %v2930
    %v2932 = vpop.f32.mrb[0].mxu0
    %2933 = vmatprep.mubr.f32.mxu0 %v2827
    %2934 = vmatmul.mubr.f32.gmra.mrb[0].mxu0 %v2826
    %v2935 = vpop.f32.mrb[0].mxu0
    %v2936 = vadd.f32 %v2863, %v2935
    %v2937 = vpop.f32.mrb[0].mxu0
    %2938 = vdwg.mxu0
    %2939 = vst.msk [vmem:[#allocation7] sm:$0xff] %vm134, %v2931
    %2940 = vst.msk [vmem:[#allocation7 + $0x8] sm:$0xff] %vm134, %v2936
    // Predicated region
    $region46: #{tpu_custom_call.1} parent=1 // pred_check
      _
    $region47: #{tpu_custom_call.1} parent=1 // pred_check_branch
      %2942 = sbr.rel (0) target = $region49
    $region48: #{tpu_custom_call.1} parent=1 // pred_region
      %s2944 = ssub.s32 256, 256
      %2945 = vsyncadd [#allocation4], %s2944
      %s2946 = sshll.u32 [#allocation7], 4
      %s2947 = int_to_ptr.vmem [resolvable:$true] %s2946
      %2952 = dma.vmem_to_hbm [thread:$0]  %s2947, 256, %s9, [#allocation4], 128, 128, 8
    $region49: #{tpu_custom_call.1} parent=1 // pred_fallthru
      _
    // Predicated region
    $region50: #{tpu_custom_call.1} parent=1 // pred_check
      _
    $region51: #{tpu_custom_call.1} parent=1 // pred_check_branch
      %2954 = sbr.rel (0) target = $region53
    $region52: #{tpu_custom_call.1} parent=1 // pred_region
      %2955 = dma.done [#allocation4], 256
    $region53: #{tpu_custom_call.1} parent=1 // pred_fallthru
      _
    %2956 = vsyncpa [#allocation3], 1
    %2957 = vsyncpa [#allocation6], 1
    %2958 = vsyncpa [#allocation4], 1

</llo_original>
